<compile_context>
chip_gen: v7x
topology: tpu7x:2x2x1
jax: 0.10.0
libtpu: 0.0.40
codegen_flags: <defaults>
</compile_context>

<pallas_src>
import numpy as np
import jax
import jax.numpy as jnp
from jax.experimental import pallas as pl
from jax.experimental.pallas import tpu as pltpu

# ----------------------------- configuration (small, consistent with module) ----------
B, N, L = 2, 8, 8              # batch, num_nodes, input_seq_len
M = B * N                      # graph nodes total (16)
ML = M * L                     # flattened rows (128)
K = 3                          # conv kernel size
C1, C2 = 128, 128              # temporal_num_channels (module default [128, 128])
HT = 128                       # temporal_hidden (lane-dense, scaled from 256)
G = 128                        # gnn_hidden (lane-dense, scaled from 512)
NUM_DYNAMICS = 3               # num_gnn_layers (module default 3)
N_GNN = 1 + NUM_DYNAMICS       # input_proj + dynamics TransformerConv layers
OUT_DIM = 5
OUT_PAD = 128                  # lane-dense padded output width
LN_EPS = 1e-5
NEG_INF = -1e30


# ----------------------------- spec helpers -------------------------------------------
def _full_specs(arrays):
    # whole-array blocks, trivial grid=(1,)
    return [pl.BlockSpec(a.shape, lambda i, nd=len(a.shape): (0,) * nd) for a in arrays]


# ----------------------------- fused forward kernel ------------------------------------
def fused_forward_kernel(*refs):
    n_gnn_params = 4 * N_GNN
    (x_ref, mprev_ref, mnext_ref, adj_ref,
     w1_ref, b1_ref, w2_ref, b2_ref, wl_ref, bl_ref) = refs[0:10]
    gnn_refs = refs[10:10 + n_gnn_params]
    dw1_ref, db1_ref, dw2_ref, db2_ref = refs[10 + n_gnn_params:14 + n_gnn_params]
    out_ref = refs[14 + n_gnn_params]
    h2_scratch = refs[15 + n_gnn_params]

    f32 = jnp.float32
    bf16 = jnp.bfloat16

    # ---------------- TCN: two 'same'-padded Conv1d + ReLU (channels-last rows) -------
    x = x_ref[...]                        # (ML, 1) f32
    mprev = mprev_ref[...]                # (ML, 1): 0 where t == 0   (reads t-1 invalid)
    mnext = mnext_ref[...]                # (ML, 1): 0 where t == L-1 (reads t+1 invalid)
    w1 = w1_ref[...]                      # (K, C1) f32

    # Conv1d(1, C1, K=3, pad=1): out[t] = sum_k w1[k] * x[t + k - 1]
    # roll(v, 1)[r] = v[r-1]; roll(v, ML-1)[r] = v[r+1]; masks kill cross-sample wraps.
    h1 = x * w1[1:2, :]                                        # center tap (VPU FMA)
    h1 = h1 + pltpu.roll(x * w1[0:1, :], 1, 0) * mprev         # tap k=0 -> x[t-1]
    h1 = h1 + pltpu.roll(x * w1[2:3, :], ML - 1, 0) * mnext    # tap k=2 -> x[t+1]
    h1 = jnp.maximum(h1 + b1_ref[...], 0.0)                    # (ML, C1), ReLU

    # Conv1d(C1, C2, K=3, pad=1) as one wide MXU matmul over concatenated taps.
    h1_m1 = pltpu.roll(h1, 1, 0) * mprev                       # h1[t-1]
    h1_p1 = pltpu.roll(h1, ML - 1, 0) * mnext                  # h1[t+1]
    h1_cat = jnp.concatenate([h1_m1, h1, h1_p1], axis=-1)      # (ML, 3*C1)
    h2 = jnp.dot(h1_cat.astype(bf16), w2_ref[...],
                 preferred_element_type=f32) + b2_ref[...]
    h2 = jnp.maximum(h2, 0.0)                                  # (ML, C2), ReLU

    # ---------------- global max-pool over time (strided reads, stride = L) -----------
    h2_scratch[...] = h2
    pooled = h2_scratch[pl.ds(0, M, stride=L), :]              # rows t=0 of each sample
    for tt in range(1, L):
        pooled = jnp.maximum(pooled, h2_scratch[pl.ds(tt, M, stride=L), :])
    # pooled: (M, C2)

    # ---------------- temporal linear: Linear(C2 -> HT) --------------------------------
    x_temp = jnp.dot(pooled.astype(bf16), wl_ref[...],
                     preferred_element_type=f32) + bl_ref[...]  # (M, HT)

    # ---------------- GNN: TransformerConv + LayerNorm + ReLU (x N_GNN) ----------------
    adj = adj_ref[...]                    # (M, M), adj[i, j] = 1 iff edge j -> i
    # additive attention bias, hoisted once for all layers
    adj_bias = jnp.where(adj > 0, jnp.float32(0.0), jnp.float32(NEG_INF))
    inv_sqrt_d = 1.0 / float(G) ** 0.5

    def gnn_layer(xin, w_ref, b_ref, g_ref, beta_ref, add_residual):
        # fused Q|K|V|skip projection: (M, Fin) @ (Fin, 4*G)
        proj = jnp.dot(xin.astype(bf16), w_ref[...],
                       preferred_element_type=f32) + b_ref[...]          # (M, 4*G)
        q = proj[:, 0:G]
        kk = proj[:, G:2 * G]
        v = proj[:, 2 * G:3 * G]
        skip = proj[:, 3 * G:4 * G]
        # scores[i, j] = q_i . k_j / sqrt(d)   (contraction over feature dim)
        scores = jax.lax.dot_general(
            q.astype(bf16), kk.astype(bf16), (((1,), (1,)), ((), ())),
            preferred_element_type=f32) * inv_sqrt_d                      # (M, M)
        masked = scores + adj_bias
        mx = jnp.max(masked, axis=-1, keepdims=True)
        p = jnp.exp(masked - mx) * adj                                    # exact zeros off-graph
        denom = jnp.sum(p, axis=-1, keepdims=True)
        alpha = p * pl.reciprocal(jnp.maximum(denom, 1e-30), approx=True)  # rows w/o edges -> 0
        agg = jnp.dot(alpha.astype(bf16), v.astype(bf16),
                      preferred_element_type=f32)                          # (M, G)
        h = agg + skip
        if add_residual:
            h = h + xin
        mu = jnp.mean(h, axis=-1, keepdims=True)
        var = jnp.mean((h - mu) ** 2, axis=-1, keepdims=True)
        hn = (h - mu) * jax.lax.rsqrt(var + LN_EPS) * g_ref[...] + beta_ref[...]
        # TODO(synk): F.dropout is inference-mode identity here (training=False).
        return jnp.maximum(hn, 0.0)

    h = x_temp
    for li in range(N_GNN):
        w_r, b_r, g_r, beta_r = gnn_refs[4 * li:4 * li + 4]
        h = gnn_layer(h, w_r, b_r, g_r, beta_r, add_residual=(li > 0))

    # ---------------- decoder MLP, lane-dense (M, 128) padded output -------------------
    d1 = jnp.maximum(jnp.dot(h.astype(bf16), dw1_ref[...],
                             preferred_element_type=f32) + db1_ref[...], 0.0)
    out_ref[...] = jnp.dot(d1.astype(bf16), dw2_ref[...],
                           preferred_element_type=f32) + db2_ref[...]


# ----------------------------- host-side glue ------------------------------------------
def build_time_masks(m, seq_len):
    """(ML,1) masks: mprev=0 where t==0, mnext=0 where t==L-1 (kill wrapped rolls)."""
    t = np.arange(m * seq_len, dtype=np.int64) % seq_len
    mprev = (t > 0).astype(np.float32).reshape(-1, 1)
    mnext = (t < seq_len - 1).astype(np.float32).reshape(-1, 1)
    return jnp.asarray(mprev), jnp.asarray(mnext)


def edge_index_to_adj(edge_index, n):
    src, dst = np.asarray(edge_index)
    adj = np.zeros((n, n), np.float32)
    adj[dst, src] = 1.0          # adj[i, j] = 1 iff edge j -> i
    return jnp.asarray(adj)


def init_params(key):
    keys = list(jax.random.split(key, 128))
    it = iter(keys)

    def w(shape, scale=0.05):
        return (scale * jax.random.normal(next(it), shape)).astype(jnp.float32)

    def tconv(fin, d):
        # Q | K | V | skip weights fused along the output dim -> (fin, 4*d)
        wq, wk, wv, ws = (w((fin, d)) for _ in range(4))
        bq, bk, bv, bs = (w((1, d), 0.01) for _ in range(4))
        return dict(
            w=jnp.concatenate([wq, wk, wv, ws], axis=1).astype(jnp.bfloat16),
            b=jnp.concatenate([bq, bk, bv, bs], axis=1),
            ln_g=jnp.ones((1, d), jnp.float32),
            ln_b=jnp.zeros((1, d), jnp.float32))

    dec_w2 = w((2 * G, OUT_DIM))
    dec_b2 = w((1, OUT_DIM), 0.01)
    dec_w2p = jnp.zeros((2 * G, OUT_PAD), jnp.float32).at[:, :OUT_DIM].set(dec_w2)
    dec_b2p = jnp.zeros((1, OUT_PAD), jnp.float32).at[:, :OUT_DIM].set(dec_b2)

    return dict(
        w1=w((K, C1)), b1=w((1, C1), 0.01),                          # Conv1d(1, C1, K)
        w2=w((K * C1, C2)).astype(jnp.bfloat16), b2=w((1, C2), 0.01),  # Conv1d(C1, C2, K), taps concat
        wl=w((C2, HT)).astype(jnp.bfloat16), bl=w((1, HT), 0.01),    # Linear(C2, HT)
        gnn=[tconv(HT, G)] + [tconv(G, G) for _ in range(NUM_DYNAMICS)],
        dec_w1=w((G, 2 * G)).astype(jnp.bfloat16), dec_b1=w((1, 2 * G), 0.01),
        dec_w2=dec_w2p.astype(jnp.bfloat16), dec_b2=dec_b2p,         # lane-dense padded
    )


def forecaster_forward(x, adj, mprev, mnext, params):
    b, n, seq = x.shape
    m = b * n
    x_flat = x.reshape(m * seq, 1).astype(jnp.float32)            # rows = (sample, time)

    gnn_flat = []
    for p in params["gnn"]:
        gnn_flat += [p["w"], p["b"], p["ln_g"], p["ln_b"]]

    args = (x_flat, mprev, mnext, adj,
            params["w1"], params["b1"], params["w2"], params["b2"],
            params["wl"], params["bl"],
            *gnn_flat,
            params["dec_w1"], params["dec_b1"], params["dec_w2"], params["dec_b2"])

    # TODO(synk): on v7x a second TensorCore could be engaged via a parallel grid axis,
    # but at M=16 nodes the graph couples everything and launch overhead dominates.
    out_pad = pl.pallas_call(
        fused_forward_kernel,
        out_shape=jax.ShapeDtypeStruct((m, OUT_PAD), jnp.float32),
        grid=(1,),
        in_specs=_full_specs(args),
        out_specs=pl.BlockSpec((m, OUT_PAD), lambda i: (0, 0)),
        scratch_shapes=[pltpu.VMEM((ML, C2), jnp.float32)],
        compiler_params=pltpu.CompilerParams(dimension_semantics=("arbitrary",)),
    )(*args)

    return out_pad[:, :OUT_DIM].reshape(m, OUT_DIM, 1)


# ----------------------------- main -----------------------------------------------------
if __name__ == "__main__":
    root = jax.random.PRNGKey(0)
    k_x, k_p = jax.random.split(root)

    x = jax.random.normal(k_x, (B, N, L), dtype=jnp.float32)

    # deterministic graph over the B*N nodes: self loop + ring neighbours
    src, dst = [], []
    for i in range(M):
        for j in (i, (i - 1) % M, (i + 1) % M):
            src.append(j)
            dst.append(i)
    edge_index = np.array([src, dst], dtype=np.int32)             # (2, 3*M)

    adj = edge_index_to_adj(edge_index, M)
    mprev, mnext = build_time_masks(M, L)
    params = init_params(k_p)

    fwd = jax.jit(forecaster_forward)
    out = fwd(x, adj, mprev, mnext, params)
    out = jax.block_until_ready(out)

    assert out.shape == (B * N, OUT_DIM, 1), out.shape
    assert bool(jnp.all(jnp.isfinite(out)))
    print("KERNEL_OK")
</pallas_src>

<mosaic_0001>
module attributes {stable_mosaic.version = 11 : i64} {
  func.func @fused_forward_kernel(%arg0: i32, %arg1: memref<128x1xf32, #tpu.memory_space<vmem>>, %arg2: memref<128x1xf32, #tpu.memory_space<vmem>>, %arg3: memref<128x1xf32, #tpu.memory_space<vmem>>, %arg4: memref<16x16xf32, #tpu.memory_space<vmem>>, %arg5: memref<3x128xf32, #tpu.memory_space<vmem>>, %arg6: memref<1x128xf32, #tpu.memory_space<vmem>>, %arg7: memref<384x128xbf16, #tpu.memory_space<vmem>>, %arg8: memref<1x128xf32, #tpu.memory_space<vmem>>, %arg9: memref<128x128xbf16, #tpu.memory_space<vmem>>, %arg10: memref<1x128xf32, #tpu.memory_space<vmem>>, %arg11: memref<128x512xbf16, #tpu.memory_space<vmem>>, %arg12: memref<1x512xf32, #tpu.memory_space<vmem>>, %arg13: memref<1x128xf32, #tpu.memory_space<vmem>>, %arg14: memref<1x128xf32, #tpu.memory_space<vmem>>, %arg15: memref<128x512xbf16, #tpu.memory_space<vmem>>, %arg16: memref<1x512xf32, #tpu.memory_space<vmem>>, %arg17: memref<1x128xf32, #tpu.memory_space<vmem>>, %arg18: memref<1x128xf32, #tpu.memory_space<vmem>>, %arg19: memref<128x512xbf16, #tpu.memory_space<vmem>>, %arg20: memref<1x512xf32, #tpu.memory_space<vmem>>, %arg21: memref<1x128xf32, #tpu.memory_space<vmem>>, %arg22: memref<1x128xf32, #tpu.memory_space<vmem>>, %arg23: memref<128x512xbf16, #tpu.memory_space<vmem>>, %arg24: memref<1x512xf32, #tpu.memory_space<vmem>>, %arg25: memref<1x128xf32, #tpu.memory_space<vmem>>, %arg26: memref<1x128xf32, #tpu.memory_space<vmem>>, %arg27: memref<128x256xbf16, #tpu.memory_space<vmem>>, %arg28: memref<1x256xf32, #tpu.memory_space<vmem>>, %arg29: memref<256x128xbf16, #tpu.memory_space<vmem>>, %arg30: memref<1x128xf32, #tpu.memory_space<vmem>>, %arg31: memref<16x128xf32, #tpu.memory_space<vmem>>, %arg32: memref<128x128xf32, #tpu.memory_space<vmem>>) attributes {dimension_semantics = [#tpu.dimension_semantics<arbitrary>], iteration_bounds = array<i64: 1>, scalar_prefetch = 0 : i64, scratch_operands = 1 : i64, tpu.core_type = #tpu.core_type<tc>, window_params = [{pipeline_mode = #tpu.pipeline_mode<synchronous>, transform_indices = @transform_0, window_bounds = array<i64: 128, 1>}, {pipeline_mode = #tpu.pipeline_mode<synchronous>, transform_indices = @transform_1, window_bounds = array<i64: 128, 1>}, {pipeline_mode = #tpu.pipeline_mode<synchronous>, transform_indices = @transform_2, window_bounds = array<i64: 128, 1>}, {pipeline_mode = #tpu.pipeline_mode<synchronous>, transform_indices = @transform_3, window_bounds = array<i64: 16, 16>}, {pipeline_mode = #tpu.pipeline_mode<synchronous>, transform_indices = @transform_4, window_bounds = array<i64: 3, 128>}, {pipeline_mode = #tpu.pipeline_mode<synchronous>, transform_indices = @transform_5, window_bounds = array<i64: 1, 128>}, {pipeline_mode = #tpu.pipeline_mode<synchronous>, transform_indices = @transform_6, window_bounds = array<i64: 384, 128>}, {pipeline_mode = #tpu.pipeline_mode<synchronous>, transform_indices = @transform_7, window_bounds = array<i64: 1, 128>}, {pipeline_mode = #tpu.pipeline_mode<synchronous>, transform_indices = @transform_8, window_bounds = array<i64: 128, 128>}, {pipeline_mode = #tpu.pipeline_mode<synchronous>, transform_indices = @transform_9, window_bounds = array<i64: 1, 128>}, {pipeline_mode = #tpu.pipeline_mode<synchronous>, transform_indices = @transform_10, window_bounds = array<i64: 128, 512>}, {pipeline_mode = #tpu.pipeline_mode<synchronous>, transform_indices = @transform_11, window_bounds = array<i64: 1, 512>}, {pipeline_mode = #tpu.pipeline_mode<synchronous>, transform_indices = @transform_12, window_bounds = array<i64: 1, 128>}, {pipeline_mode = #tpu.pipeline_mode<synchronous>, transform_indices = @transform_13, window_bounds = array<i64: 1, 128>}, {pipeline_mode = #tpu.pipeline_mode<synchronous>, transform_indices = @transform_14, window_bounds = array<i64: 128, 512>}, {pipeline_mode = #tpu.pipeline_mode<synchronous>, transform_indices = @transform_15, window_bounds = array<i64: 1, 512>}, {pipeline_mode = #tpu.pipeline_mode<synchronous>, transform_indices = @transform_16, window_bounds = array<i64: 1, 128>}, {pipeline_mode = #tpu.pipeline_mode<synchronous>, transform_indices = @transform_17, window_bounds = array<i64: 1, 128>}, {pipeline_mode = #tpu.pipeline_mode<synchronous>, transform_indices = @transform_18, window_bounds = array<i64: 128, 512>}, {pipeline_mode = #tpu.pipeline_mode<synchronous>, transform_indices = @transform_19, window_bounds = array<i64: 1, 512>}, {pipeline_mode = #tpu.pipeline_mode<synchronous>, transform_indices = @transform_20, window_bounds = array<i64: 1, 128>}, {pipeline_mode = #tpu.pipeline_mode<synchronous>, transform_indices = @transform_21, window_bounds = array<i64: 1, 128>}, {pipeline_mode = #tpu.pipeline_mode<synchronous>, transform_indices = @transform_22, window_bounds = array<i64: 128, 512>}, {pipeline_mode = #tpu.pipeline_mode<synchronous>, transform_indices = @transform_23, window_bounds = array<i64: 1, 512>}, {pipeline_mode = #tpu.pipeline_mode<synchronous>, transform_indices = @transform_24, window_bounds = array<i64: 1, 128>}, {pipeline_mode = #tpu.pipeline_mode<synchronous>, transform_indices = @transform_25, window_bounds = array<i64: 1, 128>}, {pipeline_mode = #tpu.pipeline_mode<synchronous>, transform_indices = @transform_26, window_bounds = array<i64: 128, 256>}, {pipeline_mode = #tpu.pipeline_mode<synchronous>, transform_indices = @transform_27, window_bounds = array<i64: 1, 256>}, {pipeline_mode = #tpu.pipeline_mode<synchronous>, transform_indices = @transform_28, window_bounds = array<i64: 256, 128>}, {pipeline_mode = #tpu.pipeline_mode<synchronous>, transform_indices = @transform_29, window_bounds = array<i64: 1, 128>}, {pipeline_mode = #tpu.pipeline_mode<synchronous>, transform_indices = @transform_30, window_bounds = array<i64: 16, 128>}]} {
    %c0 = arith.constant 0 : index
    %c0_0 = arith.constant 0 : index
    %0 = vector.load %arg1[%c0, %c0_0] : memref<128x1xf32, #tpu.memory_space<vmem>>, vector<128x1xf32>
    %c0_1 = arith.constant 0 : index
    %c0_2 = arith.constant 0 : index
    %1 = vector.load %arg2[%c0_1, %c0_2] : memref<128x1xf32, #tpu.memory_space<vmem>>, vector<128x1xf32>
    %c0_3 = arith.constant 0 : index
    %c0_4 = arith.constant 0 : index
    %2 = vector.load %arg3[%c0_3, %c0_4] : memref<128x1xf32, #tpu.memory_space<vmem>>, vector<128x1xf32>
    %c0_5 = arith.constant 0 : index
    %c0_6 = arith.constant 0 : index
    %3 = vector.load %arg5[%c0_5, %c0_6] : memref<3x128xf32, #tpu.memory_space<vmem>>, vector<3x128xf32>
    %4 = vector.extract_strided_slice %3 {offsets = [1, 0], sizes = [1, 128], strides = [1, 1]} : vector<3x128xf32> to vector<1x128xf32>
    %5 = vector.broadcast %0 : vector<128x1xf32> to vector<128x128xf32>
    %6 = vector.broadcast %4 : vector<1x128xf32> to vector<128x128xf32>
    %7 = arith.mulf %5, %6 : vector<128x128xf32>
    %8 = vector.extract_strided_slice %3 {offsets = [0, 0], sizes = [1, 128], strides = [1, 1]} : vector<3x128xf32> to vector<1x128xf32>
    %9 = vector.broadcast %0 : vector<128x1xf32> to vector<128x128xf32>
    %10 = vector.broadcast %8 : vector<1x128xf32> to vector<128x128xf32>
    %11 = arith.mulf %9, %10 : vector<128x128xf32>
    %c1_i32 = arith.constant 1 : i32
    %12 = tpu.dynamic_rotate %11 by %c1_i32 dim 0 : vector<128x128xf32>, i32 -> vector<128x128xf32>
    %13 = vector.broadcast %1 : vector<128x1xf32> to vector<128x128xf32>
    %14 = arith.mulf %12, %13 : vector<128x128xf32>
    %15 = arith.addf %7, %14 : vector<128x128xf32>
    %16 = vector.extract_strided_slice %3 {offsets = [2, 0], sizes = [1, 128], strides = [1, 1]} : vector<3x128xf32> to vector<1x128xf32>
    %17 = vector.broadcast %0 : vector<128x1xf32> to vector<128x128xf32>
    %18 = vector.broadcast %16 : vector<1x128xf32> to vector<128x128xf32>
    %19 = arith.mulf %17, %18 : vector<128x128xf32>
    %c127_i32 = arith.constant 127 : i32
    %20 = tpu.dynamic_rotate %19 by %c127_i32 dim 0 : vector<128x128xf32>, i32 -> vector<128x128xf32>
    %21 = vector.broadcast %2 : vector<128x1xf32> to vector<128x128xf32>
    %22 = arith.mulf %20, %21 : vector<128x128xf32>
    %23 = arith.addf %15, %22 : vector<128x128xf32>
    %c0_7 = arith.constant 0 : index
    %c0_8 = arith.constant 0 : index
    %24 = vector.load %arg6[%c0_7, %c0_8] : memref<1x128xf32, #tpu.memory_space<vmem>>, vector<1x128xf32>
    %25 = vector.broadcast %24 : vector<1x128xf32> to vector<128x128xf32>
    %26 = arith.addf %23, %25 : vector<128x128xf32>
    %cst = arith.constant 0.000000e+00 : f32
    %27 = vector.broadcast %cst : f32 to vector<128x128xf32>
    %28 = arith.maximumf %26, %27 : vector<128x128xf32>
    %c1_i32_9 = arith.constant 1 : i32
    %29 = tpu.dynamic_rotate %28 by %c1_i32_9 dim 0 : vector<128x128xf32>, i32 -> vector<128x128xf32>
    %30 = vector.broadcast %1 : vector<128x1xf32> to vector<128x128xf32>
    %31 = arith.mulf %29, %30 : vector<128x128xf32>
    %c127_i32_10 = arith.constant 127 : i32
    %32 = tpu.dynamic_rotate %28 by %c127_i32_10 dim 0 : vector<128x128xf32>, i32 -> vector<128x128xf32>
    %33 = vector.broadcast %2 : vector<128x1xf32> to vector<128x128xf32>
    %34 = arith.mulf %32, %33 : vector<128x128xf32>
    %35 = tpu.concatenate %31, %28, %34 in 1 : vector<128x128xf32>, vector<128x128xf32>, vector<128x128xf32> -> vector<128x384xf32>
    %36 = arith.truncf %35 : vector<128x384xf32> to vector<128x384xbf16>
    %c0_11 = arith.constant 0 : index
    %c0_12 = arith.constant 0 : index
    %37 = vector.load %arg7[%c0_11, %c0_12] : memref<384x128xbf16, #tpu.memory_space<vmem>>, vector<384x128xbf16>
    %cst_13 = arith.constant dense<0.000000e+00> : vector<128x128xf32>
    %38 = tpu.matmul %36, %37, %cst_13 {dimension_numbers = #tpu.dot_dimension_numbers<[1], [0], [0], [1], [0, 0, 1, 1], [], []>} : vector<128x384xbf16>, vector<384x128xbf16>, vector<128x128xf32> -> vector<128x128xf32>
    %c0_14 = arith.constant 0 : index
    %c0_15 = arith.constant 0 : index
    %39 = vector.load %arg8[%c0_14, %c0_15] : memref<1x128xf32, #tpu.memory_space<vmem>>, vector<1x128xf32>
    %40 = vector.broadcast %39 : vector<1x128xf32> to vector<128x128xf32>
    %41 = arith.addf %38, %40 : vector<128x128xf32>
    %cst_16 = arith.constant 0.000000e+00 : f32
    %42 = vector.broadcast %cst_16 : f32 to vector<128x128xf32>
    %43 = arith.maximumf %41, %42 : vector<128x128xf32>
    %c0_17 = arith.constant 0 : index
    %c0_18 = arith.constant 0 : index
    %44 = vector.load %arg32[%c0_17, %c0_18] : memref<128x128xf32, #tpu.memory_space<vmem>>, vector<128x128xf32>
    tpu.vector_store %arg32[%c0_17, %c0_18], %43 {strides = array<i32>} : memref<128x128xf32, #tpu.memory_space<vmem>>, vector<128x128xf32>,
    %c0_19 = arith.constant 0 : index
    %c0_20 = arith.constant 0 : index
    %45 = tpu.strided_load %arg32[%c0_19, %c0_20] {strides = array<i32: 8, 1>} : memref<128x128xf32, #tpu.memory_space<vmem>>, vector<16x128xf32>
    %c1 = arith.constant 1 : index
    %c0_21 = arith.constant 0 : index
    %46 = tpu.strided_load %arg32[%c1, %c0_21] {strides = array<i32: 8, 1>} : memref<128x128xf32, #tpu.memory_space<vmem>>, vector<16x128xf32>
    %47 = arith.maximumf %45, %46 : vector<16x128xf32>
    %c2 = arith.constant 2 : index
    %c0_22 = arith.constant 0 : index
    %48 = tpu.strided_load %arg32[%c2, %c0_22] {strides = array<i32: 8, 1>} : memref<128x128xf32, #tpu.memory_space<vmem>>, vector<16x128xf32>
    %49 = arith.maximumf %47, %48 : vector<16x128xf32>
    %c3 = arith.constant 3 : index
    %c0_23 = arith.constant 0 : index
    %50 = tpu.strided_load %arg32[%c3, %c0_23] {strides = array<i32: 8, 1>} : memref<128x128xf32, #tpu.memory_space<vmem>>, vector<16x128xf32>
    %51 = arith.maximumf %49, %50 : vector<16x128xf32>
    %c4 = arith.constant 4 : index
    %c0_24 = arith.constant 0 : index
    %52 = tpu.strided_load %arg32[%c4, %c0_24] {strides = array<i32: 8, 1>} : memref<128x128xf32, #tpu.memory_space<vmem>>, vector<16x128xf32>
    %53 = arith.maximumf %51, %52 : vector<16x128xf32>
    %c5 = arith.constant 5 : index
    %c0_25 = arith.constant 0 : index
    %54 = tpu.strided_load %arg32[%c5, %c0_25] {strides = array<i32: 8, 1>} : memref<128x128xf32, #tpu.memory_space<vmem>>, vector<16x128xf32>
    %55 = arith.maximumf %53, %54 : vector<16x128xf32>
    %c6 = arith.constant 6 : index
    %c0_26 = arith.constant 0 : index
    %56 = tpu.strided_load %arg32[%c6, %c0_26] {strides = array<i32: 8, 1>} : memref<128x128xf32, #tpu.memory_space<vmem>>, vector<16x128xf32>
    %57 = arith.maximumf %55, %56 : vector<16x128xf32>
    %c7 = arith.constant 7 : index
    %c0_27 = arith.constant 0 : index
    %58 = tpu.strided_load %arg32[%c7, %c0_27] {strides = array<i32: 8, 1>} : memref<128x128xf32, #tpu.memory_space<vmem>>, vector<16x128xf32>
    %59 = arith.maximumf %57, %58 : vector<16x128xf32>
    %60 = arith.truncf %59 : vector<16x128xf32> to vector<16x128xbf16>
    %c0_28 = arith.constant 0 : index
    %c0_29 = arith.constant 0 : index
    %61 = vector.load %arg9[%c0_28, %c0_29] : memref<128x128xbf16, #tpu.memory_space<vmem>>, vector<128x128xbf16>
    %cst_30 = arith.constant dense<0.000000e+00> : vector<16x128xf32>
    %62 = tpu.matmul %60, %61, %cst_30 {dimension_numbers = #tpu.dot_dimension_numbers<[1], [0], [0], [1], [0, 0, 1, 1], [], []>} : vector<16x128xbf16>, vector<128x128xbf16>, vector<16x128xf32> -> vector<16x128xf32>
    %c0_31 = arith.constant 0 : index
    %c0_32 = arith.constant 0 : index
    %63 = vector.load %arg10[%c0_31, %c0_32] : memref<1x128xf32, #tpu.memory_space<vmem>>, vector<1x128xf32>
    %64 = vector.broadcast %63 : vector<1x128xf32> to vector<16x128xf32>
    %65 = arith.addf %62, %64 : vector<16x128xf32>
    %c0_33 = arith.constant 0 : index
    %c0_34 = arith.constant 0 : index
    %66 = vector.load %arg4[%c0_33, %c0_34] : memref<16x16xf32, #tpu.memory_space<vmem>>, vector<16x16xf32>
    %cst_35 = arith.constant 0.000000e+00 : f32
    %67 = vector.broadcast %cst_35 : f32 to vector<16x16xf32>
    %68 = arith.cmpf ogt, %66, %67 : vector<16x16xf32>
    %cst_36 = arith.constant 0.000000e+00 : f32
    %cst_37 = arith.constant -1.000000e+30 : f32
    %69 = vector.broadcast %cst_36 : f32 to vector<16x16xf32>
    %70 = vector.broadcast %cst_37 : f32 to vector<16x16xf32>
    %71 = arith.select %68, %69, %70 : vector<16x16xi1>, vector<16x16xf32>
    %72 = arith.truncf %65 : vector<16x128xf32> to vector<16x128xbf16>
    %c0_38 = arith.constant 0 : index
    %c0_39 = arith.constant 0 : index
    %73 = vector.load %arg11[%c0_38, %c0_39] : memref<128x512xbf16, #tpu.memory_space<vmem>>, vector<128x512xbf16>
    %cst_40 = arith.constant dense<0.000000e+00> : vector<16x512xf32>
    %74 = tpu.matmul %72, %73, %cst_40 {dimension_numbers = #tpu.dot_dimension_numbers<[1], [0], [0], [1], [0, 0, 1, 1], [], []>} : vector<16x128xbf16>, vector<128x512xbf16>, vector<16x512xf32> -> vector<16x512xf32>
    %c0_41 = arith.constant 0 : index
    %c0_42 = arith.constant 0 : index
    %75 = vector.load %arg12[%c0_41, %c0_42] : memref<1x512xf32, #tpu.memory_space<vmem>>, vector<1x512xf32>
    %76 = vector.broadcast %75 : vector<1x512xf32> to vector<16x512xf32>
    %77 = arith.addf %74, %76 : vector<16x512xf32>
    %78 = vector.extract_strided_slice %77 {offsets = [0, 0], sizes = [16, 128], strides = [1, 1]} : vector<16x512xf32> to vector<16x128xf32>
    %79 = vector.extract_strided_slice %77 {offsets = [0, 128], sizes = [16, 128], strides = [1, 1]} : vector<16x512xf32> to vector<16x128xf32>
    %80 = vector.extract_strided_slice %77 {offsets = [0, 256], sizes = [16, 128], strides = [1, 1]} : vector<16x512xf32> to vector<16x128xf32>
    %81 = vector.extract_strided_slice %77 {offsets = [0, 384], sizes = [16, 128], strides = [1, 1]} : vector<16x512xf32> to vector<16x128xf32>
    %82 = arith.truncf %78 : vector<16x128xf32> to vector<16x128xbf16>
    %83 = arith.truncf %79 : vector<16x128xf32> to vector<16x128xbf16>
    %cst_43 = arith.constant dense<0.000000e+00> : vector<16x16xf32>
    %84 = tpu.matmul %82, %83, %cst_43 {dimension_numbers = #tpu.dot_dimension_numbers<[1], [1], [0], [0], [0, 0, 1, 0], [], []>} : vector<16x128xbf16>, vector<16x128xbf16>, vector<16x16xf32> -> vector<16x16xf32>
    %cst_44 = arith.constant 0.0883883461 : f32
    %85 = vector.broadcast %cst_44 : f32 to vector<16x16xf32>
    %86 = arith.mulf %84, %85 : vector<16x16xf32>
    %87 = arith.addf %86, %71 : vector<16x16xf32>
    %cst_45 = arith.constant dense<0xFF800000> : vector<16xf32>
    %88 = vector.multi_reduction <maximumf>, %87, %cst_45 [1] : vector<16x16xf32> to vector<16xf32>
    %89 = vector.shape_cast %88 : vector<16xf32> to vector<16x1xf32>
    %90 = vector.broadcast %89 : vector<16x1xf32> to vector<16x16xf32>
    %91 = arith.subf %87, %90 : vector<16x16xf32>
    %92 = math.exp %91 : vector<16x16xf32>
    %93 = arith.mulf %92, %66 : vector<16x16xf32>
    %cst_46 = arith.constant dense<0.000000e+00> : vector<16xf32>
    %94 = vector.multi_reduction <add>, %93, %cst_46 [1] : vector<16x16xf32> to vector<16xf32>
    %95 = vector.shape_cast %94 : vector<16xf32> to vector<16x1xf32>
    %cst_47 = arith.constant 1.000000e-30 : f32
    %96 = vector.broadcast %cst_47 : f32 to vector<16x1xf32>
    %97 = arith.maximumf %95, %96 : vector<16x1xf32>
    %98 = tpu.reciprocal %97 {approx = true} : vector<16x1xf32> -> vector<16x1xf32>
    %99 = vector.broadcast %98 : vector<16x1xf32> to vector<16x16xf32>
    %100 = arith.mulf %93, %99 : vector<16x16xf32>
    %101 = arith.truncf %100 : vector<16x16xf32> to vector<16x16xbf16>
    %102 = arith.truncf %80 : vector<16x128xf32> to vector<16x128xbf16>
    %cst_48 = arith.constant dense<0.000000e+00> : vector<16x128xf32>
    %103 = tpu.matmul %101, %102, %cst_48 {dimension_numbers = #tpu.dot_dimension_numbers<[1], [0], [0], [1], [0, 0, 1, 1], [], []>} : vector<16x16xbf16>, vector<16x128xbf16>, vector<16x128xf32> -> vector<16x128xf32>
    %104 = arith.addf %103, %81 : vector<16x128xf32>
    %cst_49 = arith.constant dense<0.000000e+00> : vector<16xf32>
    %105 = vector.multi_reduction <add>, %104, %cst_49 [1] : vector<16x128xf32> to vector<16xf32>
    %106 = vector.shape_cast %105 : vector<16xf32> to vector<16x1xf32>
    %cst_50 = arith.constant 1.280000e+02 : f32
    %107 = vector.broadcast %cst_50 : f32 to vector<16x1xf32>
    %108 = arith.divf %106, %107 : vector<16x1xf32>
    %109 = vector.broadcast %108 : vector<16x1xf32> to vector<16x128xf32>
    %110 = arith.subf %104, %109 : vector<16x128xf32>
    %111 = arith.mulf %110, %110 : vector<16x128xf32>
    %cst_51 = arith.constant dense<0.000000e+00> : vector<16xf32>
    %112 = vector.multi_reduction <add>, %111, %cst_51 [1] : vector<16x128xf32> to vector<16xf32>
    %113 = vector.shape_cast %112 : vector<16xf32> to vector<16x1xf32>
    %cst_52 = arith.constant 1.280000e+02 : f32
    %114 = vector.broadcast %cst_52 : f32 to vector<16x1xf32>
    %115 = arith.divf %113, %114 : vector<16x1xf32>
    %116 = vector.broadcast %108 : vector<16x1xf32> to vector<16x128xf32>
    %117 = arith.subf %104, %116 : vector<16x128xf32>
    %cst_53 = arith.constant 9.99999974E-6 : f32
    %118 = vector.broadcast %cst_53 : f32 to vector<16x1xf32>
    %119 = arith.addf %115, %118 : vector<16x1xf32>
    %120 = math.rsqrt %119 : vector<16x1xf32>
    %121 = vector.broadcast %120 : vector<16x1xf32> to vector<16x128xf32>
    %122 = arith.mulf %117, %121 : vector<16x128xf32>
    %c0_54 = arith.constant 0 : index
    %c0_55 = arith.constant 0 : index
    %123 = vector.load %arg13[%c0_54, %c0_55] : memref<1x128xf32, #tpu.memory_space<vmem>>, vector<1x128xf32>
    %124 = vector.broadcast %123 : vector<1x128xf32> to vector<16x128xf32>
    %125 = arith.mulf %122, %124 : vector<16x128xf32>
    %c0_56 = arith.constant 0 : index
    %c0_57 = arith.constant 0 : index
    %126 = vector.load %arg14[%c0_56, %c0_57] : memref<1x128xf32, #tpu.memory_space<vmem>>, vector<1x128xf32>
    %127 = vector.broadcast %126 : vector<1x128xf32> to vector<16x128xf32>
    %128 = arith.addf %125, %127 : vector<16x128xf32>
    %cst_58 = arith.constant 0.000000e+00 : f32
    %129 = vector.broadcast %cst_58 : f32 to vector<16x128xf32>
    %130 = arith.maximumf %128, %129 : vector<16x128xf32>
    %131 = arith.truncf %130 : vector<16x128xf32> to vector<16x128xbf16>
    %c0_59 = arith.constant 0 : index
    %c0_60 = arith.constant 0 : index
    %132 = vector.load %arg15[%c0_59, %c0_60] : memref<128x512xbf16, #tpu.memory_space<vmem>>, vector<128x512xbf16>
    %cst_61 = arith.constant dense<0.000000e+00> : vector<16x512xf32>
    %133 = tpu.matmul %131, %132, %cst_61 {dimension_numbers = #tpu.dot_dimension_numbers<[1], [0], [0], [1], [0, 0, 1, 1], [], []>} : vector<16x128xbf16>, vector<128x512xbf16>, vector<16x512xf32> -> vector<16x512xf32>
    %c0_62 = arith.constant 0 : index
    %c0_63 = arith.constant 0 : index
    %134 = vector.load %arg16[%c0_62, %c0_63] : memref<1x512xf32, #tpu.memory_space<vmem>>, vector<1x512xf32>
    %135 = vector.broadcast %134 : vector<1x512xf32> to vector<16x512xf32>
    %136 = arith.addf %133, %135 : vector<16x512xf32>
    %137 = vector.extract_strided_slice %136 {offsets = [0, 0], sizes = [16, 128], strides = [1, 1]} : vector<16x512xf32> to vector<16x128xf32>
    %138 = vector.extract_strided_slice %136 {offsets = [0, 128], sizes = [16, 128], strides = [1, 1]} : vector<16x512xf32> to vector<16x128xf32>
    %139 = vector.extract_strided_slice %136 {offsets = [0, 256], sizes = [16, 128], strides = [1, 1]} : vector<16x512xf32> to vector<16x128xf32>
    %140 = vector.extract_strided_slice %136 {offsets = [0, 384], sizes = [16, 128], strides = [1, 1]} : vector<16x512xf32> to vector<16x128xf32>
    %141 = arith.truncf %137 : vector<16x128xf32> to vector<16x128xbf16>
    %142 = arith.truncf %138 : vector<16x128xf32> to vector<16x128xbf16>
    %cst_64 = arith.constant dense<0.000000e+00> : vector<16x16xf32>
    %143 = tpu.matmul %141, %142, %cst_64 {dimension_numbers = #tpu.dot_dimension_numbers<[1], [1], [0], [0], [0, 0, 1, 0], [], []>} : vector<16x128xbf16>, vector<16x128xbf16>, vector<16x16xf32> -> vector<16x16xf32>
    %cst_65 = arith.constant 0.0883883461 : f32
    %144 = vector.broadcast %cst_65 : f32 to vector<16x16xf32>
    %145 = arith.mulf %143, %144 : vector<16x16xf32>
    %146 = arith.addf %145, %71 : vector<16x16xf32>
    %cst_66 = arith.constant dense<0xFF800000> : vector<16xf32>
    %147 = vector.multi_reduction <maximumf>, %146, %cst_66 [1] : vector<16x16xf32> to vector<16xf32>
    %148 = vector.shape_cast %147 : vector<16xf32> to vector<16x1xf32>
    %149 = vector.broadcast %148 : vector<16x1xf32> to vector<16x16xf32>
    %150 = arith.subf %146, %149 : vector<16x16xf32>
    %151 = math.exp %150 : vector<16x16xf32>
    %152 = arith.mulf %151, %66 : vector<16x16xf32>
    %cst_67 = arith.constant dense<0.000000e+00> : vector<16xf32>
    %153 = vector.multi_reduction <add>, %152, %cst_67 [1] : vector<16x16xf32> to vector<16xf32>
    %154 = vector.shape_cast %153 : vector<16xf32> to vector<16x1xf32>
    %cst_68 = arith.constant 1.000000e-30 : f32
    %155 = vector.broadcast %cst_68 : f32 to vector<16x1xf32>
    %156 = arith.maximumf %154, %155 : vector<16x1xf32>
    %157 = tpu.reciprocal %156 {approx = true} : vector<16x1xf32> -> vector<16x1xf32>
    %158 = vector.broadcast %157 : vector<16x1xf32> to vector<16x16xf32>
    %159 = arith.mulf %152, %158 : vector<16x16xf32>
    %160 = arith.truncf %159 : vector<16x16xf32> to vector<16x16xbf16>
    %161 = arith.truncf %139 : vector<16x128xf32> to vector<16x128xbf16>
    %cst_69 = arith.constant dense<0.000000e+00> : vector<16x128xf32>
    %162 = tpu.matmul %160, %161, %cst_69 {dimension_numbers = #tpu.dot_dimension_numbers<[1], [0], [0], [1], [0, 0, 1, 1], [], []>} : vector<16x16xbf16>, vector<16x128xbf16>, vector<16x128xf32> -> vector<16x128xf32>
    %163 = arith.addf %162, %140 : vector<16x128xf32>
    %164 = arith.addf %163, %130 : vector<16x128xf32>
    %cst_70 = arith.constant dense<0.000000e+00> : vector<16xf32>
    %165 = vector.multi_reduction <add>, %164, %cst_70 [1] : vector<16x128xf32> to vector<16xf32>
    %166 = vector.shape_cast %165 : vector<16xf32> to vector<16x1xf32>
    %cst_71 = arith.constant 1.280000e+02 : f32
    %167 = vector.broadcast %cst_71 : f32 to vector<16x1xf32>
    %168 = arith.divf %166, %167 : vector<16x1xf32>
    %169 = vector.broadcast %168 : vector<16x1xf32> to vector<16x128xf32>
    %170 = arith.subf %164, %169 : vector<16x128xf32>
    %171 = arith.mulf %170, %170 : vector<16x128xf32>
    %cst_72 = arith.constant dense<0.000000e+00> : vector<16xf32>
    %172 = vector.multi_reduction <add>, %171, %cst_72 [1] : vector<16x128xf32> to vector<16xf32>
    %173 = vector.shape_cast %172 : vector<16xf32> to vector<16x1xf32>
    %cst_73 = arith.constant 1.280000e+02 : f32
    %174 = vector.broadcast %cst_73 : f32 to vector<16x1xf32>
    %175 = arith.divf %173, %174 : vector<16x1xf32>
    %176 = vector.broadcast %168 : vector<16x1xf32> to vector<16x128xf32>
    %177 = arith.subf %164, %176 : vector<16x128xf32>
    %cst_74 = arith.constant 9.99999974E-6 : f32
    %178 = vector.broadcast %cst_74 : f32 to vector<16x1xf32>
    %179 = arith.addf %175, %178 : vector<16x1xf32>
    %180 = math.rsqrt %179 : vector<16x1xf32>
    %181 = vector.broadcast %180 : vector<16x1xf32> to vector<16x128xf32>
    %182 = arith.mulf %177, %181 : vector<16x128xf32>
    %c0_75 = arith.constant 0 : index
    %c0_76 = arith.constant 0 : index
    %183 = vector.load %arg17[%c0_75, %c0_76] : memref<1x128xf32, #tpu.memory_space<vmem>>, vector<1x128xf32>
    %184 = vector.broadcast %183 : vector<1x128xf32> to vector<16x128xf32>
    %185 = arith.mulf %182, %184 : vector<16x128xf32>
    %c0_77 = arith.constant 0 : index
    %c0_78 = arith.constant 0 : index
    %186 = vector.load %arg18[%c0_77, %c0_78] : memref<1x128xf32, #tpu.memory_space<vmem>>, vector<1x128xf32>
    %187 = vector.broadcast %186 : vector<1x128xf32> to vector<16x128xf32>
    %188 = arith.addf %185, %187 : vector<16x128xf32>
    %cst_79 = arith.constant 0.000000e+00 : f32
    %189 = vector.broadcast %cst_79 : f32 to vector<16x128xf32>
    %190 = arith.maximumf %188, %189 : vector<16x128xf32>
    %191 = arith.truncf %190 : vector<16x128xf32> to vector<16x128xbf16>
    %c0_80 = arith.constant 0 : index
    %c0_81 = arith.constant 0 : index
    %192 = vector.load %arg19[%c0_80, %c0_81] : memref<128x512xbf16, #tpu.memory_space<vmem>>, vector<128x512xbf16>
    %cst_82 = arith.constant dense<0.000000e+00> : vector<16x512xf32>
    %193 = tpu.matmul %191, %192, %cst_82 {dimension_numbers = #tpu.dot_dimension_numbers<[1], [0], [0], [1], [0, 0, 1, 1], [], []>} : vector<16x128xbf16>, vector<128x512xbf16>, vector<16x512xf32> -> vector<16x512xf32>
    %c0_83 = arith.constant 0 : index
    %c0_84 = arith.constant 0 : index
    %194 = vector.load %arg20[%c0_83, %c0_84] : memref<1x512xf32, #tpu.memory_space<vmem>>, vector<1x512xf32>
    %195 = vector.broadcast %194 : vector<1x512xf32> to vector<16x512xf32>
    %196 = arith.addf %193, %195 : vector<16x512xf32>
    %197 = vector.extract_strided_slice %196 {offsets = [0, 0], sizes = [16, 128], strides = [1, 1]} : vector<16x512xf32> to vector<16x128xf32>
    %198 = vector.extract_strided_slice %196 {offsets = [0, 128], sizes = [16, 128], strides = [1, 1]} : vector<16x512xf32> to vector<16x128xf32>
    %199 = vector.extract_strided_slice %196 {offsets = [0, 256], sizes = [16, 128], strides = [1, 1]} : vector<16x512xf32> to vector<16x128xf32>
    %200 = vector.extract_strided_slice %196 {offsets = [0, 384], sizes = [16, 128], strides = [1, 1]} : vector<16x512xf32> to vector<16x128xf32>
    %201 = arith.truncf %197 : vector<16x128xf32> to vector<16x128xbf16>
    %202 = arith.truncf %198 : vector<16x128xf32> to vector<16x128xbf16>
    %cst_85 = arith.constant dense<0.000000e+00> : vector<16x16xf32>
    %203 = tpu.matmul %201, %202, %cst_85 {dimension_numbers = #tpu.dot_dimension_numbers<[1], [1], [0], [0], [0, 0, 1, 0], [], []>} : vector<16x128xbf16>, vector<16x128xbf16>, vector<16x16xf32> -> vector<16x16xf32>
    %cst_86 = arith.constant 0.0883883461 : f32
    %204 = vector.broadcast %cst_86 : f32 to vector<16x16xf32>
    %205 = arith.mulf %203, %204 : vector<16x16xf32>
    %206 = arith.addf %205, %71 : vector<16x16xf32>
    %cst_87 = arith.constant dense<0xFF800000> : vector<16xf32>
    %207 = vector.multi_reduction <maximumf>, %206, %cst_87 [1] : vector<16x16xf32> to vector<16xf32>
    %208 = vector.shape_cast %207 : vector<16xf32> to vector<16x1xf32>
    %209 = vector.broadcast %208 : vector<16x1xf32> to vector<16x16xf32>
    %210 = arith.subf %206, %209 : vector<16x16xf32>
    %211 = math.exp %210 : vector<16x16xf32>
    %212 = arith.mulf %211, %66 : vector<16x16xf32>
    %cst_88 = arith.constant dense<0.000000e+00> : vector<16xf32>
    %213 = vector.multi_reduction <add>, %212, %cst_88 [1] : vector<16x16xf32> to vector<16xf32>
    %214 = vector.shape_cast %213 : vector<16xf32> to vector<16x1xf32>
    %cst_89 = arith.constant 1.000000e-30 : f32
    %215 = vector.broadcast %cst_89 : f32 to vector<16x1xf32>
    %216 = arith.maximumf %214, %215 : vector<16x1xf32>
    %217 = tpu.reciprocal %216 {approx = true} : vector<16x1xf32> -> vector<16x1xf32>
    %218 = vector.broadcast %217 : vector<16x1xf32> to vector<16x16xf32>
    %219 = arith.mulf %212, %218 : vector<16x16xf32>
    %220 = arith.truncf %219 : vector<16x16xf32> to vector<16x16xbf16>
    %221 = arith.truncf %199 : vector<16x128xf32> to vector<16x128xbf16>
    %cst_90 = arith.constant dense<0.000000e+00> : vector<16x128xf32>
    %222 = tpu.matmul %220, %221, %cst_90 {dimension_numbers = #tpu.dot_dimension_numbers<[1], [0], [0], [1], [0, 0, 1, 1], [], []>} : vector<16x16xbf16>, vector<16x128xbf16>, vector<16x128xf32> -> vector<16x128xf32>
    %223 = arith.addf %222, %200 : vector<16x128xf32>
    %224 = arith.addf %223, %190 : vector<16x128xf32>
    %cst_91 = arith.constant dense<0.000000e+00> : vector<16xf32>
    %225 = vector.multi_reduction <add>, %224, %cst_91 [1] : vector<16x128xf32> to vector<16xf32>
    %226 = vector.shape_cast %225 : vector<16xf32> to vector<16x1xf32>
    %cst_92 = arith.constant 1.280000e+02 : f32
    %227 = vector.broadcast %cst_92 : f32 to vector<16x1xf32>
    %228 = arith.divf %226, %227 : vector<16x1xf32>
    %229 = vector.broadcast %228 : vector<16x1xf32> to vector<16x128xf32>
    %230 = arith.subf %224, %229 : vector<16x128xf32>
    %231 = arith.mulf %230, %230 : vector<16x128xf32>
    %cst_93 = arith.constant dense<0.000000e+00> : vector<16xf32>
    %232 = vector.multi_reduction <add>, %231, %cst_93 [1] : vector<16x128xf32> to vector<16xf32>
    %233 = vector.shape_cast %232 : vector<16xf32> to vector<16x1xf32>
    %cst_94 = arith.constant 1.280000e+02 : f32
    %234 = vector.broadcast %cst_94 : f32 to vector<16x1xf32>
    %235 = arith.divf %233, %234 : vector<16x1xf32>
    %236 = vector.broadcast %228 : vector<16x1xf32> to vector<16x128xf32>
    %237 = arith.subf %224, %236 : vector<16x128xf32>
    %cst_95 = arith.constant 9.99999974E-6 : f32
    %238 = vector.broadcast %cst_95 : f32 to vector<16x1xf32>
    %239 = arith.addf %235, %238 : vector<16x1xf32>
    %240 = math.rsqrt %239 : vector<16x1xf32>
    %241 = vector.broadcast %240 : vector<16x1xf32> to vector<16x128xf32>
    %242 = arith.mulf %237, %241 : vector<16x128xf32>
    %c0_96 = arith.constant 0 : index
    %c0_97 = arith.constant 0 : index
    %243 = vector.load %arg21[%c0_96, %c0_97] : memref<1x128xf32, #tpu.memory_space<vmem>>, vector<1x128xf32>
    %244 = vector.broadcast %243 : vector<1x128xf32> to vector<16x128xf32>
    %245 = arith.mulf %242, %244 : vector<16x128xf32>
    %c0_98 = arith.constant 0 : index
    %c0_99 = arith.constant 0 : index
    %246 = vector.load %arg22[%c0_98, %c0_99] : memref<1x128xf32, #tpu.memory_space<vmem>>, vector<1x128xf32>
    %247 = vector.broadcast %246 : vector<1x128xf32> to vector<16x128xf32>
    %248 = arith.addf %245, %247 : vector<16x128xf32>
    %cst_100 = arith.constant 0.000000e+00 : f32
    %249 = vector.broadcast %cst_100 : f32 to vector<16x128xf32>
    %250 = arith.maximumf %248, %249 : vector<16x128xf32>
    %251 = arith.truncf %250 : vector<16x128xf32> to vector<16x128xbf16>
    %c0_101 = arith.constant 0 : index
    %c0_102 = arith.constant 0 : index
    %252 = vector.load %arg23[%c0_101, %c0_102] : memref<128x512xbf16, #tpu.memory_space<vmem>>, vector<128x512xbf16>
    %cst_103 = arith.constant dense<0.000000e+00> : vector<16x512xf32>
    %253 = tpu.matmul %251, %252, %cst_103 {dimension_numbers = #tpu.dot_dimension_numbers<[1], [0], [0], [1], [0, 0, 1, 1], [], []>} : vector<16x128xbf16>, vector<128x512xbf16>, vector<16x512xf32> -> vector<16x512xf32>
    %c0_104 = arith.constant 0 : index
    %c0_105 = arith.constant 0 : index
    %254 = vector.load %arg24[%c0_104, %c0_105] : memref<1x512xf32, #tpu.memory_space<vmem>>, vector<1x512xf32>
    %255 = vector.broadcast %254 : vector<1x512xf32> to vector<16x512xf32>
    %256 = arith.addf %253, %255 : vector<16x512xf32>
    %257 = vector.extract_strided_slice %256 {offsets = [0, 0], sizes = [16, 128], strides = [1, 1]} : vector<16x512xf32> to vector<16x128xf32>
    %258 = vector.extract_strided_slice %256 {offsets = [0, 128], sizes = [16, 128], strides = [1, 1]} : vector<16x512xf32> to vector<16x128xf32>
    %259 = vector.extract_strided_slice %256 {offsets = [0, 256], sizes = [16, 128], strides = [1, 1]} : vector<16x512xf32> to vector<16x128xf32>
    %260 = vector.extract_strided_slice %256 {offsets = [0, 384], sizes = [16, 128], strides = [1, 1]} : vector<16x512xf32> to vector<16x128xf32>
    %261 = arith.truncf %257 : vector<16x128xf32> to vector<16x128xbf16>
    %262 = arith.truncf %258 : vector<16x128xf32> to vector<16x128xbf16>
    %cst_106 = arith.constant dense<0.000000e+00> : vector<16x16xf32>
    %263 = tpu.matmul %261, %262, %cst_106 {dimension_numbers = #tpu.dot_dimension_numbers<[1], [1], [0], [0], [0, 0, 1, 0], [], []>} : vector<16x128xbf16>, vector<16x128xbf16>, vector<16x16xf32> -> vector<16x16xf32>
    %cst_107 = arith.constant 0.0883883461 : f32
    %264 = vector.broadcast %cst_107 : f32 to vector<16x16xf32>
    %265 = arith.mulf %263, %264 : vector<16x16xf32>
    %266 = arith.addf %265, %71 : vector<16x16xf32>
    %cst_108 = arith.constant dense<0xFF800000> : vector<16xf32>
    %267 = vector.multi_reduction <maximumf>, %266, %cst_108 [1] : vector<16x16xf32> to vector<16xf32>
    %268 = vector.shape_cast %267 : vector<16xf32> to vector<16x1xf32>
    %269 = vector.broadcast %268 : vector<16x1xf32> to vector<16x16xf32>
    %270 = arith.subf %266, %269 : vector<16x16xf32>
    %271 = math.exp %270 : vector<16x16xf32>
    %272 = arith.mulf %271, %66 : vector<16x16xf32>
    %cst_109 = arith.constant dense<0.000000e+00> : vector<16xf32>
    %273 = vector.multi_reduction <add>, %272, %cst_109 [1] : vector<16x16xf32> to vector<16xf32>
    %274 = vector.shape_cast %273 : vector<16xf32> to vector<16x1xf32>
    %cst_110 = arith.constant 1.000000e-30 : f32
    %275 = vector.broadcast %cst_110 : f32 to vector<16x1xf32>
    %276 = arith.maximumf %274, %275 : vector<16x1xf32>
    %277 = tpu.reciprocal %276 {approx = true} : vector<16x1xf32> -> vector<16x1xf32>
    %278 = vector.broadcast %277 : vector<16x1xf32> to vector<16x16xf32>
    %279 = arith.mulf %272, %278 : vector<16x16xf32>
    %280 = arith.truncf %279 : vector<16x16xf32> to vector<16x16xbf16>
    %281 = arith.truncf %259 : vector<16x128xf32> to vector<16x128xbf16>
    %cst_111 = arith.constant dense<0.000000e+00> : vector<16x128xf32>
    %282 = tpu.matmul %280, %281, %cst_111 {dimension_numbers = #tpu.dot_dimension_numbers<[1], [0], [0], [1], [0, 0, 1, 1], [], []>} : vector<16x16xbf16>, vector<16x128xbf16>, vector<16x128xf32> -> vector<16x128xf32>
    %283 = arith.addf %282, %260 : vector<16x128xf32>
    %284 = arith.addf %283, %250 : vector<16x128xf32>
    %cst_112 = arith.constant dense<0.000000e+00> : vector<16xf32>
    %285 = vector.multi_reduction <add>, %284, %cst_112 [1] : vector<16x128xf32> to vector<16xf32>
    %286 = vector.shape_cast %285 : vector<16xf32> to vector<16x1xf32>
    %cst_113 = arith.constant 1.280000e+02 : f32
    %287 = vector.broadcast %cst_113 : f32 to vector<16x1xf32>
    %288 = arith.divf %286, %287 : vector<16x1xf32>
    %289 = vector.broadcast %288 : vector<16x1xf32> to vector<16x128xf32>
    %290 = arith.subf %284, %289 : vector<16x128xf32>
    %291 = arith.mulf %290, %290 : vector<16x128xf32>
    %cst_114 = arith.constant dense<0.000000e+00> : vector<16xf32>
    %292 = vector.multi_reduction <add>, %291, %cst_114 [1] : vector<16x128xf32> to vector<16xf32>
    %293 = vector.shape_cast %292 : vector<16xf32> to vector<16x1xf32>
    %cst_115 = arith.constant 1.280000e+02 : f32
    %294 = vector.broadcast %cst_115 : f32 to vector<16x1xf32>
    %295 = arith.divf %293, %294 : vector<16x1xf32>
    %296 = vector.broadcast %288 : vector<16x1xf32> to vector<16x128xf32>
    %297 = arith.subf %284, %296 : vector<16x128xf32>
    %cst_116 = arith.constant 9.99999974E-6 : f32
    %298 = vector.broadcast %cst_116 : f32 to vector<16x1xf32>
    %299 = arith.addf %295, %298 : vector<16x1xf32>
    %300 = math.rsqrt %299 : vector<16x1xf32>
    %301 = vector.broadcast %300 : vector<16x1xf32> to vector<16x128xf32>
    %302 = arith.mulf %297, %301 : vector<16x128xf32>
    %c0_117 = arith.constant 0 : index
    %c0_118 = arith.constant 0 : index
    %303 = vector.load %arg25[%c0_117, %c0_118] : memref<1x128xf32, #tpu.memory_space<vmem>>, vector<1x128xf32>
    %304 = vector.broadcast %303 : vector<1x128xf32> to vector<16x128xf32>
    %305 = arith.mulf %302, %304 : vector<16x128xf32>
    %c0_119 = arith.constant 0 : index
    %c0_120 = arith.constant 0 : index
    %306 = vector.load %arg26[%c0_119, %c0_120] : memref<1x128xf32, #tpu.memory_space<vmem>>, vector<1x128xf32>
    %307 = vector.broadcast %306 : vector<1x128xf32> to vector<16x128xf32>
    %308 = arith.addf %305, %307 : vector<16x128xf32>
    %cst_121 = arith.constant 0.000000e+00 : f32
    %309 = vector.broadcast %cst_121 : f32 to vector<16x128xf32>
    %310 = arith.maximumf %308, %309 : vector<16x128xf32>
    %311 = arith.truncf %310 : vector<16x128xf32> to vector<16x128xbf16>
    %c0_122 = arith.constant 0 : index
    %c0_123 = arith.constant 0 : index
    %312 = vector.load %arg27[%c0_122, %c0_123] : memref<128x256xbf16, #tpu.memory_space<vmem>>, vector<128x256xbf16>
    %cst_124 = arith.constant dense<0.000000e+00> : vector<16x256xf32>
    %313 = tpu.matmul %311, %312, %cst_124 {dimension_numbers = #tpu.dot_dimension_numbers<[1], [0], [0], [1], [0, 0, 1, 1], [], []>} : vector<16x128xbf16>, vector<128x256xbf16>, vector<16x256xf32> -> vector<16x256xf32>
    %c0_125 = arith.constant 0 : index
    %c0_126 = arith.constant 0 : index
    %314 = vector.load %arg28[%c0_125, %c0_126] : memref<1x256xf32, #tpu.memory_space<vmem>>, vector<1x256xf32>
    %315 = vector.broadcast %314 : vector<1x256xf32> to vector<16x256xf32>
    %316 = arith.addf %313, %315 : vector<16x256xf32>
    %cst_127 = arith.constant 0.000000e+00 : f32
    %317 = vector.broadcast %cst_127 : f32 to vector<16x256xf32>
    %318 = arith.maximumf %316, %317 : vector<16x256xf32>
    %319 = arith.truncf %318 : vector<16x256xf32> to vector<16x256xbf16>
    %c0_128 = arith.constant 0 : index
    %c0_129 = arith.constant 0 : index
    %320 = vector.load %arg29[%c0_128, %c0_129] : memref<256x128xbf16, #tpu.memory_space<vmem>>, vector<256x128xbf16>
    %cst_130 = arith.constant dense<0.000000e+00> : vector<16x128xf32>
    %321 = tpu.matmul %319, %320, %cst_130 {dimension_numbers = #tpu.dot_dimension_numbers<[1], [0], [0], [1], [0, 0, 1, 1], [], []>} : vector<16x256xbf16>, vector<256x128xbf16>, vector<16x128xf32> -> vector<16x128xf32>
    %c0_131 = arith.constant 0 : index
    %c0_132 = arith.constant 0 : index
    %322 = vector.load %arg30[%c0_131, %c0_132] : memref<1x128xf32, #tpu.memory_space<vmem>>, vector<1x128xf32>
    %323 = vector.broadcast %322 : vector<1x128xf32> to vector<16x128xf32>
    %324 = arith.addf %321, %323 : vector<16x128xf32>
    %c0_133 = arith.constant 0 : index
    %c0_134 = arith.constant 0 : index
    %325 = vector.load %arg31[%c0_133, %c0_134] : memref<16x128xf32, #tpu.memory_space<vmem>>, vector<16x128xf32>
    tpu.vector_store %arg31[%c0_133, %c0_134], %324 {strides = array<i32>} : memref<16x128xf32, #tpu.memory_space<vmem>>, vector<16x128xf32>,
    return
  }
  func.func @transform_0(%arg0: i32) -> (i32, i32) {
    %c0_i32 = arith.constant 0 : i32
    %c0_i32_0 = arith.constant 0 : i32
    %c0_i32_1 = arith.constant 0 : i32
    return %c0_i32, %c0_i32_0 : i32, i32
  }
  func.func @transform_1(%arg0: i32) -> (i32, i32) {
    %c0_i32 = arith.constant 0 : i32
    %c0_i32_0 = arith.constant 0 : i32
    %c0_i32_1 = arith.constant 0 : i32
    return %c0_i32, %c0_i32_0 : i32, i32
  }
  func.func @transform_2(%arg0: i32) -> (i32, i32) {
    %c0_i32 = arith.constant 0 : i32
    %c0_i32_0 = arith.constant 0 : i32
    %c0_i32_1 = arith.constant 0 : i32
    return %c0_i32, %c0_i32_0 : i32, i32
  }
  func.func @transform_3(%arg0: i32) -> (i32, i32) {
    %c0_i32 = arith.constant 0 : i32
    %c0_i32_0 = arith.constant 0 : i32
    %c0_i32_1 = arith.constant 0 : i32
    return %c0_i32, %c0_i32_0 : i32, i32
  }
  func.func @transform_4(%arg0: i32) -> (i32, i32) {
    %c0_i32 = arith.constant 0 : i32
    %c0_i32_0 = arith.constant 0 : i32
    %c0_i32_1 = arith.constant 0 : i32
    return %c0_i32, %c0_i32_0 : i32, i32
  }
  func.func @transform_5(%arg0: i32) -> (i32, i32) {
    %c0_i32 = arith.constant 0 : i32
    %c0_i32_0 = arith.constant 0 : i32
    %c0_i32_1 = arith.constant 0 : i32
    return %c0_i32, %c0_i32_0 : i32, i32
  }
  func.func @transform_6(%arg0: i32) -> (i32, i32) {
    %c0_i32 = arith.constant 0 : i32
    %c0_i32_0 = arith.constant 0 : i32
    %c0_i32_1 = arith.constant 0 : i32
    return %c0_i32, %c0_i32_0 : i32, i32
  }
  func.func @transform_7(%arg0: i32) -> (i32, i32) {
    %c0_i32 = arith.constant 0 : i32
    %c0_i32_0 = arith.constant 0 : i32
    %c0_i32_1 = arith.constant 0 : i32
    return %c0_i32, %c0_i32_0 : i32, i32
  }
  func.func @transform_8(%arg0: i32) -> (i32, i32) {
    %c0_i32 = arith.constant 0 : i32
    %c0_i32_0 = arith.constant 0 : i32
    %c0_i32_1 = arith.constant 0 : i32
    return %c0_i32, %c0_i32_0 : i32, i32
  }
  func.func @transform_9(%arg0: i32) -> (i32, i32) {
    %c0_i32 = arith.constant 0 : i32
    %c0_i32_0 = arith.constant 0 : i32
    %c0_i32_1 = arith.constant 0 : i32
    return %c0_i32, %c0_i32_0 : i32, i32
  }
  func.func @transform_10(%arg0: i32) -> (i32, i32) {
    %c0_i32 = arith.constant 0 : i32
    %c0_i32_0 = arith.constant 0 : i32
    %c0_i32_1 = arith.constant 0 : i32
    return %c0_i32, %c0_i32_0 : i32, i32
  }
  func.func @transform_11(%arg0: i32) -> (i32, i32) {
    %c0_i32 = arith.constant 0 : i32
    %c0_i32_0 = arith.constant 0 : i32
    %c0_i32_1 = arith.constant 0 : i32
    return %c0_i32, %c0_i32_0 : i32, i32
  }
  func.func @transform_12(%arg0: i32) -> (i32, i32) {
    %c0_i32 = arith.constant 0 : i32
    %c0_i32_0 = arith.constant 0 : i32
    %c0_i32_1 = arith.constant 0 : i32
    return %c0_i32, %c0_i32_0 : i32, i32
  }
  func.func @transform_13(%arg0: i32) -> (i32, i32) {
    %c0_i32 = arith.constant 0 : i32
    %c0_i32_0 = arith.constant 0 : i32
    %c0_i32_1 = arith.constant 0 : i32
    return %c0_i32, %c0_i32_0 : i32, i32
  }
  func.func @transform_14(%arg0: i32) -> (i32, i32) {
    %c0_i32 = arith.constant 0 : i32
    %c0_i32_0 = arith.constant 0 : i32
    %c0_i32_1 = arith.constant 0 : i32
    return %c0_i32, %c0_i32_0 : i32, i32
  }
  func.func @transform_15(%arg0: i32) -> (i32, i32) {
    %c0_i32 = arith.constant 0 : i32
    %c0_i32_0 = arith.constant 0 : i32
    %c0_i32_1 = arith.constant 0 : i32
    return %c0_i32, %c0_i32_0 : i32, i32
  }
  func.func @transform_16(%arg0: i32) -> (i32, i32) {
    %c0_i32 = arith.constant 0 : i32
    %c0_i32_0 = arith.constant 0 : i32
    %c0_i32_1 = arith.constant 0 : i32
    return %c0_i32, %c0_i32_0 : i32, i32
  }
  func.func @transform_17(%arg0: i32) -> (i32, i32) {
    %c0_i32 = arith.constant 0 : i32
    %c0_i32_0 = arith.constant 0 : i32
    %c0_i32_1 = arith.constant 0 : i32
    return %c0_i32, %c0_i32_0 : i32, i32
  }
  func.func @transform_18(%arg0: i32) -> (i32, i32) {
    %c0_i32 = arith.constant 0 : i32
    %c0_i32_0 = arith.constant 0 : i32
    %c0_i32_1 = arith.constant 0 : i32
    return %c0_i32, %c0_i32_0 : i32, i32
  }
  func.func @transform_19(%arg0: i32) -> (i32, i32) {
    %c0_i32 = arith.constant 0 : i32
    %c0_i32_0 = arith.constant 0 : i32
    %c0_i32_1 = arith.constant 0 : i32
    return %c0_i32, %c0_i32_0 : i32, i32
  }
  func.func @transform_20(%arg0: i32) -> (i32, i32) {
    %c0_i32 = arith.constant 0 : i32
    %c0_i32_0 = arith.constant 0 : i32
    %c0_i32_1 = arith.constant 0 : i32
    return %c0_i32, %c0_i32_0 : i32, i32
  }
  func.func @transform_21(%arg0: i32) -> (i32, i32) {
    %c0_i32 = arith.constant 0 : i32
    %c0_i32_0 = arith.constant 0 : i32
    %c0_i32_1 = arith.constant 0 : i32
    return %c0_i32, %c0_i32_0 : i32, i32
  }
  func.func @transform_22(%arg0: i32) -> (i32, i32) {
    %c0_i32 = arith.constant 0 : i32
    %c0_i32_0 = arith.constant 0 : i32
    %c0_i32_1 = arith.constant 0 : i32
    return %c0_i32, %c0_i32_0 : i32, i32
  }
  func.func @transform_23(%arg0: i32) -> (i32, i32) {
    %c0_i32 = arith.constant 0 : i32
    %c0_i32_0 = arith.constant 0 : i32
    %c0_i32_1 = arith.constant 0 : i32
    return %c0_i32, %c0_i32_0 : i32, i32
  }
  func.func @transform_24(%arg0: i32) -> (i32, i32) {
    %c0_i32 = arith.constant 0 : i32
    %c0_i32_0 = arith.constant 0 : i32
    %c0_i32_1 = arith.constant 0 : i32
    return %c0_i32, %c0_i32_0 : i32, i32
  }
  func.func @transform_25(%arg0: i32) -> (i32, i32) {
    %c0_i32 = arith.constant 0 : i32
    %c0_i32_0 = arith.constant 0 : i32
    %c0_i32_1 = arith.constant 0 : i32
    return %c0_i32, %c0_i32_0 : i32, i32
  }
  func.func @transform_26(%arg0: i32) -> (i32, i32) {
    %c0_i32 = arith.constant 0 : i32
    %c0_i32_0 = arith.constant 0 : i32
    %c0_i32_1 = arith.constant 0 : i32
    return %c0_i32, %c0_i32_0 : i32, i32
  }
  func.func @transform_27(%arg0: i32) -> (i32, i32) {
    %c0_i32 = arith.constant 0 : i32
    %c0_i32_0 = arith.constant 0 : i32
    %c0_i32_1 = arith.constant 0 : i32
    return %c0_i32, %c0_i32_0 : i32, i32
  }
  func.func @transform_28(%arg0: i32) -> (i32, i32) {
    %c0_i32 = arith.constant 0 : i32
    %c0_i32_0 = arith.constant 0 : i32
    %c0_i32_1 = arith.constant 0 : i32
    return %c0_i32, %c0_i32_0 : i32, i32
  }
  func.func @transform_29(%arg0: i32) -> (i32, i32) {
    %c0_i32 = arith.constant 0 : i32
    %c0_i32_0 = arith.constant 0 : i32
    %c0_i32_1 = arith.constant 0 : i32
    return %c0_i32, %c0_i32_0 : i32, i32
  }
  func.func @transform_30(%arg0: i32) -> (i32, i32) {
    %c0_i32 = arith.constant 0 : i32
    %c0_i32_0 = arith.constant 0 : i32
    %c0_i32_1 = arith.constant 0 : i32
    return %c0_i32, %c0_i32_0 : i32, i32
  }
}

</mosaic_0001>

<llo_original>
// kernel: forecaster_forward.1
$region0: #{forecaster_forward.1}
  #allocation0 [shape = 'u32[]', space=smem, size = 0x4, offset = 0x4, fixed_abs, tag = 'smem constant byte address 0x4 - core index']
  #allocation1 [shape = 'u32[144,128]{1,0:T(1,128)}', space=vmem, size = 0x12000, scoped, tag = 'internal scratch']
  #allocation2 [shape = 'f32[128,128]{1,0:T(8,128)}', space=vmem, size = 0x10000, scoped, tag = 'scratch operand']
  %s0 = inlined_call_operand.smem [shape: u32[31], index: -1, kind: input, shape index: {}]
  %s1 = sld [smem:[%s0]]
  %s2 = scalar_lea.smem %s0, 1
  %s3 = sld [smem:[%s2]]
  %s4 = scalar_lea.smem %s0, 2
  %s5 = sld [smem:[%s4]]
  %s6 = scalar_lea.smem %s0, 3
  %s7 = sld [smem:[%s6]]
  %s8 = scalar_lea.smem %s0, 4
  %s9 = sld [smem:[%s8]]
  %s10 = scalar_lea.smem %s0, 5
  %s11 = sld [smem:[%s10]]
  %s12 = scalar_lea.smem %s0, 6
  %s13 = sld [smem:[%s12]]
  %s14 = scalar_lea.smem %s0, 7
  %s15 = sld [smem:[%s14]]
  %s16 = scalar_lea.smem %s0, 8
  %s17 = sld [smem:[%s16]]
  %s18 = scalar_lea.smem %s0, 9
  %s19 = sld [smem:[%s18]]
  %s20 = scalar_lea.smem %s0, 10
  %s21 = sld [smem:[%s20]]
  %s22 = scalar_lea.smem %s0, 11
  %s23 = sld [smem:[%s22]]
  %s24 = scalar_lea.smem %s0, 12
  %s25 = sld [smem:[%s24]]
  %s26 = scalar_lea.smem %s0, 13
  %s27 = sld [smem:[%s26]]
  %s28 = scalar_lea.smem %s0, 14
  %s29 = sld [smem:[%s28]]
  %s30 = scalar_lea.smem %s0, 15
  %s31 = sld [smem:[%s30]]
  %s32 = scalar_lea.smem %s0, 16
  %s33 = sld [smem:[%s32]]
  %s34 = scalar_lea.smem %s0, 17
  %s35 = sld [smem:[%s34]]
  %s36 = scalar_lea.smem %s0, 18
  %s37 = sld [smem:[%s36]]
  %s38 = scalar_lea.smem %s0, 19
  %s39 = sld [smem:[%s38]]
  %s40 = scalar_lea.smem %s0, 20
  %s41 = sld [smem:[%s40]]
  %s42 = scalar_lea.smem %s0, 21
  %s43 = sld [smem:[%s42]]
  %s44 = scalar_lea.smem %s0, 22
  %s45 = sld [smem:[%s44]]
  %s46 = scalar_lea.smem %s0, 23
  %s47 = sld [smem:[%s46]]
  %s48 = scalar_lea.smem %s0, 24
  %s49 = sld [smem:[%s48]]
  %s50 = scalar_lea.smem %s0, 25
  %s51 = sld [smem:[%s50]]
  %s52 = scalar_lea.smem %s0, 26
  %s53 = sld [smem:[%s52]]
  %s54 = scalar_lea.smem %s0, 27
  %s55 = sld [smem:[%s54]]
  %s56 = scalar_lea.smem %s0, 28
  %s57 = sld [smem:[%s56]]
  %s58 = scalar_lea.smem %s0, 29
  %s59 = sld [smem:[%s58]]
  %s60 = scalar_lea.smem %s0, 30
  %s61 = sld [smem:[%s60]]
  %s62 = sld [smem:[#allocation0]]
  $region198: #{forecaster_forward.1} parent=0
    _
  %s64 = ssub.s32 1, %s62
  %s65 = scalar_select 0, %s64, %s62
  $region1: #{forecaster_forward.1} parent=0
    #allocation3 [shape = 'u8[8192]{0}', space=vmem, size = 0x2000, scoped, tag = 'input window, operand 3, single buffered']
    #allocation4 [shape = 's32[1]{0}', space=sflag, size = 0x4, scoped, tag = 'scoped memory for forecaster_forward.1']
    #allocation5 [shape = 'u8[512]{0}', space=vmem, size = 0x400, scoped, tag = 'input window, operand 5, single buffered']
    #allocation6 [shape = 's32[1]{0}', space=sflag, size = 0x4, scoped, tag = 'scoped memory for forecaster_forward.1']
    #allocation7 [shape = 'u8[512]{0}', space=vmem, size = 0x400, scoped, tag = 'input window, operand 7, single buffered']
    #allocation8 [shape = 'u8[32768]{0}', space=vmem, size = 0x8000, scoped, tag = 'input window, operand 8, single buffered']
    #allocation9 [shape = 's32[1]{0}', space=sflag, size = 0x4, scoped, tag = 'scoped memory for forecaster_forward.1']
    #allocation10 [shape = 'u8[512]{0}', space=vmem, size = 0x400, scoped, tag = 'input window, operand 9, single buffered']
    #allocation11 [shape = 'u8[2048]{0}', space=vmem, size = 0x800, scoped, tag = 'input window, operand 11, single buffered']
    #allocation12 [shape = 's32[1]{0}', space=sflag, size = 0x4, scoped, tag = 'scoped memory for forecaster_forward.1']
    #allocation13 [shape = 'u8[512]{0}', space=vmem, size = 0x400, scoped, tag = 'input window, operand 12, single buffered']
    #allocation14 [shape = 'u8[512]{0}', space=vmem, size = 0x400, scoped, tag = 'input window, operand 13, single buffered']
    #allocation15 [shape = 's32[1]{0}', space=sflag, size = 0x4, scoped, tag = 'scoped memory for forecaster_forward.1']
    #allocation16 [shape = 'u8[131072]{0}', space=vmem, size = 0x20000, scoped, tag = 'input window, operand 14, single buffered']
    #allocation17 [shape = 'u8[2048]{0}', space=vmem, size = 0x800, scoped, tag = 'input window, operand 15, single buffered']
    #allocation18 [shape = 's32[1]{0}', space=sflag, size = 0x4, scoped, tag = 'scoped memory for forecaster_forward.1']
    #allocation19 [shape = 'u8[512]{0}', space=vmem, size = 0x400, scoped, tag = 'input window, operand 16, single buffered']
    #allocation20 [shape = 'u8[512]{0}', space=vmem, size = 0x400, scoped, tag = 'input window, operand 17, single buffered']
    #allocation21 [shape = 's32[1]{0}', space=sflag, size = 0x4, scoped, tag = 'scoped memory for forecaster_forward.1']
    #allocation22 [shape = 'u8[131072]{0}', space=vmem, size = 0x20000, scoped, tag = 'input window, operand 18, single buffered']
    #allocation23 [shape = 'u8[131072]{0}', space=vmem, size = 0x20000, scoped, tag = 'input window, operand 22, single buffered']
    #allocation24 [shape = 's32[1]{0}', space=sflag, size = 0x4, scoped, tag = 'scoped memory for forecaster_forward.1']
    #allocation25 [shape = 'u8[65536]{0}', space=vmem, size = 0x10000, scoped, tag = 'input window, operand 26, single buffered']
    #allocation26 [shape = 'u8[65536]{0}', space=vmem, size = 0x10000, scoped, tag = 'input window, operand 28, single buffered']
    #allocation27 [shape = 's32[1]{0}', space=sflag, size = 0x4, scoped, tag = 'scoped memory for forecaster_forward.1']
    #allocation28 [shape = 'u8[512]{0}', space=vmem, size = 0x400, scoped, tag = 'input window, operand 29, single buffered']
    %66 = vsyncpa [#allocation4], 0
    %67 = vsyncpa [#allocation6], 0
    %68 = vsyncpa [#allocation9], 0
    %69 = vsyncpa [#allocation12], 0
    %70 = vsyncpa [#allocation15], 0
    %71 = vsyncpa [#allocation18], 0
    %72 = vsyncpa [#allocation21], 0
    %73 = vsyncpa [#allocation24], 0
    %74 = vsyncpa [#allocation27], 0
    // Predicated region
    $region2: #{forecaster_forward.1} parent=1 // pred_check
      _
    $region3: #{forecaster_forward.1} parent=1 // pred_check_branch
      %76 = sbr.rel (0) target = $region5
    $region4: #{forecaster_forward.1} parent=1 // pred_region
      _
    $region5: #{forecaster_forward.1} parent=1 // pred_fallthru
      _
    // Predicated region
    $region6: #{forecaster_forward.1} parent=1 // pred_check
      _
    $region7: #{forecaster_forward.1} parent=1 // pred_check_branch
      %78 = sbr.rel (0) target = $region9
    $region8: #{forecaster_forward.1} parent=1 // pred_region
      _
    $region9: #{forecaster_forward.1} parent=1 // pred_fallthru
      _
    // Predicated region
    $region10: #{forecaster_forward.1} parent=1 // pred_check
      _
    $region11: #{forecaster_forward.1} parent=1 // pred_check_branch
      %80 = sbr.rel (0) target = $region13
    $region12: #{forecaster_forward.1} parent=1 // pred_region
      _
    $region13: #{forecaster_forward.1} parent=1 // pred_fallthru
      _
    // Predicated region
    $region14: #{forecaster_forward.1} parent=1 // pred_check
      _
    $region15: #{forecaster_forward.1} parent=1 // pred_check_branch
      %82 = sbr.rel (0) target = $region17
    $region16: #{forecaster_forward.1} parent=1 // pred_region
      %s84 = ssub.s32 256, 256
      %85 = vsyncadd [#allocation4], %s84
      %s86 = sshll.u32 [#allocation3], 4
      %s87 = int_to_ptr.vmem [resolvable:$true] %s86
      %92 = dma.hbm_to_vmem [thread:$0]  %s7, 256, %s87, [#allocation4], 128, 128, 8
    $region17: #{forecaster_forward.1} parent=1 // pred_fallthru
      _
    // Predicated region
    $region18: #{forecaster_forward.1} parent=1 // pred_check
      _
    $region19: #{forecaster_forward.1} parent=1 // pred_check_branch
      %94 = sbr.rel (0) target = $region21
    $region20: #{forecaster_forward.1} parent=1 // pred_region
      _
    $region21: #{forecaster_forward.1} parent=1 // pred_fallthru
      _
    // Predicated region
    $region22: #{forecaster_forward.1} parent=1 // pred_check
      _
    $region23: #{forecaster_forward.1} parent=1 // pred_check_branch
      %96 = sbr.rel (0) target = $region25
    $region24: #{forecaster_forward.1} parent=1 // pred_region
      %s98 = ssub.s32 16, 16
      %99 = vsyncadd [#allocation6], %s98
      %s101 = sshll.u32 [#allocation5], 4
      %s102 = int_to_ptr.vmem [resolvable:$true] %s101
      %104 = dma.hbm_to_vmem [thread:$0]  %s11, 16, %s102, [#allocation6]
    $region25: #{forecaster_forward.1} parent=1 // pred_fallthru
      _
    // Predicated region
    $region26: #{forecaster_forward.1} parent=1 // pred_check
      _
    $region27: #{forecaster_forward.1} parent=1 // pred_check_branch
      %106 = sbr.rel (0) target = $region29
    $region28: #{forecaster_forward.1} parent=1 // pred_region
      _
    $region29: #{forecaster_forward.1} parent=1 // pred_fallthru
      _
    // Predicated region
    $region30: #{forecaster_forward.1} parent=1 // pred_check
      _
    $region31: #{forecaster_forward.1} parent=1 // pred_check_branch
      %108 = sbr.rel (0) target = $region33
    $region32: #{forecaster_forward.1} parent=1 // pred_region
      %s110 = ssub.s32 16, 16
      %111 = vsyncadd [#allocation6], %s110
      %s113 = sshll.u32 [#allocation7], 4
      %s114 = int_to_ptr.vmem [resolvable:$true] %s113
      %116 = dma.hbm_to_vmem [thread:$0]  %s15, 16, %s114, [#allocation6]
    $region33: #{forecaster_forward.1} parent=1 // pred_fallthru
      _
    // Predicated region
    $region34: #{forecaster_forward.1} parent=1 // pred_check
      _
    $region35: #{forecaster_forward.1} parent=1 // pred_check_branch
      %118 = sbr.rel (0) target = $region37
    $region36: #{forecaster_forward.1} parent=1 // pred_region
      %s120 = ssub.s32 1024, 1024
      %121 = vsyncadd [#allocation9], %s120
      %s122 = sshll.u32 [#allocation8], 4
      %s123 = int_to_ptr.vmem [resolvable:$true] %s122
      %128 = dma.hbm_to_vmem [thread:$0]  %s17, 1024, %s123, [#allocation9], 64, 64, 4
    $region37: #{forecaster_forward.1} parent=1 // pred_fallthru
      _
    // Predicated region
    $region38: #{forecaster_forward.1} parent=1 // pred_check
      _
    $region39: #{forecaster_forward.1} parent=1 // pred_check_branch
      %130 = sbr.rel (0) target = $region41
    $region40: #{forecaster_forward.1} parent=1 // pred_region
      %s132 = ssub.s32 16, 16
      %133 = vsyncadd [#allocation9], %s132
      %s135 = sshll.u32 [#allocation10], 4
      %s136 = int_to_ptr.vmem [resolvable:$true] %s135
      %138 = dma.hbm_to_vmem [thread:$0]  %s19, 16, %s136, [#allocation9]
    $region41: #{forecaster_forward.1} parent=1 // pred_fallthru
      _
    // Predicated region
    $region42: #{forecaster_forward.1} parent=1 // pred_check
      _
    $region43: #{forecaster_forward.1} parent=1 // pred_check_branch
      %140 = sbr.rel (0) target = $region45
    $region44: #{forecaster_forward.1} parent=1 // pred_region
      _
    $region45: #{forecaster_forward.1} parent=1 // pred_fallthru
      _
    // Predicated region
    $region46: #{forecaster_forward.1} parent=1 // pred_check
      _
    $region47: #{forecaster_forward.1} parent=1 // pred_check_branch
      %142 = sbr.rel (0) target = $region49
    $region48: #{forecaster_forward.1} parent=1 // pred_region
      %s144 = ssub.s32 64, 64
      %145 = vsyncadd [#allocation12], %s144
      %s147 = sshll.u32 [#allocation11], 4
      %s148 = int_to_ptr.vmem [resolvable:$true] %s147
      %150 = dma.hbm_to_vmem [thread:$0]  %s23, 64, %s148, [#allocation12]
    $region49: #{forecaster_forward.1} parent=1 // pred_fallthru
      _
    // Predicated region
    $region50: #{forecaster_forward.1} parent=1 // pred_check
      _
    $region51: #{forecaster_forward.1} parent=1 // pred_check_branch
      %152 = sbr.rel (0) target = $region53
    $region52: #{forecaster_forward.1} parent=1 // pred_region
      %s154 = ssub.s32 16, 16
      %155 = vsyncadd [#allocation12], %s154
      %s157 = sshll.u32 [#allocation13], 4
      %s158 = int_to_ptr.vmem [resolvable:$true] %s157
      %160 = dma.hbm_to_vmem [thread:$0]  %s25, 16, %s158, [#allocation12]
    $region53: #{forecaster_forward.1} parent=1 // pred_fallthru
      _
    // Predicated region
    $region54: #{forecaster_forward.1} parent=1 // pred_check
      _
    $region55: #{forecaster_forward.1} parent=1 // pred_check_branch
      %162 = sbr.rel (0) target = $region57
    $region56: #{forecaster_forward.1} parent=1 // pred_region
      %s164 = ssub.s32 16, 16
      %165 = vsyncadd [#allocation15], %s164
      %s167 = sshll.u32 [#allocation14], 4
      %s168 = int_to_ptr.vmem [resolvable:$true] %s167
      %170 = dma.hbm_to_vmem [thread:$0]  %s27, 16, %s168, [#allocation15]
    $region57: #{forecaster_forward.1} parent=1 // pred_fallthru
      _
    // Predicated region
    $region58: #{forecaster_forward.1} parent=1 // pred_check
      _
    $region59: #{forecaster_forward.1} parent=1 // pred_check_branch
      %172 = sbr.rel (0) target = $region61
    $region60: #{forecaster_forward.1} parent=1 // pred_region
      %s174 = ssub.s32 4096, 4096
      %175 = vsyncadd [#allocation15], %s174
      %s176 = sshll.u32 [#allocation16], 4
      %s177 = int_to_ptr.vmem [resolvable:$true] %s176
      %182 = dma.hbm_to_vmem [thread:$0]  %s29, 4096, %s177, [#allocation15], 256, 256, 16
    $region61: #{forecaster_forward.1} parent=1 // pred_fallthru
      _
    // Predicated region
    $region62: #{forecaster_forward.1} parent=1 // pred_check
      _
    $region63: #{forecaster_forward.1} parent=1 // pred_check_branch
      %184 = sbr.rel (0) target = $region65
    $region64: #{forecaster_forward.1} parent=1 // pred_region
      %s186 = ssub.s32 64, 64
      %187 = vsyncadd [#allocation18], %s186
      %s189 = sshll.u32 [#allocation17], 4
      %s190 = int_to_ptr.vmem [resolvable:$true] %s189
      %192 = dma.hbm_to_vmem [thread:$0]  %s31, 64, %s190, [#allocation18]
    $region65: #{forecaster_forward.1} parent=1 // pred_fallthru
      _
    // Predicated region
    $region66: #{forecaster_forward.1} parent=1 // pred_check
      _
    $region67: #{forecaster_forward.1} parent=1 // pred_check_branch
      %194 = sbr.rel (0) target = $region69
    $region68: #{forecaster_forward.1} parent=1 // pred_region
      %s196 = ssub.s32 16, 16
      %197 = vsyncadd [#allocation18], %s196
      %s199 = sshll.u32 [#allocation19], 4
      %s200 = int_to_ptr.vmem [resolvable:$true] %s199
      %202 = dma.hbm_to_vmem [thread:$0]  %s33, 16, %s200, [#allocation18]
    $region69: #{forecaster_forward.1} parent=1 // pred_fallthru
      _
    // Predicated region
    $region70: #{forecaster_forward.1} parent=1 // pred_check
      _
    $region71: #{forecaster_forward.1} parent=1 // pred_check_branch
      %204 = sbr.rel (0) target = $region73
    $region72: #{forecaster_forward.1} parent=1 // pred_region
      %s206 = ssub.s32 16, 16
      %207 = vsyncadd [#allocation21], %s206
      %s209 = sshll.u32 [#allocation20], 4
      %s210 = int_to_ptr.vmem [resolvable:$true] %s209
      %212 = dma.hbm_to_vmem [thread:$0]  %s35, 16, %s210, [#allocation21]
    $region73: #{forecaster_forward.1} parent=1 // pred_fallthru
      _
    // Predicated region
    $region74: #{forecaster_forward.1} parent=1 // pred_check
      _
    $region75: #{forecaster_forward.1} parent=1 // pred_check_branch
      %214 = sbr.rel (0) target = $region77
    $region76: #{forecaster_forward.1} parent=1 // pred_region
      %s216 = ssub.s32 4096, 4096
      %217 = vsyncadd [#allocation21], %s216
      %s218 = sshll.u32 [#allocation22], 4
      %s219 = int_to_ptr.vmem [resolvable:$true] %s218
      %224 = dma.hbm_to_vmem [thread:$0]  %s37, 4096, %s219, [#allocation21], 256, 256, 16
    $region77: #{forecaster_forward.1} parent=1 // pred_fallthru
      _
    // Predicated region
    $region78: #{forecaster_forward.1} parent=1 // pred_check
      _
    $region79: #{forecaster_forward.1} parent=1 // pred_check_branch
      %226 = sbr.rel (0) target = $region81
    $region80: #{forecaster_forward.1} parent=1 // pred_region
      _
    $region81: #{forecaster_forward.1} parent=1 // pred_fallthru
      _
    // Predicated region
    $region82: #{forecaster_forward.1} parent=1 // pred_check
      _
    $region83: #{forecaster_forward.1} parent=1 // pred_check_branch
      %228 = sbr.rel (0) target = $region85
    $region84: #{forecaster_forward.1} parent=1 // pred_region
      _
    $region85: #{forecaster_forward.1} parent=1 // pred_fallthru
      _
    // Predicated region
    $region86: #{forecaster_forward.1} parent=1 // pred_check
      _
    $region87: #{forecaster_forward.1} parent=1 // pred_check_branch
      %230 = sbr.rel (0) target = $region89
    $region88: #{forecaster_forward.1} parent=1 // pred_region
      _
    $region89: #{forecaster_forward.1} parent=1 // pred_fallthru
      _
    // Predicated region
    $region90: #{forecaster_forward.1} parent=1 // pred_check
      _
    $region91: #{forecaster_forward.1} parent=1 // pred_check_branch
      %232 = sbr.rel (0) target = $region93
    $region92: #{forecaster_forward.1} parent=1 // pred_region
      %s234 = ssub.s32 4096, 4096
      %235 = vsyncadd [#allocation24], %s234
      %s236 = sshll.u32 [#allocation23], 4
      %s237 = int_to_ptr.vmem [resolvable:$true] %s236
      %242 = dma.hbm_to_vmem [thread:$0]  %s45, 4096, %s237, [#allocation24], 256, 256, 16
    $region93: #{forecaster_forward.1} parent=1 // pred_fallthru
      _
    // Predicated region
    $region94: #{forecaster_forward.1} parent=1 // pred_check
      _
    $region95: #{forecaster_forward.1} parent=1 // pred_check_branch
      %244 = sbr.rel (0) target = $region97
    $region96: #{forecaster_forward.1} parent=1 // pred_region
      _
    $region97: #{forecaster_forward.1} parent=1 // pred_fallthru
      _
    // Predicated region
    $region98: #{forecaster_forward.1} parent=1 // pred_check
      _
    $region99: #{forecaster_forward.1} parent=1 // pred_check_branch
      %246 = sbr.rel (0) target = $region101
    $region100: #{forecaster_forward.1} parent=1 // pred_region
      _
    $region101: #{forecaster_forward.1} parent=1 // pred_fallthru
      _
    // Predicated region
    $region102: #{forecaster_forward.1} parent=1 // pred_check
      _
    $region103: #{forecaster_forward.1} parent=1 // pred_check_branch
      %248 = sbr.rel (0) target = $region105
    $region104: #{forecaster_forward.1} parent=1 // pred_region
      _
    $region105: #{forecaster_forward.1} parent=1 // pred_fallthru
      _
    // Predicated region
    $region106: #{forecaster_forward.1} parent=1 // pred_check
      _
    $region107: #{forecaster_forward.1} parent=1 // pred_check_branch
      %250 = sbr.rel (0) target = $region109
    $region108: #{forecaster_forward.1} parent=1 // pred_region
      %s252 = ssub.s32 2048, 2048
      %253 = vsyncadd [#allocation24], %s252
      %s254 = sshll.u32 [#allocation25], 4
      %s255 = int_to_ptr.vmem [resolvable:$true] %s254
      %260 = dma.hbm_to_vmem [thread:$0]  %s53, 2048, %s255, [#allocation24], 128, 128, 8
    $region109: #{forecaster_forward.1} parent=1 // pred_fallthru
      _
    // Predicated region
    $region110: #{forecaster_forward.1} parent=1 // pred_check
      _
    $region111: #{forecaster_forward.1} parent=1 // pred_check_branch
      %262 = sbr.rel (0) target = $region113
    $region112: #{forecaster_forward.1} parent=1 // pred_region
      _
    $region113: #{forecaster_forward.1} parent=1 // pred_fallthru
      _
    // Predicated region
    $region114: #{forecaster_forward.1} parent=1 // pred_check
      _
    $region115: #{forecaster_forward.1} parent=1 // pred_check_branch
      %264 = sbr.rel (0) target = $region117
    $region116: #{forecaster_forward.1} parent=1 // pred_region
      %s266 = ssub.s32 2048, 2048
      %267 = vsyncadd [#allocation27], %s266
      %s268 = sshll.u32 [#allocation26], 4
      %s269 = int_to_ptr.vmem [resolvable:$true] %s268
      %274 = dma.hbm_to_vmem [thread:$0]  %s57, 2048, %s269, [#allocation27], 64, 64, 4
    $region117: #{forecaster_forward.1} parent=1 // pred_fallthru
      _
    // Predicated region
    $region118: #{forecaster_forward.1} parent=1 // pred_check
      _
    $region119: #{forecaster_forward.1} parent=1 // pred_check_branch
      %276 = sbr.rel (0) target = $region121
    $region120: #{forecaster_forward.1} parent=1 // pred_region
      %s278 = ssub.s32 16, 16
      %279 = vsyncadd [#allocation27], %s278
      %s281 = sshll.u32 [#allocation28], 4
      %s282 = int_to_ptr.vmem [resolvable:$true] %s281
      %284 = dma.hbm_to_vmem [thread:$0]  %s59, 16, %s282, [#allocation27]
    $region121: #{forecaster_forward.1} parent=1 // pred_fallthru
      _
    // Predicated region
    $region122: #{forecaster_forward.1} parent=1 // pred_check
      _
    $region123: #{forecaster_forward.1} parent=1 // pred_check_branch
      %286 = sbr.rel (0) target = $region125
    $region124: #{forecaster_forward.1} parent=1 // pred_region
      %287 = dma.done [#allocation4], 256
    $region125: #{forecaster_forward.1} parent=1 // pred_fallthru
      _
    // Predicated region
    $region126: #{forecaster_forward.1} parent=1 // pred_check
      _
    $region127: #{forecaster_forward.1} parent=1 // pred_check_branch
      %289 = sbr.rel (0) target = $region129
    $region128: #{forecaster_forward.1} parent=1 // pred_region
      %290 = dma.done [#allocation6], 16
    $region129: #{forecaster_forward.1} parent=1 // pred_fallthru
      _
    // Predicated region
    $region130: #{forecaster_forward.1} parent=1 // pred_check
      _
    $region131: #{forecaster_forward.1} parent=1 // pred_check_branch
      %292 = sbr.rel (0) target = $region133
    $region132: #{forecaster_forward.1} parent=1 // pred_region
      %293 = dma.done [#allocation6], 16
    $region133: #{forecaster_forward.1} parent=1 // pred_fallthru
      _
    // Predicated region
    $region134: #{forecaster_forward.1} parent=1 // pred_check
      _
    $region135: #{forecaster_forward.1} parent=1 // pred_check_branch
      %295 = sbr.rel (0) target = $region137
    $region136: #{forecaster_forward.1} parent=1 // pred_region
      %296 = dma.done [#allocation9], 1024
    $region137: #{forecaster_forward.1} parent=1 // pred_fallthru
      _
    // Predicated region
    $region138: #{forecaster_forward.1} parent=1 // pred_check
      _
    $region139: #{forecaster_forward.1} parent=1 // pred_check_branch
      %298 = sbr.rel (0) target = $region141
    $region140: #{forecaster_forward.1} parent=1 // pred_region
      %299 = dma.done [#allocation9], 16
    $region141: #{forecaster_forward.1} parent=1 // pred_fallthru
      _
    // Predicated region
    $region142: #{forecaster_forward.1} parent=1 // pred_check
      _
    $region143: #{forecaster_forward.1} parent=1 // pred_check_branch
      %301 = sbr.rel (0) target = $region145
    $region144: #{forecaster_forward.1} parent=1 // pred_region
      %302 = dma.done [#allocation12], 64
    $region145: #{forecaster_forward.1} parent=1 // pred_fallthru
      _
    // Predicated region
    $region146: #{forecaster_forward.1} parent=1 // pred_check
      _
    $region147: #{forecaster_forward.1} parent=1 // pred_check_branch
      %304 = sbr.rel (0) target = $region149
    $region148: #{forecaster_forward.1} parent=1 // pred_region
      %305 = dma.done [#allocation12], 16
    $region149: #{forecaster_forward.1} parent=1 // pred_fallthru
      _
    // Predicated region
    $region150: #{forecaster_forward.1} parent=1 // pred_check
      _
    $region151: #{forecaster_forward.1} parent=1 // pred_check_branch
      %307 = sbr.rel (0) target = $region153
    $region152: #{forecaster_forward.1} parent=1 // pred_region
      %308 = dma.done [#allocation15], 16
    $region153: #{forecaster_forward.1} parent=1 // pred_fallthru
      _
    // Predicated region
    $region154: #{forecaster_forward.1} parent=1 // pred_check
      _
    $region155: #{forecaster_forward.1} parent=1 // pred_check_branch
      %310 = sbr.rel (0) target = $region157
    $region156: #{forecaster_forward.1} parent=1 // pred_region
      %311 = dma.done [#allocation15], 4096
    $region157: #{forecaster_forward.1} parent=1 // pred_fallthru
      _
    // Predicated region
    $region158: #{forecaster_forward.1} parent=1 // pred_check
      _
    $region159: #{forecaster_forward.1} parent=1 // pred_check_branch
      %313 = sbr.rel (0) target = $region161
    $region160: #{forecaster_forward.1} parent=1 // pred_region
      %314 = dma.done [#allocation18], 64
    $region161: #{forecaster_forward.1} parent=1 // pred_fallthru
      _
    // Predicated region
    $region162: #{forecaster_forward.1} parent=1 // pred_check
      _
    $region163: #{forecaster_forward.1} parent=1 // pred_check_branch
      %316 = sbr.rel (0) target = $region165
    $region164: #{forecaster_forward.1} parent=1 // pred_region
      %317 = dma.done [#allocation18], 16
    $region165: #{forecaster_forward.1} parent=1 // pred_fallthru
      _
    // Predicated region
    $region166: #{forecaster_forward.1} parent=1 // pred_check
      _
    $region167: #{forecaster_forward.1} parent=1 // pred_check_branch
      %319 = sbr.rel (0) target = $region169
    $region168: #{forecaster_forward.1} parent=1 // pred_region
      %320 = dma.done [#allocation21], 16
    $region169: #{forecaster_forward.1} parent=1 // pred_fallthru
      _
    // Predicated region
    $region170: #{forecaster_forward.1} parent=1 // pred_check
      _
    $region171: #{forecaster_forward.1} parent=1 // pred_check_branch
      %322 = sbr.rel (0) target = $region173
    $region172: #{forecaster_forward.1} parent=1 // pred_region
      %323 = dma.done [#allocation21], 4096
    $region173: #{forecaster_forward.1} parent=1 // pred_fallthru
      _
    // Predicated region
    $region174: #{forecaster_forward.1} parent=1 // pred_check
      _
    $region175: #{forecaster_forward.1} parent=1 // pred_check_branch
      %325 = sbr.rel (0) target = $region177
    $region176: #{forecaster_forward.1} parent=1 // pred_region
      %326 = dma.done [#allocation24], 4096
    $region177: #{forecaster_forward.1} parent=1 // pred_fallthru
      _
    // Predicated region
    $region178: #{forecaster_forward.1} parent=1 // pred_check
      _
    $region179: #{forecaster_forward.1} parent=1 // pred_check_branch
      %328 = sbr.rel (0) target = $region181
    $region180: #{forecaster_forward.1} parent=1 // pred_region
      %329 = dma.done [#allocation24], 2048
    $region181: #{forecaster_forward.1} parent=1 // pred_fallthru
      _
    // Predicated region
    $region182: #{forecaster_forward.1} parent=1 // pred_check
      _
    $region183: #{forecaster_forward.1} parent=1 // pred_check_branch
      %331 = sbr.rel (0) target = $region185
    $region184: #{forecaster_forward.1} parent=1 // pred_region
      %332 = dma.done [#allocation27], 2048
    $region185: #{forecaster_forward.1} parent=1 // pred_fallthru
      _
    // Predicated region
    $region186: #{forecaster_forward.1} parent=1 // pred_check
      _
    $region187: #{forecaster_forward.1} parent=1 // pred_check_branch
      %334 = sbr.rel (0) target = $region189
    $region188: #{forecaster_forward.1} parent=1 // pred_region
      %335 = dma.done [#allocation27], 16
    $region189: #{forecaster_forward.1} parent=1 // pred_fallthru
      _
    %v337 = vld [vmem:[%s1] sm:$0xff]
    %v338 = vld [vmem:[%s1 + $0x8] sm:$0xff]
    %v339 = vld [vmem:[%s1 + $0x10] sm:$0xff]
    %v340 = vld [vmem:[%s1 + $0x18] sm:$0xff]
    %v341 = vld [vmem:[%s1 + $0x20] sm:$0xff]
    %v342 = vld [vmem:[%s1 + $0x28] sm:$0xff]
    %v343 = vld [vmem:[%s1 + $0x30] sm:$0xff]
    %v344 = vld [vmem:[%s1 + $0x38] sm:$0xff]
    %v345 = vld [vmem:[%s1 + $0x40] sm:$0xff]
    %v346 = vld [vmem:[%s1 + $0x48] sm:$0xff]
    %v347 = vld [vmem:[%s1 + $0x50] sm:$0xff]
    %v348 = vld [vmem:[%s1 + $0x58] sm:$0xff]
    %v349 = vld [vmem:[%s1 + $0x60] sm:$0xff]
    %v350 = vld [vmem:[%s1 + $0x68] sm:$0xff]
    %v351 = vld [vmem:[%s1 + $0x70] sm:$0xff]
    %v352 = vld [vmem:[%s1 + $0x78] sm:$0xff]
    %v353 = vld [vmem:[%s3] sm:$0xff]
    %v354 = vld [vmem:[%s3 + $0x8] sm:$0xff]
    %v355 = vld [vmem:[%s3 + $0x10] sm:$0xff]
    %v356 = vld [vmem:[%s3 + $0x18] sm:$0xff]
    %v357 = vld [vmem:[%s3 + $0x20] sm:$0xff]
    %v358 = vld [vmem:[%s3 + $0x28] sm:$0xff]
    %v359 = vld [vmem:[%s3 + $0x30] sm:$0xff]
    %v360 = vld [vmem:[%s3 + $0x38] sm:$0xff]
    %v361 = vld [vmem:[%s3 + $0x40] sm:$0xff]
    %v362 = vld [vmem:[%s3 + $0x48] sm:$0xff]
    %v363 = vld [vmem:[%s3 + $0x50] sm:$0xff]
    %v364 = vld [vmem:[%s3 + $0x58] sm:$0xff]
    %v365 = vld [vmem:[%s3 + $0x60] sm:$0xff]
    %v366 = vld [vmem:[%s3 + $0x68] sm:$0xff]
    %v367 = vld [vmem:[%s3 + $0x70] sm:$0xff]
    %v368 = vld [vmem:[%s3 + $0x78] sm:$0xff]
    %v369 = vld [vmem:[%s5] sm:$0xff]
    %v370 = vld [vmem:[%s5 + $0x8] sm:$0xff]
    %v371 = vld [vmem:[%s5 + $0x10] sm:$0xff]
    %v372 = vld [vmem:[%s5 + $0x18] sm:$0xff]
    %v373 = vld [vmem:[%s5 + $0x20] sm:$0xff]
    %v374 = vld [vmem:[%s5 + $0x28] sm:$0xff]
    %v375 = vld [vmem:[%s5 + $0x30] sm:$0xff]
    %v376 = vld [vmem:[%s5 + $0x38] sm:$0xff]
    %v377 = vld [vmem:[%s5 + $0x40] sm:$0xff]
    %v378 = vld [vmem:[%s5 + $0x48] sm:$0xff]
    %v379 = vld [vmem:[%s5 + $0x50] sm:$0xff]
    %v380 = vld [vmem:[%s5 + $0x58] sm:$0xff]
    %v381 = vld [vmem:[%s5 + $0x60] sm:$0xff]
    %v382 = vld [vmem:[%s5 + $0x68] sm:$0xff]
    %v383 = vld [vmem:[%s5 + $0x70] sm:$0xff]
    %v384 = vld [vmem:[%s5 + $0x78] sm:$0xff]
    %v385 = vld [vmem:[%s9] sm:$0x7]
    %387 = vset.pattern.permute.xlu0 0
    %388 = vperm.xlu0 %387, %v337
    %v389 = vpop.permute.xlu0 %388
    %392 = vset.pattern.permute.xlu0 0
    %393 = vperm.xlu0 %392, %v338
    %v394 = vpop.permute.xlu0 %393
    %397 = vset.pattern.permute.xlu0 0
    %398 = vperm.xlu0 %397, %v339
    %v399 = vpop.permute.xlu0 %398
    %402 = vset.pattern.permute.xlu0 0
    %403 = vperm.xlu0 %402, %v340
    %v404 = vpop.permute.xlu0 %403
    %407 = vset.pattern.permute.xlu0 0
    %408 = vperm.xlu0 %407, %v341
    %v409 = vpop.permute.xlu0 %408
    %412 = vset.pattern.permute.xlu0 0
    %413 = vperm.xlu0 %412, %v342
    %v414 = vpop.permute.xlu0 %413
    %417 = vset.pattern.permute.xlu0 0
    %418 = vperm.xlu0 %417, %v343
    %v419 = vpop.permute.xlu0 %418
    %422 = vset.pattern.permute.xlu0 0
    %423 = vperm.xlu0 %422, %v344
    %v424 = vpop.permute.xlu0 %423
    %427 = vset.pattern.permute.xlu0 0
    %428 = vperm.xlu0 %427, %v345
    %v429 = vpop.permute.xlu0 %428
    %432 = vset.pattern.permute.xlu0 0
    %433 = vperm.xlu0 %432, %v346
    %v434 = vpop.permute.xlu0 %433
    %437 = vset.pattern.permute.xlu0 0
    %438 = vperm.xlu0 %437, %v347
    %v439 = vpop.permute.xlu0 %438
    %442 = vset.pattern.permute.xlu0 0
    %443 = vperm.xlu0 %442, %v348
    %v444 = vpop.permute.xlu0 %443
    %447 = vset.pattern.permute.xlu0 0
    %448 = vperm.xlu0 %447, %v349
    %v449 = vpop.permute.xlu0 %448
    %452 = vset.pattern.permute.xlu0 0
    %453 = vperm.xlu0 %452, %v350
    %v454 = vpop.permute.xlu0 %453
    %457 = vset.pattern.permute.xlu0 0
    %458 = vperm.xlu0 %457, %v351
    %v459 = vpop.permute.xlu0 %458
    %462 = vset.pattern.permute.xlu0 0
    %463 = vperm.xlu0 %462, %v352
    %v464 = vpop.permute.xlu0 %463
    %v466 = vlaneseq
    %v467 = vshrl.u32 %v466, 7
    %v468 = vsub.s32 1, %v467
    %v469 = vrot.slane %v385, %v468
    %v470 = vmul.f32 %v389, %v469
    %v471 = vmul.f32 %v394, %v469
    %v472 = vmul.f32 %v399, %v469
    %v473 = vmul.f32 %v404, %v469
    %v474 = vmul.f32 %v409, %v469
    %v475 = vmul.f32 %v414, %v469
    %v476 = vmul.f32 %v419, %v469
    %v477 = vmul.f32 %v424, %v469
    %v478 = vmul.f32 %v429, %v469
    %v479 = vmul.f32 %v434, %v469
    %v480 = vmul.f32 %v439, %v469
    %v481 = vmul.f32 %v444, %v469
    %v482 = vmul.f32 %v449, %v469
    %v483 = vmul.f32 %v454, %v469
    %v484 = vmul.f32 %v459, %v469
    %v485 = vmul.f32 %v464, %v469
    %v486 = vlaneseq
    %v487 = vshrl.u32 %v486, 7
    %v488 = vsub.s32 0, %v487
    %v489 = vrot.slane %v385, %v488
    %v490 = vmul.f32 %v389, %v489
    %v491 = vmul.f32 %v394, %v489
    %v492 = vmul.f32 %v399, %v489
    %v493 = vmul.f32 %v404, %v489
    %v494 = vmul.f32 %v409, %v489
    %v495 = vmul.f32 %v414, %v489
    %v496 = vmul.f32 %v419, %v489
    %v497 = vmul.f32 %v424, %v489
    %v498 = vmul.f32 %v429, %v489
    %v499 = vmul.f32 %v434, %v489
    %v500 = vmul.f32 %v439, %v489
    %v501 = vmul.f32 %v444, %v489
    %v502 = vmul.f32 %v449, %v489
    %v503 = vmul.f32 %v454, %v489
    %v504 = vmul.f32 %v459, %v489
    %v505 = vmul.f32 %v464, %v489
    %v506 = vrot.slane %v490, 7
    %v507 = vrot.slane %v491, 7
    %v508 = vrot.slane %v492, 7
    %v509 = vrot.slane %v493, 7
    %v510 = vrot.slane %v494, 7
    %v511 = vrot.slane %v495, 7
    %v512 = vrot.slane %v496, 7
    %v513 = vrot.slane %v497, 7
    %v514 = vrot.slane %v498, 7
    %v515 = vrot.slane %v499, 7
    %v516 = vrot.slane %v500, 7
    %v517 = vrot.slane %v501, 7
    %v518 = vrot.slane %v502, 7
    %v519 = vrot.slane %v503, 7
    %v520 = vrot.slane %v504, 7
    %v521 = vrot.slane %v505, 7
    %v522 = vlaneseq
    %v523 = vshrl.u32 %v522, 7
    %vm524 = vcmp.lt.s32.totalorder %v523, 1
    %v525 = vsel %vm524, %v520, %v521
    %v526 = vsel %vm524, %v519, %v520
    %v527 = vsel %vm524, %v518, %v519
    %v528 = vsel %vm524, %v517, %v518
    %v529 = vsel %vm524, %v516, %v517
    %v530 = vsel %vm524, %v515, %v516
    %v531 = vsel %vm524, %v514, %v515
    %v532 = vsel %vm524, %v513, %v514
    %v533 = vsel %vm524, %v512, %v513
    %v534 = vsel %vm524, %v511, %v512
    %v535 = vsel %vm524, %v510, %v511
    %v536 = vsel %vm524, %v509, %v510
    %v537 = vsel %vm524, %v508, %v509
    %v538 = vsel %vm524, %v507, %v508
    %v539 = vsel %vm524, %v506, %v507
    %v540 = vsel %vm524, %v521, %v506
    %542 = vset.pattern.permute.xlu0 0
    %543 = vperm.xlu0 %542, %v353
    %v544 = vpop.permute.xlu0 %543
    %547 = vset.pattern.permute.xlu0 0
    %548 = vperm.xlu0 %547, %v354
    %v549 = vpop.permute.xlu0 %548
    %552 = vset.pattern.permute.xlu0 0
    %553 = vperm.xlu0 %552, %v355
    %v554 = vpop.permute.xlu0 %553
    %557 = vset.pattern.permute.xlu0 0
    %558 = vperm.xlu0 %557, %v356
    %v559 = vpop.permute.xlu0 %558
    %562 = vset.pattern.permute.xlu0 0
    %563 = vperm.xlu0 %562, %v357
    %v564 = vpop.permute.xlu0 %563
    %567 = vset.pattern.permute.xlu0 0
    %568 = vperm.xlu0 %567, %v358
    %v569 = vpop.permute.xlu0 %568
    %572 = vset.pattern.permute.xlu0 0
    %573 = vperm.xlu0 %572, %v359
    %v574 = vpop.permute.xlu0 %573
    %577 = vset.pattern.permute.xlu0 0
    %578 = vperm.xlu0 %577, %v360
    %v579 = vpop.permute.xlu0 %578
    %582 = vset.pattern.permute.xlu0 0
    %583 = vperm.xlu0 %582, %v361
    %v584 = vpop.permute.xlu0 %583
    %587 = vset.pattern.permute.xlu0 0
    %588 = vperm.xlu0 %587, %v362
    %v589 = vpop.permute.xlu0 %588
    %592 = vset.pattern.permute.xlu0 0
    %593 = vperm.xlu0 %592, %v363
    %v594 = vpop.permute.xlu0 %593
    %597 = vset.pattern.permute.xlu0 0
    %598 = vperm.xlu0 %597, %v364
    %v599 = vpop.permute.xlu0 %598
    %602 = vset.pattern.permute.xlu0 0
    %603 = vperm.xlu0 %602, %v365
    %v604 = vpop.permute.xlu0 %603
    %607 = vset.pattern.permute.xlu0 0
    %608 = vperm.xlu0 %607, %v366
    %v609 = vpop.permute.xlu0 %608
    %612 = vset.pattern.permute.xlu0 0
    %613 = vperm.xlu0 %612, %v367
    %v614 = vpop.permute.xlu0 %613
    %617 = vset.pattern.permute.xlu0 0
    %618 = vperm.xlu0 %617, %v368
    %v619 = vpop.permute.xlu0 %618
    %v621 = vmul.f32 %v540, %v544
    %v622 = vmul.f32 %v539, %v549
    %v623 = vmul.f32 %v538, %v554
    %v624 = vmul.f32 %v537, %v559
    %v625 = vmul.f32 %v536, %v564
    %v626 = vmul.f32 %v535, %v569
    %v627 = vmul.f32 %v534, %v574
    %v628 = vmul.f32 %v533, %v579
    %v629 = vmul.f32 %v532, %v584
    %v630 = vmul.f32 %v531, %v589
    %v631 = vmul.f32 %v530, %v594
    %v632 = vmul.f32 %v529, %v599
    %v633 = vmul.f32 %v528, %v604
    %v634 = vmul.f32 %v527, %v609
    %v635 = vmul.f32 %v526, %v614
    %v636 = vmul.f32 %v525, %v619
    %v637 = vadd.f32 %v470, %v621
    %v638 = vadd.f32 %v471, %v622
    %v639 = vadd.f32 %v472, %v623
    %v640 = vadd.f32 %v473, %v624
    %v641 = vadd.f32 %v474, %v625
    %v642 = vadd.f32 %v475, %v626
    %v643 = vadd.f32 %v476, %v627
    %v644 = vadd.f32 %v477, %v628
    %v645 = vadd.f32 %v478, %v629
    %v646 = vadd.f32 %v479, %v630
    %v647 = vadd.f32 %v480, %v631
    %v648 = vadd.f32 %v481, %v632
    %v649 = vadd.f32 %v482, %v633
    %v650 = vadd.f32 %v483, %v634
    %v651 = vadd.f32 %v484, %v635
    %v652 = vadd.f32 %v485, %v636
    %v653 = vlaneseq
    %v654 = vshrl.u32 %v653, 7
    %v655 = vsub.s32 2, %v654
    %v656 = vrot.slane %v385, %v655
    %v657 = vmul.f32 %v389, %v656
    %v658 = vmul.f32 %v394, %v656
    %v659 = vmul.f32 %v399, %v656
    %v660 = vmul.f32 %v404, %v656
    %v661 = vmul.f32 %v409, %v656
    %v662 = vmul.f32 %v414, %v656
    %v663 = vmul.f32 %v419, %v656
    %v664 = vmul.f32 %v424, %v656
    %v665 = vmul.f32 %v429, %v656
    %v666 = vmul.f32 %v434, %v656
    %v667 = vmul.f32 %v439, %v656
    %v668 = vmul.f32 %v444, %v656
    %v669 = vmul.f32 %v449, %v656
    %v670 = vmul.f32 %v454, %v656
    %v671 = vmul.f32 %v459, %v656
    %v672 = vmul.f32 %v464, %v656
    %v673 = vrot.slane %v657, 1
    %v674 = vrot.slane %v658, 1
    %v675 = vrot.slane %v659, 1
    %v676 = vrot.slane %v660, 1
    %v677 = vrot.slane %v661, 1
    %v678 = vrot.slane %v662, 1
    %v679 = vrot.slane %v663, 1
    %v680 = vrot.slane %v664, 1
    %v681 = vrot.slane %v665, 1
    %v682 = vrot.slane %v666, 1
    %v683 = vrot.slane %v667, 1
    %v684 = vrot.slane %v668, 1
    %v685 = vrot.slane %v669, 1
    %v686 = vrot.slane %v670, 1
    %v687 = vrot.slane %v671, 1
    %v688 = vrot.slane %v672, 1
    %vm689 = vcmp.lt.s32.totalorder %v523, 7
    %v690 = vsel %vm689, %v687, %v688
    %v691 = vsel %vm689, %v686, %v687
    %v692 = vsel %vm689, %v685, %v686
    %v693 = vsel %vm689, %v684, %v685
    %v694 = vsel %vm689, %v683, %v684
    %v695 = vsel %vm689, %v682, %v683
    %v696 = vsel %vm689, %v681, %v682
    %v697 = vsel %vm689, %v680, %v681
    %v698 = vsel %vm689, %v679, %v680
    %v699 = vsel %vm689, %v678, %v679
    %v700 = vsel %vm689, %v677, %v678
    %v701 = vsel %vm689, %v676, %v677
    %v702 = vsel %vm689, %v675, %v676
    %v703 = vsel %vm689, %v674, %v675
    %v704 = vsel %vm689, %v673, %v674
    %v705 = vsel %vm689, %v688, %v673
    %707 = vset.pattern.permute.xlu0 0
    %708 = vperm.xlu0 %707, %v369
    %v709 = vpop.permute.xlu0 %708
    %712 = vset.pattern.permute.xlu0 0
    %713 = vperm.xlu0 %712, %v370
    %v714 = vpop.permute.xlu0 %713
    %717 = vset.pattern.permute.xlu0 0
    %718 = vperm.xlu0 %717, %v371
    %v719 = vpop.permute.xlu0 %718
    %722 = vset.pattern.permute.xlu0 0
    %723 = vperm.xlu0 %722, %v372
    %v724 = vpop.permute.xlu0 %723
    %727 = vset.pattern.permute.xlu0 0
    %728 = vperm.xlu0 %727, %v373
    %v729 = vpop.permute.xlu0 %728
    %732 = vset.pattern.permute.xlu0 0
    %733 = vperm.xlu0 %732, %v374
    %v734 = vpop.permute.xlu0 %733
    %737 = vset.pattern.permute.xlu0 0
    %738 = vperm.xlu0 %737, %v375
    %v739 = vpop.permute.xlu0 %738
    %742 = vset.pattern.permute.xlu0 0
    %743 = vperm.xlu0 %742, %v376
    %v744 = vpop.permute.xlu0 %743
    %747 = vset.pattern.permute.xlu0 0
    %748 = vperm.xlu0 %747, %v377
    %v749 = vpop.permute.xlu0 %748
    %752 = vset.pattern.permute.xlu0 0
    %753 = vperm.xlu0 %752, %v378
    %v754 = vpop.permute.xlu0 %753
    %757 = vset.pattern.permute.xlu0 0
    %758 = vperm.xlu0 %757, %v379
    %v759 = vpop.permute.xlu0 %758
    %762 = vset.pattern.permute.xlu0 0
    %763 = vperm.xlu0 %762, %v380
    %v764 = vpop.permute.xlu0 %763
    %767 = vset.pattern.permute.xlu0 0
    %768 = vperm.xlu0 %767, %v381
    %v769 = vpop.permute.xlu0 %768
    %772 = vset.pattern.permute.xlu0 0
    %773 = vperm.xlu0 %772, %v382
    %v774 = vpop.permute.xlu0 %773
    %777 = vset.pattern.permute.xlu0 0
    %778 = vperm.xlu0 %777, %v383
    %v779 = vpop.permute.xlu0 %778
    %782 = vset.pattern.permute.xlu0 0
    %783 = vperm.xlu0 %782, %v384
    %v784 = vpop.permute.xlu0 %783
    %v786 = vmul.f32 %v704, %v709
    %v787 = vmul.f32 %v703, %v714
    %v788 = vmul.f32 %v702, %v719
    %v789 = vmul.f32 %v701, %v724
    %v790 = vmul.f32 %v700, %v729
    %v791 = vmul.f32 %v699, %v734
    %v792 = vmul.f32 %v698, %v739
    %v793 = vmul.f32 %v697, %v744
    %v794 = vmul.f32 %v696, %v749
    %v795 = vmul.f32 %v695, %v754
    %v796 = vmul.f32 %v694, %v759
    %v797 = vmul.f32 %v693, %v764
    %v798 = vmul.f32 %v692, %v769
    %v799 = vmul.f32 %v691, %v774
    %v800 = vmul.f32 %v690, %v779
    %v801 = vmul.f32 %v705, %v784
    %v802 = vadd.f32 %v637, %v786
    %v803 = vadd.f32 %v638, %v787
    %v804 = vadd.f32 %v639, %v788
    %v805 = vadd.f32 %v640, %v789
    %v806 = vadd.f32 %v641, %v790
    %v807 = vadd.f32 %v642, %v791
    %v808 = vadd.f32 %v643, %v792
    %v809 = vadd.f32 %v644, %v793
    %v810 = vadd.f32 %v645, %v794
    %v811 = vadd.f32 %v646, %v795
    %v812 = vadd.f32 %v647, %v796
    %v813 = vadd.f32 %v648, %v797
    %v814 = vadd.f32 %v649, %v798
    %v815 = vadd.f32 %v650, %v799
    %v816 = vadd.f32 %v651, %v800
    %v817 = vadd.f32 %v652, %v801
    %v818 = vld [vmem:[#allocation5] sm:$0x1]
    %v820 = vlaneseq
    %v821 = vshrl.u32 %v820, 7
    %v822 = vsub.s32 0, %v821
    %v823 = vrot.slane %v818, %v822
    %v825 = vadd.f32 %v802, %v823
    %v826 = vadd.f32 %v803, %v823
    %v827 = vadd.f32 %v804, %v823
    %v828 = vadd.f32 %v805, %v823
    %v829 = vadd.f32 %v806, %v823
    %v830 = vadd.f32 %v807, %v823
    %v831 = vadd.f32 %v808, %v823
    %v832 = vadd.f32 %v809, %v823
    %v833 = vadd.f32 %v810, %v823
    %v834 = vadd.f32 %v811, %v823
    %v835 = vadd.f32 %v812, %v823
    %v836 = vadd.f32 %v813, %v823
    %v837 = vadd.f32 %v814, %v823
    %v838 = vadd.f32 %v815, %v823
    %v839 = vadd.f32 %v816, %v823
    %v840 = vadd.f32 %v817, %v823
    %v841 = vmax.f32 %v825, 0.0
    %v842 = vmax.f32 %v826, 0.0
    %v843 = vmax.f32 %v827, 0.0
    %v844 = vmax.f32 %v828, 0.0
    %v845 = vmax.f32 %v829, 0.0
    %v846 = vmax.f32 %v830, 0.0
    %v847 = vmax.f32 %v831, 0.0
    %v848 = vmax.f32 %v832, 0.0
    %v849 = vmax.f32 %v833, 0.0
    %v850 = vmax.f32 %v834, 0.0
    %v851 = vmax.f32 %v835, 0.0
    %v852 = vmax.f32 %v836, 0.0
    %v853 = vmax.f32 %v837, 0.0
    %v854 = vmax.f32 %v838, 0.0
    %v855 = vmax.f32 %v839, 0.0
    %v856 = vmax.f32 %v840, 0.0
    %v857 = vrot.slane %v841, 7
    %v858 = vrot.slane %v842, 7
    %v859 = vrot.slane %v843, 7
    %v860 = vrot.slane %v844, 7
    %v861 = vrot.slane %v845, 7
    %v862 = vrot.slane %v846, 7
    %v863 = vrot.slane %v847, 7
    %v864 = vrot.slane %v848, 7
    %v865 = vrot.slane %v849, 7
    %v866 = vrot.slane %v850, 7
    %v867 = vrot.slane %v851, 7
    %v868 = vrot.slane %v852, 7
    %v869 = vrot.slane %v853, 7
    %v870 = vrot.slane %v854, 7
    %v871 = vrot.slane %v855, 7
    %v872 = vrot.slane %v856, 7
    %v873 = vsel %vm524, %v871, %v872
    %v874 = vsel %vm524, %v870, %v871
    %v875 = vsel %vm524, %v869, %v870
    %v876 = vsel %vm524, %v868, %v869
    %v877 = vsel %vm524, %v867, %v868
    %v878 = vsel %vm524, %v866, %v867
    %v879 = vsel %vm524, %v865, %v866
    %v880 = vsel %vm524, %v864, %v865
    %v881 = vsel %vm524, %v863, %v864
    %v882 = vsel %vm524, %v862, %v863
    %v883 = vsel %vm524, %v861, %v862
    %v884 = vsel %vm524, %v860, %v861
    %v885 = vsel %vm524, %v859, %v860
    %v886 = vsel %vm524, %v858, %v859
    %v887 = vsel %vm524, %v857, %v858
    %v888 = vsel %vm524, %v872, %v857
    %v889 = vmul.f32 %v888, %v544
    %v890 = vmul.f32 %v887, %v549
    %v891 = vmul.f32 %v886, %v554
    %v892 = vmul.f32 %v885, %v559
    %v893 = vmul.f32 %v884, %v564
    %v894 = vmul.f32 %v883, %v569
    %v895 = vmul.f32 %v882, %v574
    %v896 = vmul.f32 %v881, %v579
    %v897 = vmul.f32 %v880, %v584
    %v898 = vmul.f32 %v879, %v589
    %v899 = vmul.f32 %v878, %v594
    %v900 = vmul.f32 %v877, %v599
    %v901 = vmul.f32 %v876, %v604
    %v902 = vmul.f32 %v875, %v609
    %v903 = vmul.f32 %v874, %v614
    %v904 = vmul.f32 %v873, %v619
    %v905 = vrot.slane %v841, 1
    %v906 = vrot.slane %v842, 1
    %v907 = vrot.slane %v843, 1
    %v908 = vrot.slane %v844, 1
    %v909 = vrot.slane %v845, 1
    %v910 = vrot.slane %v846, 1
    %v911 = vrot.slane %v847, 1
    %v912 = vrot.slane %v848, 1
    %v913 = vrot.slane %v849, 1
    %v914 = vrot.slane %v850, 1
    %v915 = vrot.slane %v851, 1
    %v916 = vrot.slane %v852, 1
    %v917 = vrot.slane %v853, 1
    %v918 = vrot.slane %v854, 1
    %v919 = vrot.slane %v855, 1
    %v920 = vrot.slane %v856, 1
    %v921 = vsel %vm689, %v919, %v920
    %v922 = vsel %vm689, %v918, %v919
    %v923 = vsel %vm689, %v917, %v918
    %v924 = vsel %vm689, %v916, %v917
    %v925 = vsel %vm689, %v915, %v916
    %v926 = vsel %vm689, %v914, %v915
    %v927 = vsel %vm689, %v913, %v914
    %v928 = vsel %vm689, %v912, %v913
    %v929 = vsel %vm689, %v911, %v912
    %v930 = vsel %vm689, %v910, %v911
    %v931 = vsel %vm689, %v909, %v910
    %v932 = vsel %vm689, %v908, %v909
    %v933 = vsel %vm689, %v907, %v908
    %v934 = vsel %vm689, %v906, %v907
    %v935 = vsel %vm689, %v905, %v906
    %v936 = vsel %vm689, %v920, %v905
    %v937 = vmul.f32 %v935, %v709
    %v938 = vmul.f32 %v934, %v714
    %v939 = vmul.f32 %v933, %v719
    %v940 = vmul.f32 %v932, %v724
    %v941 = vmul.f32 %v931, %v729
    %v942 = vmul.f32 %v930, %v734
    %v943 = vmul.f32 %v929, %v739
    %v944 = vmul.f32 %v928, %v744
    %v945 = vmul.f32 %v927, %v749
    %v946 = vmul.f32 %v926, %v754
    %v947 = vmul.f32 %v925, %v759
    %v948 = vmul.f32 %v924, %v764
    %v949 = vmul.f32 %v923, %v769
    %v950 = vmul.f32 %v922, %v774
    %v951 = vmul.f32 %v921, %v779
    %v952 = vmul.f32 %v936, %v784
    %v953 = vpack.c.bf16 %v890, %v889
    %v954 = vpack.c.bf16 %v842, %v841
    %v955 = vpack.c.bf16 %v938, %v937
    %v956 = vpack.c.bf16 %v892, %v891
    %v957 = vpack.c.bf16 %v844, %v843
    %v958 = vpack.c.bf16 %v940, %v939
    %v959 = vpack.c.bf16 %v894, %v893
    %v960 = vpack.c.bf16 %v846, %v845
    %v961 = vpack.c.bf16 %v942, %v941
    %v962 = vpack.c.bf16 %v896, %v895
    %v963 = vpack.c.bf16 %v848, %v847
    %v964 = vpack.c.bf16 %v944, %v943
    %v965 = vpack.c.bf16 %v898, %v897
    %v966 = vpack.c.bf16 %v850, %v849
    %v967 = vpack.c.bf16 %v946, %v945
    %v968 = vpack.c.bf16 %v900, %v899
    %v969 = vpack.c.bf16 %v852, %v851
    %v970 = vpack.c.bf16 %v948, %v947
    %v971 = vpack.c.bf16 %v902, %v901
    %v972 = vpack.c.bf16 %v854, %v853
    %v973 = vpack.c.bf16 %v950, %v949
    %v974 = vpack.c.bf16 %v904, %v903
    %v975 = vpack.c.bf16 %v856, %v855
    %v976 = vpack.c.bf16 %v952, %v951
    %v977 = vld [vmem:[%s13] sm:$0xf]
    %v978 = vld [vmem:[%s13 + $0x4] sm:$0xf]
    %v979 = vld [vmem:[%s13 + $0x8] sm:$0xf]
    %v980 = vld [vmem:[%s13 + $0xc] sm:$0xf]
    %v981 = vld [vmem:[%s13 + $0x10] sm:$0xf]
    %v982 = vld [vmem:[%s13 + $0x14] sm:$0xf]
    %v983 = vld [vmem:[%s13 + $0x18] sm:$0xf]
    %v984 = vld [vmem:[%s13 + $0x1c] sm:$0xf]
    %v985 = vld [vmem:[%s13 + $0x20] sm:$0xf]
    %v986 = vld [vmem:[%s13 + $0x24] sm:$0xf]
    %v987 = vld [vmem:[%s13 + $0x28] sm:$0xf]
    %v988 = vld [vmem:[%s13 + $0x2c] sm:$0xf]
    %v989 = vld [vmem:[%s13 + $0x30] sm:$0xf]
    %v990 = vld [vmem:[%s13 + $0x34] sm:$0xf]
    %v991 = vld [vmem:[%s13 + $0x38] sm:$0xf]
    %v992 = vld [vmem:[%s13 + $0x3c] sm:$0xf]
    %v993 = vld [vmem:[%s13 + $0x40] sm:$0xf]
    %v994 = vld [vmem:[%s13 + $0x44] sm:$0xf]
    %v995 = vld [vmem:[%s13 + $0x48] sm:$0xf]
    %v996 = vld [vmem:[%s13 + $0x4c] sm:$0xf]
    %v997 = vld [vmem:[%s13 + $0x50] sm:$0xf]
    %v998 = vld [vmem:[%s13 + $0x54] sm:$0xf]
    %v999 = vld [vmem:[%s13 + $0x58] sm:$0xf]
    %v1000 = vld [vmem:[%s13 + $0x5c] sm:$0xf]
    %v1001 = vld [vmem:[%s13 + $0x60] sm:$0xf]
    %v1002 = vld [vmem:[%s13 + $0x64] sm:$0xf]
    %v1003 = vld [vmem:[%s13 + $0x68] sm:$0xf]
    %v1004 = vld [vmem:[%s13 + $0x6c] sm:$0xf]
    %v1005 = vld [vmem:[%s13 + $0x70] sm:$0xf]
    %v1006 = vld [vmem:[%s13 + $0x74] sm:$0xf]
    %v1007 = vld [vmem:[%s13 + $0x78] sm:$0xf]
    %v1008 = vld [vmem:[%s13 + $0x7c] sm:$0xf]
    %v1009 = vld [vmem:[%s13 + $0x80] sm:$0xf]
    %v1010 = vld [vmem:[%s13 + $0x84] sm:$0xf]
    %v1011 = vld [vmem:[%s13 + $0x88] sm:$0xf]
    %v1012 = vld [vmem:[%s13 + $0x8c] sm:$0xf]
    %v1013 = vld [vmem:[%s13 + $0x90] sm:$0xf]
    %v1014 = vld [vmem:[%s13 + $0x94] sm:$0xf]
    %v1015 = vld [vmem:[%s13 + $0x98] sm:$0xf]
    %v1016 = vld [vmem:[%s13 + $0x9c] sm:$0xf]
    %v1017 = vld [vmem:[%s13 + $0xa0] sm:$0xf]
    %v1018 = vld [vmem:[%s13 + $0xa4] sm:$0xf]
    %v1019 = vld [vmem:[%s13 + $0xa8] sm:$0xf]
    %v1020 = vld [vmem:[%s13 + $0xac] sm:$0xf]
    %v1021 = vld [vmem:[%s13 + $0xb0] sm:$0xf]
    %v1022 = vld [vmem:[%s13 + $0xb4] sm:$0xf]
    %v1023 = vld [vmem:[%s13 + $0xb8] sm:$0xf]
    %v1024 = vld [vmem:[%s13 + $0xbc] sm:$0xf]
    %v1025 = vld [vmem:[#allocation7] sm:$0x1]
    %v1027 = vlaneseq
    %v1028 = vshrl.u32 %v1027, 7
    %v1029 = vsub.s32 0, %v1028
    %v1030 = vrot.slane %v1025, %v1029
    %v1080 = vunpack.c.l.b16 %v977
    %v1081 = vunpack.c.l.b16 %v978
    %v1082 = vunpack.c.l.b16 %v979
    %v1083 = vunpack.c.l.b16 %v980
    %v1084 = vunpack.c.l.b16 %v981
    %v1085 = vunpack.c.l.b16 %v982
    %v1086 = vunpack.c.l.b16 %v983
    %v1087 = vunpack.c.l.b16 %v984
    %v1088 = vunpack.c.l.b16 %v985
    %v1089 = vunpack.c.l.b16 %v986
    %v1090 = vunpack.c.l.b16 %v987
    %v1091 = vunpack.c.l.b16 %v988
    %v1092 = vunpack.c.l.b16 %v989
    %v1093 = vunpack.c.l.b16 %v990
    %v1094 = vunpack.c.l.b16 %v991
    %v1095 = vunpack.c.l.b16 %v992
    %v1096 = vunpack.c.l.b16 %v993
    %v1097 = vunpack.c.l.b16 %v994
    %v1098 = vunpack.c.l.b16 %v995
    %v1099 = vunpack.c.l.b16 %v996
    %v1100 = vunpack.c.l.b16 %v997
    %v1101 = vunpack.c.l.b16 %v998
    %v1102 = vunpack.c.l.b16 %v999
    %v1103 = vunpack.c.l.b16 %v1000
    %v1104 = vunpack.c.l.b16 %v1001
    %v1105 = vunpack.c.l.b16 %v1002
    %v1106 = vunpack.c.l.b16 %v1003
    %v1107 = vunpack.c.l.b16 %v1004
    %v1108 = vunpack.c.l.b16 %v1005
    %v1109 = vunpack.c.l.b16 %v1006
    %v1110 = vunpack.c.l.b16 %v1007
    %v1111 = vunpack.c.l.b16 %v1008
    %v1112 = vunpack.c.l.b16 %v1009
    %v1113 = vunpack.c.l.b16 %v1010
    %v1114 = vunpack.c.l.b16 %v1011
    %v1115 = vunpack.c.l.b16 %v1012
    %v1116 = vunpack.c.l.b16 %v1013
    %v1117 = vunpack.c.l.b16 %v1014
    %v1118 = vunpack.c.l.b16 %v1015
    %v1119 = vunpack.c.l.b16 %v1016
    %v1120 = vunpack.c.l.b16 %v1017
    %v1121 = vunpack.c.l.b16 %v1018
    %v1122 = vunpack.c.l.b16 %v1019
    %v1123 = vunpack.c.l.b16 %v1020
    %v1124 = vunpack.c.l.b16 %v1021
    %v1125 = vunpack.c.l.b16 %v1022
    %v1126 = vunpack.c.l.b16 %v1023
    %v1127 = vunpack.c.l.b16 %v1024
    %v1128 = vpack.c.b16 %v1081, %v1080
    %v1129 = vpack.c.b16 %v1083, %v1082
    %v1130 = vpack.c.b16 %v1085, %v1084
    %v1131 = vpack.c.b16 %v1087, %v1086
    %v1132 = vpack.c.b16 %v1089, %v1088
    %v1133 = vpack.c.b16 %v1091, %v1090
    %v1134 = vpack.c.b16 %v1093, %v1092
    %v1135 = vpack.c.b16 %v1095, %v1094
    %v1136 = vpack.c.b16 %v1097, %v1096
    %v1137 = vpack.c.b16 %v1099, %v1098
    %v1138 = vpack.c.b16 %v1101, %v1100
    %v1139 = vpack.c.b16 %v1103, %v1102
    %v1140 = vpack.c.b16 %v1105, %v1104
    %v1141 = vpack.c.b16 %v1107, %v1106
    %v1142 = vpack.c.b16 %v1109, %v1108
    %v1143 = vpack.c.b16 %v1111, %v1110
    %v1144 = vpack.c.b16 %v1113, %v1112
    %v1145 = vpack.c.b16 %v1115, %v1114
    %v1146 = vpack.c.b16 %v1117, %v1116
    %v1147 = vpack.c.b16 %v1119, %v1118
    %v1148 = vpack.c.b16 %v1121, %v1120
    %v1149 = vpack.c.b16 %v1123, %v1122
    %v1150 = vpack.c.b16 %v1125, %v1124
    %v1151 = vpack.c.b16 %v1127, %v1126
    %1176 = vmatprep.subr.bf16.mxu0 0
    %1177 = vmatpush1.bf16.msra.mxu0 %v1128
    %1178 = vmatprep.subr.bf16.mxu0 0
    %1179 = vmatpush1.bf16.msra.mxu0 %v1129
    %1180 = vmatprep.subr.bf16.mxu0 0
    %1181 = vmatpush1.bf16.msra.mxu0 %v1130
    %1182 = vmatprep.subr.bf16.mxu0 0
    %1183 = vmatpush1.bf16.msra.mxu0 %v1131
    %1184 = vmatprep.subr.bf16.mxu0 0
    %1185 = vmatpush1.bf16.msra.mxu0 %v1132
    %1186 = vmatprep.subr.bf16.mxu0 0
    %1187 = vmatpush1.bf16.msra.mxu0 %v1133
    %1188 = vmatprep.subr.bf16.mxu0 0
    %1189 = vmatpush1.bf16.msra.mxu0 %v1134
    %1190 = vmatprep.subr.bf16.mxu0 0
    %1191 = vmatpush1.bf16.msra.mxu0 %v1135
    %1192 = vmatprep.subr.bf16.mxu0 0
    %1193 = vmatpush1.bf16.msra.mxu0 %v1136
    %1194 = vmatprep.subr.bf16.mxu0 0
    %1195 = vmatpush1.bf16.msra.mxu0 %v1137
    %1196 = vmatprep.subr.bf16.mxu0 0
    %1197 = vmatpush1.bf16.msra.mxu0 %v1138
    %1198 = vmatprep.subr.bf16.mxu0 0
    %1199 = vmatpush1.bf16.msra.mxu0 %v1139
    %1200 = vmatprep.subr.bf16.mxu0 0
    %1201 = vmatpush1.bf16.msra.mxu0 %v1140
    %1202 = vmatprep.subr.bf16.mxu0 0
    %1203 = vmatpush1.bf16.msra.mxu0 %v1141
    %1204 = vmatprep.subr.bf16.mxu0 0
    %1205 = vmatpush1.bf16.msra.mxu0 %v1142
    %1206 = vmatprep.subr.bf16.mxu0 0
    %1207 = vmatpush1.bf16.msra.mxu0 %v1143
    %1208 = vmatprep.mubr.bf16.mxu0 %v954
    %1209 = vmatmul.mubr.bf16.gmra.mrb[0].mxu0 %v953
    %v1210 = vpop.f32.mrb[0].mxu0
    %v1211 = vadd.f32 %v1030, %v1210
    %v1212 = vpop.f32.mrb[0].mxu0
    %v1213 = vpop.f32.mrb[0].mxu0
    %v1214 = vadd.f32 %v1030, %v1213
    %v1215 = vpop.f32.mrb[0].mxu0
    %1216 = vmatprep.mubr.bf16.mxu0 %v957
    %1217 = vmatmul.mubr.bf16.gmra.mrb[0].mxu0 %v956
    %v1218 = vpop.f32.mrb[0].mxu0
    %v1219 = vadd.f32 %v1030, %v1218
    %v1220 = vpop.f32.mrb[0].mxu0
    %v1221 = vpop.f32.mrb[0].mxu0
    %v1222 = vadd.f32 %v1030, %v1221
    %v1223 = vpop.f32.mrb[0].mxu0
    %1224 = vmatprep.mubr.bf16.mxu0 %v960
    %1225 = vmatmul.mubr.bf16.gmra.mrb[0].mxu0 %v959
    %v1226 = vpop.f32.mrb[0].mxu0
    %v1227 = vadd.f32 %v1030, %v1226
    %v1228 = vpop.f32.mrb[0].mxu0
    %v1229 = vpop.f32.mrb[0].mxu0
    %v1230 = vadd.f32 %v1030, %v1229
    %v1231 = vpop.f32.mrb[0].mxu0
    %1232 = vmatprep.mubr.bf16.mxu0 %v963
    %1233 = vmatmul.mubr.bf16.gmra.mrb[0].mxu0 %v962
    %v1234 = vpop.f32.mrb[0].mxu0
    %v1235 = vadd.f32 %v1030, %v1234
    %v1236 = vpop.f32.mrb[0].mxu0
    %v1237 = vpop.f32.mrb[0].mxu0
    %v1238 = vadd.f32 %v1030, %v1237
    %v1239 = vpop.f32.mrb[0].mxu0
    %1240 = vmatprep.mubr.bf16.mxu0 %v966
    %1241 = vmatmul.mubr.bf16.gmra.mrb[0].mxu0 %v965
    %v1242 = vpop.f32.mrb[0].mxu0
    %v1243 = vadd.f32 %v1030, %v1242
    %v1244 = vpop.f32.mrb[0].mxu0
    %v1245 = vpop.f32.mrb[0].mxu0
    %v1246 = vadd.f32 %v1030, %v1245
    %v1247 = vpop.f32.mrb[0].mxu0
    %1248 = vmatprep.mubr.bf16.mxu0 %v969
    %1249 = vmatmul.mubr.bf16.gmra.mrb[0].mxu0 %v968
    %v1250 = vpop.f32.mrb[0].mxu0
    %v1251 = vadd.f32 %v1030, %v1250
    %v1252 = vpop.f32.mrb[0].mxu0
    %v1253 = vpop.f32.mrb[0].mxu0
    %v1254 = vadd.f32 %v1030, %v1253
    %v1255 = vpop.f32.mrb[0].mxu0
    %1256 = vmatprep.mubr.bf16.mxu0 %v972
    %1257 = vmatmul.mubr.bf16.gmra.mrb[0].mxu0 %v971
    %v1258 = vpop.f32.mrb[0].mxu0
    %v1259 = vadd.f32 %v1030, %v1258
    %v1260 = vpop.f32.mrb[0].mxu0
    %v1261 = vpop.f32.mrb[0].mxu0
    %v1262 = vadd.f32 %v1030, %v1261
    %v1263 = vpop.f32.mrb[0].mxu0
    %1264 = vmatprep.mubr.bf16.mxu0 %v975
    %1265 = vmatmul.mubr.bf16.gmra.mrb[0].mxu0 %v974
    %v1266 = vpop.f32.mrb[0].mxu0
    %v1267 = vadd.f32 %v1030, %v1266
    %v1268 = vpop.f32.mrb[0].mxu0
    %v1269 = vpop.f32.mrb[0].mxu0
    %v1270 = vadd.f32 %v1030, %v1269
    %v1271 = vpop.f32.mrb[0].mxu0
    %1272 = vdwg.mxu0
    %1273 = vmatprep.subr.bf16.mxu0 0
    %1274 = vmatpush1.bf16.msra.mxu0 %v1144
    %1275 = vmatprep.subr.bf16.mxu0 0
    %1276 = vmatpush1.bf16.msra.mxu0 %v1145
    %1277 = vmatprep.subr.bf16.mxu0 0
    %1278 = vmatpush1.bf16.msra.mxu0 %v1146
    %1279 = vmatprep.subr.bf16.mxu0 0
    %1280 = vmatpush1.bf16.msra.mxu0 %v1147
    %1281 = vmatprep.subr.bf16.mxu0 0
    %1282 = vmatpush1.bf16.msra.mxu0 %v1148
    %1283 = vmatprep.subr.bf16.mxu0 0
    %1284 = vmatpush1.bf16.msra.mxu0 %v1149
    %1285 = vmatprep.subr.bf16.mxu0 0
    %1286 = vmatpush1.bf16.msra.mxu0 %v1150
    %1287 = vmatprep.subr.bf16.mxu0 0
    %1288 = vmatpush1.bf16.msra.mxu0 %v1151
    %1289 = vmatprep.subr.bf16.mxu0 0
    %1290 = vmatpush1.bf16.msra.mxu0 0
    %1291 = vmatprep.subr.bf16.mxu0 0
    %1292 = vmatpush1.bf16.msra.mxu0 0
    %1293 = vmatprep.subr.bf16.mxu0 0
    %1294 = vmatpush1.bf16.msra.mxu0 0
    %1295 = vmatprep.subr.bf16.mxu0 0
    %1296 = vmatpush1.bf16.msra.mxu0 0
    %1297 = vmatprep.subr.bf16.mxu0 0
    %1298 = vmatpush1.bf16.msra.mxu0 0
    %1299 = vmatprep.subr.bf16.mxu0 0
    %1300 = vmatpush1.bf16.msra.mxu0 0
    %1301 = vmatprep.subr.bf16.mxu0 0
    %1302 = vmatpush1.bf16.msra.mxu0 0
    %1303 = vmatprep.subr.bf16.mxu0 0
    %1304 = vmatpush1.bf16.msra.mxu0 0
    %1305 = vmatprep.mubr.bf16.mxu0 0
    %1306 = vmatmul.mubr.bf16.gmra.mrb[0].mxu0 %v955
    %v1307 = vpop.f32.mrb[0].mxu0
    %v1308 = vadd.f32 %v1211, %v1307
    %v1309 = vpop.f32.mrb[0].mxu0
    %v1310 = vpop.f32.mrb[0].mxu0
    %v1311 = vadd.f32 %v1214, %v1310
    %v1312 = vpop.f32.mrb[0].mxu0
    %1313 = vmatprep.mubr.bf16.mxu0 0
    %1314 = vmatmul.mubr.bf16.gmra.mrb[0].mxu0 %v958
    %v1315 = vpop.f32.mrb[0].mxu0
    %v1316 = vadd.f32 %v1219, %v1315
    %v1317 = vpop.f32.mrb[0].mxu0
    %v1318 = vpop.f32.mrb[0].mxu0
    %v1319 = vadd.f32 %v1222, %v1318
    %v1320 = vpop.f32.mrb[0].mxu0
    %1321 = vmatprep.mubr.bf16.mxu0 0
    %1322 = vmatmul.mubr.bf16.gmra.mrb[0].mxu0 %v961
    %v1323 = vpop.f32.mrb[0].mxu0
    %v1324 = vadd.f32 %v1227, %v1323
    %v1325 = vpop.f32.mrb[0].mxu0
    %v1326 = vpop.f32.mrb[0].mxu0
    %v1327 = vadd.f32 %v1230, %v1326
    %v1328 = vpop.f32.mrb[0].mxu0
    %1329 = vmatprep.mubr.bf16.mxu0 0
    %1330 = vmatmul.mubr.bf16.gmra.mrb[0].mxu0 %v964
    %v1331 = vpop.f32.mrb[0].mxu0
    %v1332 = vadd.f32 %v1235, %v1331
    %v1333 = vpop.f32.mrb[0].mxu0
    %v1334 = vpop.f32.mrb[0].mxu0
    %v1335 = vadd.f32 %v1238, %v1334
    %v1336 = vpop.f32.mrb[0].mxu0
    %1337 = vmatprep.mubr.bf16.mxu0 0
    %1338 = vmatmul.mubr.bf16.gmra.mrb[0].mxu0 %v967
    %v1339 = vpop.f32.mrb[0].mxu0
    %v1340 = vadd.f32 %v1243, %v1339
    %v1341 = vpop.f32.mrb[0].mxu0
    %v1342 = vpop.f32.mrb[0].mxu0
    %v1343 = vadd.f32 %v1246, %v1342
    %v1344 = vpop.f32.mrb[0].mxu0
    %1345 = vmatprep.mubr.bf16.mxu0 0
    %1346 = vmatmul.mubr.bf16.gmra.mrb[0].mxu0 %v970
    %v1347 = vpop.f32.mrb[0].mxu0
    %v1348 = vadd.f32 %v1251, %v1347
    %v1349 = vpop.f32.mrb[0].mxu0
    %v1350 = vpop.f32.mrb[0].mxu0
    %v1351 = vadd.f32 %v1254, %v1350
    %v1352 = vpop.f32.mrb[0].mxu0
    %1353 = vmatprep.mubr.bf16.mxu0 0
    %1354 = vmatmul.mubr.bf16.gmra.mrb[0].mxu0 %v973
    %v1355 = vpop.f32.mrb[0].mxu0
    %v1356 = vadd.f32 %v1259, %v1355
    %v1357 = vpop.f32.mrb[0].mxu0
    %v1358 = vpop.f32.mrb[0].mxu0
    %v1359 = vadd.f32 %v1262, %v1358
    %v1360 = vpop.f32.mrb[0].mxu0
    %1361 = vmatprep.mubr.bf16.mxu0 0
    %1362 = vmatmul.mubr.bf16.gmra.mrb[0].mxu0 %v976
    %v1363 = vpop.f32.mrb[0].mxu0
    %v1364 = vadd.f32 %v1267, %v1363
    %v1365 = vpop.f32.mrb[0].mxu0
    %v1366 = vpop.f32.mrb[0].mxu0
    %v1367 = vadd.f32 %v1270, %v1366
    %v1368 = vpop.f32.mrb[0].mxu0
    %1369 = vdwg.mxu0
    %v1370 = vmax.f32 %v1308, 0.0
    %v1371 = vmax.f32 %v1311, 0.0
    %v1372 = vmax.f32 %v1316, 0.0
    %v1373 = vmax.f32 %v1319, 0.0
    %v1374 = vmax.f32 %v1324, 0.0
    %v1375 = vmax.f32 %v1327, 0.0
    %v1376 = vmax.f32 %v1332, 0.0
    %v1377 = vmax.f32 %v1335, 0.0
    %v1378 = vmax.f32 %v1340, 0.0
    %v1379 = vmax.f32 %v1343, 0.0
    %v1380 = vmax.f32 %v1348, 0.0
    %v1381 = vmax.f32 %v1351, 0.0
    %v1382 = vmax.f32 %v1356, 0.0
    %v1383 = vmax.f32 %v1359, 0.0
    %v1384 = vmax.f32 %v1364, 0.0
    %v1385 = vmax.f32 %v1367, 0.0
    %1386 = vst [vmem:[#allocation2] sm:$0xff] %v1370
    %1387 = vst [vmem:[#allocation2 + $0x8] sm:$0xff] %v1371
    %1388 = vst [vmem:[#allocation2 + $0x10] sm:$0xff] %v1372
    %1389 = vst [vmem:[#allocation2 + $0x18] sm:$0xff] %v1373
    %1390 = vst [vmem:[#allocation2 + $0x20] sm:$0xff] %v1374
    %1391 = vst [vmem:[#allocation2 + $0x28] sm:$0xff] %v1375
    %1392 = vst [vmem:[#allocation2 + $0x30] sm:$0xff] %v1376
    %1393 = vst [vmem:[#allocation2 + $0x38] sm:$0xff] %v1377
    %1394 = vst [vmem:[#allocation2 + $0x40] sm:$0xff] %v1378
    %1395 = vst [vmem:[#allocation2 + $0x48] sm:$0xff] %v1379
    %1396 = vst [vmem:[#allocation2 + $0x50] sm:$0xff] %v1380
    %1397 = vst [vmem:[#allocation2 + $0x58] sm:$0xff] %v1381
    %1398 = vst [vmem:[#allocation2 + $0x60] sm:$0xff] %v1382
    %1399 = vst [vmem:[#allocation2 + $0x68] sm:$0xff] %v1383
    %1400 = vst [vmem:[#allocation2 + $0x70] sm:$0xff] %v1384
    %1401 = vst [vmem:[#allocation2 + $0x78] sm:$0xff] %v1385
    %v1402 = vld [vmem:[#allocation2] ss:$8 sm:$0xf]
    %v1403 = vld [vmem:[#allocation2] ss:$8 sm:$0xf0]
    %v1404 = vor.u32 %v1402, %v1403
    %s1405 = scalar_lea.vmem [#allocation2], 64
    %v1406 = vld [vmem:[%s1405] ss:$8 sm:$0xf]
    %v1407 = vld [vmem:[%s1405] ss:$8 sm:$0xf0]
    %v1408 = vor.u32 %v1406, %v1407
    %s1409 = scalar_lea.vmem [#allocation2], 1
    %v1410 = vld [vmem:[%s1409] ss:$8 sm:$0xf]
    %v1411 = vld [vmem:[%s1409] ss:$8 sm:$0xf0]
    %v1412 = vor.u32 %v1410, %v1411
    %s1413 = scalar_lea.vmem [#allocation2], 65
    %v1414 = vld [vmem:[%s1413] ss:$8 sm:$0xf]
    %v1415 = vld [vmem:[%s1413] ss:$8 sm:$0xf0]
    %v1416 = vor.u32 %v1414, %v1415
    %v1417 = vmax.f32 %v1404, %v1412
    %v1418 = vmax.f32 %v1408, %v1416
    %s1419 = scalar_lea.vmem [#allocation2], 2
    %v1420 = vld [vmem:[%s1419] ss:$8 sm:$0xf]
    %v1421 = vld [vmem:[%s1419] ss:$8 sm:$0xf0]
    %v1422 = vor.u32 %v1420, %v1421
    %s1423 = scalar_lea.vmem [#allocation2], 66
    %v1424 = vld [vmem:[%s1423] ss:$8 sm:$0xf]
    %v1425 = vld [vmem:[%s1423] ss:$8 sm:$0xf0]
    %v1426 = vor.u32 %v1424, %v1425
    %v1427 = vmax.f32 %v1417, %v1422
    %v1428 = vmax.f32 %v1418, %v1426
    %s1429 = scalar_lea.vmem [#allocation2], 3
    %v1430 = vld [vmem:[%s1429] ss:$8 sm:$0xf]
    %v1431 = vld [vmem:[%s1429] ss:$8 sm:$0xf0]
    %v1432 = vor.u32 %v1430, %v1431
    %s1433 = scalar_lea.vmem [#allocation2], 67
    %v1434 = vld [vmem:[%s1433] ss:$8 sm:$0xf]
    %v1435 = vld [vmem:[%s1433] ss:$8 sm:$0xf0]
    %v1436 = vor.u32 %v1434, %v1435
    %v1437 = vmax.f32 %v1427, %v1432
    %v1438 = vmax.f32 %v1428, %v1436
    %s1439 = scalar_lea.vmem [#allocation2], 4
    %v1440 = vld [vmem:[%s1439] ss:$8 sm:$0xf]
    %v1441 = vld [vmem:[%s1439] ss:$8 sm:$0xf0]
    %v1442 = vor.u32 %v1440, %v1441
    %s1443 = scalar_lea.vmem [#allocation2], 68
    %v1444 = vld [vmem:[%s1443] ss:$8 sm:$0xf]
    %v1445 = vld [vmem:[%s1443] ss:$8 sm:$0xf0]
    %v1446 = vor.u32 %v1444, %v1445
    %v1447 = vmax.f32 %v1437, %v1442
    %v1448 = vmax.f32 %v1438, %v1446
    %s1449 = scalar_lea.vmem [#allocation2], 5
    %v1450 = vld [vmem:[%s1449] ss:$8 sm:$0xf]
    %v1451 = vld [vmem:[%s1449] ss:$8 sm:$0xf0]
    %v1452 = vor.u32 %v1450, %v1451
    %s1453 = scalar_lea.vmem [#allocation2], 69
    %v1454 = vld [vmem:[%s1453] ss:$8 sm:$0xf]
    %v1455 = vld [vmem:[%s1453] ss:$8 sm:$0xf0]
    %v1456 = vor.u32 %v1454, %v1455
    %v1457 = vmax.f32 %v1447, %v1452
    %v1458 = vmax.f32 %v1448, %v1456
    %s1459 = scalar_lea.vmem [#allocation2], 6
    %v1460 = vld [vmem:[%s1459] ss:$8 sm:$0xf]
    %v1461 = vld [vmem:[%s1459] ss:$8 sm:$0xf0]
    %v1462 = vor.u32 %v1460, %v1461
    %s1463 = scalar_lea.vmem [#allocation2], 70
    %v1464 = vld [vmem:[%s1463] ss:$8 sm:$0xf]
    %v1465 = vld [vmem:[%s1463] ss:$8 sm:$0xf0]
    %v1466 = vor.u32 %v1464, %v1465
    %v1467 = vmax.f32 %v1457, %v1462
    %v1468 = vmax.f32 %v1458, %v1466
    %s1469 = scalar_lea.vmem [#allocation2], 7
    %v1470 = vld [vmem:[%s1469] ss:$8 sm:$0xf]
    %v1471 = vld [vmem:[%s1469] ss:$8 sm:$0xf0]
    %v1472 = vor.u32 %v1470, %v1471
    %s1473 = scalar_lea.vmem [#allocation2], 71
    %v1474 = vld [vmem:[%s1473] ss:$8 sm:$0xf]
    %v1475 = vld [vmem:[%s1473] ss:$8 sm:$0xf0]
    %v1476 = vor.u32 %v1474, %v1475
    %v1477 = vmax.f32 %v1467, %v1472
    %v1478 = vmax.f32 %v1468, %v1476
    %v1479 = vpack.c.bf16 %v1478, %v1477
    %v1480 = vld [vmem:[#allocation8] sm:$0xf]
    %v1481 = vld [vmem:[#allocation8 + $0x4] sm:$0xf]
    %v1482 = vld [vmem:[#allocation8 + $0x8] sm:$0xf]
    %v1483 = vld [vmem:[#allocation8 + $0xc] sm:$0xf]
    %v1484 = vld [vmem:[#allocation8 + $0x10] sm:$0xf]
    %v1485 = vld [vmem:[#allocation8 + $0x14] sm:$0xf]
    %v1486 = vld [vmem:[#allocation8 + $0x18] sm:$0xf]
    %v1487 = vld [vmem:[#allocation8 + $0x1c] sm:$0xf]
    %v1488 = vld [vmem:[#allocation8 + $0x20] sm:$0xf]
    %v1489 = vld [vmem:[#allocation8 + $0x24] sm:$0xf]
    %v1490 = vld [vmem:[#allocation8 + $0x28] sm:$0xf]
    %v1491 = vld [vmem:[#allocation8 + $0x2c] sm:$0xf]
    %v1492 = vld [vmem:[#allocation8 + $0x30] sm:$0xf]
    %v1493 = vld [vmem:[#allocation8 + $0x34] sm:$0xf]
    %v1494 = vld [vmem:[#allocation8 + $0x38] sm:$0xf]
    %v1495 = vld [vmem:[#allocation8 + $0x3c] sm:$0xf]
    %v1496 = vld [vmem:[#allocation10] sm:$0x1]
    %v1498 = vlaneseq
    %v1499 = vshrl.u32 %v1498, 7
    %v1500 = vsub.s32 0, %v1499
    %v1501 = vrot.slane %v1496, %v1500
    %v1519 = vunpack.c.l.b16 %v1480
    %v1520 = vunpack.c.l.b16 %v1481
    %v1521 = vunpack.c.l.b16 %v1482
    %v1522 = vunpack.c.l.b16 %v1483
    %v1523 = vunpack.c.l.b16 %v1484
    %v1524 = vunpack.c.l.b16 %v1485
    %v1525 = vunpack.c.l.b16 %v1486
    %v1526 = vunpack.c.l.b16 %v1487
    %v1527 = vunpack.c.l.b16 %v1488
    %v1528 = vunpack.c.l.b16 %v1489
    %v1529 = vunpack.c.l.b16 %v1490
    %v1530 = vunpack.c.l.b16 %v1491
    %v1531 = vunpack.c.l.b16 %v1492
    %v1532 = vunpack.c.l.b16 %v1493
    %v1533 = vunpack.c.l.b16 %v1494
    %v1534 = vunpack.c.l.b16 %v1495
    %v1535 = vpack.c.b16 %v1520, %v1519
    %v1536 = vpack.c.b16 %v1522, %v1521
    %v1537 = vpack.c.b16 %v1524, %v1523
    %v1538 = vpack.c.b16 %v1526, %v1525
    %v1539 = vpack.c.b16 %v1528, %v1527
    %v1540 = vpack.c.b16 %v1530, %v1529
    %v1541 = vpack.c.b16 %v1532, %v1531
    %v1542 = vpack.c.b16 %v1534, %v1533
    %1551 = vmatprep.subr.bf16.mxu0 0
    %1552 = vmatpush1.bf16.msra.mxu0 %v1535
    %1553 = vmatprep.subr.bf16.mxu0 0
    %1554 = vmatpush1.bf16.msra.mxu0 %v1536
    %1555 = vmatprep.subr.bf16.mxu0 0
    %1556 = vmatpush1.bf16.msra.mxu0 %v1537
    %1557 = vmatprep.subr.bf16.mxu0 0
    %1558 = vmatpush1.bf16.msra.mxu0 %v1538
    %1559 = vmatprep.subr.bf16.mxu0 0
    %1560 = vmatpush1.bf16.msra.mxu0 %v1539
    %1561 = vmatprep.subr.bf16.mxu0 0
    %1562 = vmatpush1.bf16.msra.mxu0 %v1540
    %1563 = vmatprep.subr.bf16.mxu0 0
    %1564 = vmatpush1.bf16.msra.mxu0 %v1541
    %1565 = vmatprep.subr.bf16.mxu0 0
    %1566 = vmatpush1.bf16.msra.mxu0 %v1542
    %1567 = vmatprep.subr.bf16.mxu0 0
    %1568 = vmatpush1.bf16.msra.mxu0 0
    %1569 = vmatprep.subr.bf16.mxu0 0
    %1570 = vmatpush1.bf16.msra.mxu0 0
    %1571 = vmatprep.subr.bf16.mxu0 0
    %1572 = vmatpush1.bf16.msra.mxu0 0
    %1573 = vmatprep.subr.bf16.mxu0 0
    %1574 = vmatpush1.bf16.msra.mxu0 0
    %1575 = vmatprep.subr.bf16.mxu0 0
    %1576 = vmatpush1.bf16.msra.mxu0 0
    %1577 = vmatprep.subr.bf16.mxu0 0
    %1578 = vmatpush1.bf16.msra.mxu0 0
    %1579 = vmatprep.subr.bf16.mxu0 0
    %1580 = vmatpush1.bf16.msra.mxu0 0
    %1581 = vmatprep.subr.bf16.mxu0 0
    %1582 = vmatpush1.bf16.msra.mxu0 0
    %1583 = vmatprep.mubr.bf16.mxu0 0
    %1584 = vmatmul.mubr.bf16.gmra.mrb[0].mxu0 %v1479
    %v1585 = vpop.f32.mrb[0].mxu0
    %v1586 = vadd.f32 %v1501, %v1585
    %v1587 = vpop.f32.mrb[0].mxu0
    %v1588 = vpop.f32.mrb[0].mxu0
    %v1589 = vadd.f32 %v1501, %v1588
    %v1590 = vpop.f32.mrb[0].mxu0
    %1591 = vdwg.mxu0
    %v1592 = vld [vmem:[#allocation3] sm:$0xff]
    %v1593 = vld [vmem:[#allocation3 + $0x8] sm:$0xff]
    %vm1594 = vcmp.gt.f32.partialorder %v1592, 0.0
    %vm1595 = vcmp.gt.f32.partialorder %v1593, 0.0
    %v1596 = vsel %vm1594, 0.0, -1e+30
    %v1597 = vsel %vm1595, 0.0, -1e+30
    %v1598 = vpack.c.bf16 %v1589, %v1586
    %v1599 = vld [vmem:[%s21] sm:$0xff]
    %v1600 = vld [vmem:[%s21 + $0x8] sm:$0xff]
    %v1601 = vld [vmem:[%s21 + $0x10] sm:$0xff]
    %v1602 = vld [vmem:[%s21 + $0x18] sm:$0xff]
    %v1603 = vld [vmem:[%s21 + $0x20] sm:$0xff]
    %v1604 = vld [vmem:[%s21 + $0x28] sm:$0xff]
    %v1605 = vld [vmem:[%s21 + $0x30] sm:$0xff]
    %v1606 = vld [vmem:[%s21 + $0x38] sm:$0xff]
    %v1607 = vld [vmem:[%s21 + $0x40] sm:$0xff]
    %v1608 = vld [vmem:[%s21 + $0x48] sm:$0xff]
    %v1609 = vld [vmem:[%s21 + $0x50] sm:$0xff]
    %v1610 = vld [vmem:[%s21 + $0x58] sm:$0xff]
    %v1611 = vld [vmem:[%s21 + $0x60] sm:$0xff]
    %v1612 = vld [vmem:[%s21 + $0x68] sm:$0xff]
    %v1613 = vld [vmem:[%s21 + $0x70] sm:$0xff]
    %v1614 = vld [vmem:[%s21 + $0x78] sm:$0xff]
    %v1615 = vld [vmem:[%s21 + $0x80] sm:$0xff]
    %v1616 = vld [vmem:[%s21 + $0x88] sm:$0xff]
    %v1617 = vld [vmem:[%s21 + $0x90] sm:$0xff]
    %v1618 = vld [vmem:[%s21 + $0x98] sm:$0xff]
    %v1619 = vld [vmem:[%s21 + $0xa0] sm:$0xff]
    %v1620 = vld [vmem:[%s21 + $0xa8] sm:$0xff]
    %v1621 = vld [vmem:[%s21 + $0xb0] sm:$0xff]
    %v1622 = vld [vmem:[%s21 + $0xb8] sm:$0xff]
    %v1623 = vld [vmem:[%s21 + $0xc0] sm:$0xff]
    %v1624 = vld [vmem:[%s21 + $0xc8] sm:$0xff]
    %v1625 = vld [vmem:[%s21 + $0xd0] sm:$0xff]
    %v1626 = vld [vmem:[%s21 + $0xd8] sm:$0xff]
    %v1627 = vld [vmem:[%s21 + $0xe0] sm:$0xff]
    %v1628 = vld [vmem:[%s21 + $0xe8] sm:$0xff]
    %v1629 = vld [vmem:[%s21 + $0xf0] sm:$0xff]
    %v1630 = vld [vmem:[%s21 + $0xf8] sm:$0xff]
    %v1631 = vld [vmem:[#allocation11] sm:$0xf]
    %v1633 = vlaneseq
    %v1634 = vshrl.u32 %v1633, 7
    %v1635 = vsub.s32 0, %v1634
    %v1636 = vrot.slane %v1631, %v1635
    %v1637 = vlaneseq
    %v1638 = vshrl.u32 %v1637, 7
    %v1639 = vsub.s32 1, %v1638
    %v1640 = vrot.slane %v1631, %v1639
    %v1641 = vlaneseq
    %v1642 = vshrl.u32 %v1641, 7
    %v1643 = vsub.s32 2, %v1642
    %v1644 = vrot.slane %v1631, %v1643
    %v1645 = vlaneseq
    %v1646 = vshrl.u32 %v1645, 7
    %v1647 = vsub.s32 3, %v1646
    %v1648 = vrot.slane %v1631, %v1647
    %v1685 = vunpack.c.l.b16 %v1599
    %v1686 = vunpack.c.h.b16 %v1599
    %v1687 = vunpack.c.l.b16 %v1600
    %v1688 = vunpack.c.h.b16 %v1600
    %v1689 = vunpack.c.l.b16 %v1601
    %v1690 = vunpack.c.h.b16 %v1601
    %v1691 = vunpack.c.l.b16 %v1602
    %v1692 = vunpack.c.h.b16 %v1602
    %v1693 = vunpack.c.l.b16 %v1603
    %v1694 = vunpack.c.h.b16 %v1603
    %v1695 = vunpack.c.l.b16 %v1604
    %v1696 = vunpack.c.h.b16 %v1604
    %v1697 = vunpack.c.l.b16 %v1605
    %v1698 = vunpack.c.h.b16 %v1605
    %v1699 = vunpack.c.l.b16 %v1606
    %v1700 = vunpack.c.h.b16 %v1606
    %v1701 = vunpack.c.l.b16 %v1607
    %v1702 = vunpack.c.h.b16 %v1607
    %v1703 = vunpack.c.l.b16 %v1608
    %v1704 = vunpack.c.h.b16 %v1608
    %v1705 = vunpack.c.l.b16 %v1609
    %v1706 = vunpack.c.h.b16 %v1609
    %v1707 = vunpack.c.l.b16 %v1610
    %v1708 = vunpack.c.h.b16 %v1610
    %v1709 = vunpack.c.l.b16 %v1611
    %v1710 = vunpack.c.h.b16 %v1611
    %v1711 = vunpack.c.l.b16 %v1612
    %v1712 = vunpack.c.h.b16 %v1612
    %v1713 = vunpack.c.l.b16 %v1613
    %v1714 = vunpack.c.h.b16 %v1613
    %v1715 = vunpack.c.l.b16 %v1614
    %v1716 = vunpack.c.h.b16 %v1614
    %v1717 = vunpack.c.l.b16 %v1615
    %v1718 = vunpack.c.h.b16 %v1615
    %v1719 = vunpack.c.l.b16 %v1616
    %v1720 = vunpack.c.h.b16 %v1616
    %v1721 = vunpack.c.l.b16 %v1617
    %v1722 = vunpack.c.h.b16 %v1617
    %v1723 = vunpack.c.l.b16 %v1618
    %v1724 = vunpack.c.h.b16 %v1618
    %v1725 = vunpack.c.l.b16 %v1619
    %v1726 = vunpack.c.h.b16 %v1619
    %v1727 = vunpack.c.l.b16 %v1620
    %v1728 = vunpack.c.h.b16 %v1620
    %v1729 = vunpack.c.l.b16 %v1621
    %v1730 = vunpack.c.h.b16 %v1621
    %v1731 = vunpack.c.l.b16 %v1622
    %v1732 = vunpack.c.h.b16 %v1622
    %v1733 = vunpack.c.l.b16 %v1623
    %v1734 = vunpack.c.h.b16 %v1623
    %v1735 = vunpack.c.l.b16 %v1624
    %v1736 = vunpack.c.h.b16 %v1624
    %v1737 = vunpack.c.l.b16 %v1625
    %v1738 = vunpack.c.h.b16 %v1625
    %v1739 = vunpack.c.l.b16 %v1626
    %v1740 = vunpack.c.h.b16 %v1626
    %v1741 = vunpack.c.l.b16 %v1627
    %v1742 = vunpack.c.h.b16 %v1627
    %v1743 = vunpack.c.l.b16 %v1628
    %v1744 = vunpack.c.h.b16 %v1628
    %v1745 = vunpack.c.l.b16 %v1629
    %v1746 = vunpack.c.h.b16 %v1629
    %v1747 = vunpack.c.l.b16 %v1630
    %v1748 = vunpack.c.h.b16 %v1630
    %v1749 = vpack.c.b16 %v1689, %v1685
    %v1750 = vpack.c.b16 %v1690, %v1686
    %v1751 = vpack.c.b16 %v1691, %v1687
    %v1752 = vpack.c.b16 %v1692, %v1688
    %v1753 = vpack.c.b16 %v1697, %v1693
    %v1754 = vpack.c.b16 %v1698, %v1694
    %v1755 = vpack.c.b16 %v1699, %v1695
    %v1756 = vpack.c.b16 %v1700, %v1696
    %v1757 = vpack.c.b16 %v1705, %v1701
    %v1758 = vpack.c.b16 %v1706, %v1702
    %v1759 = vpack.c.b16 %v1707, %v1703
    %v1760 = vpack.c.b16 %v1708, %v1704
    %v1761 = vpack.c.b16 %v1713, %v1709
    %v1762 = vpack.c.b16 %v1714, %v1710
    %v1763 = vpack.c.b16 %v1715, %v1711
    %v1764 = vpack.c.b16 %v1716, %v1712
    %v1765 = vpack.c.b16 %v1721, %v1717
    %v1766 = vpack.c.b16 %v1722, %v1718
    %v1767 = vpack.c.b16 %v1723, %v1719
    %v1768 = vpack.c.b16 %v1724, %v1720
    %v1769 = vpack.c.b16 %v1729, %v1725
    %v1770 = vpack.c.b16 %v1730, %v1726
    %v1771 = vpack.c.b16 %v1731, %v1727
    %v1772 = vpack.c.b16 %v1732, %v1728
    %v1773 = vpack.c.b16 %v1737, %v1733
    %v1774 = vpack.c.b16 %v1738, %v1734
    %v1775 = vpack.c.b16 %v1739, %v1735
    %v1776 = vpack.c.b16 %v1740, %v1736
    %v1777 = vpack.c.b16 %v1745, %v1741
    %v1778 = vpack.c.b16 %v1746, %v1742
    %v1779 = vpack.c.b16 %v1747, %v1743
    %v1780 = vpack.c.b16 %v1748, %v1744
    %1813 = vmatprep.subr.bf16.mxu0 %v1750
    %1814 = vmatpush1.bf16.msra.mxu0 %v1749
    %1815 = vmatprep.subr.bf16.mxu0 %v1754
    %1816 = vmatpush1.bf16.msra.mxu0 %v1753
    %1817 = vmatprep.subr.bf16.mxu0 %v1758
    %1818 = vmatpush1.bf16.msra.mxu0 %v1757
    %1819 = vmatprep.subr.bf16.mxu0 %v1762
    %1820 = vmatpush1.bf16.msra.mxu0 %v1761
    %1821 = vmatprep.subr.bf16.mxu0 %v1766
    %1822 = vmatpush1.bf16.msra.mxu0 %v1765
    %1823 = vmatprep.subr.bf16.mxu0 %v1770
    %1824 = vmatpush1.bf16.msra.mxu0 %v1769
    %1825 = vmatprep.subr.bf16.mxu0 %v1774
    %1826 = vmatpush1.bf16.msra.mxu0 %v1773
    %1827 = vmatprep.subr.bf16.mxu0 %v1778
    %1828 = vmatpush1.bf16.msra.mxu0 %v1777
    %1829 = vmatprep.subr.bf16.mxu0 0
    %1830 = vmatpush1.bf16.msra.mxu0 0
    %1831 = vmatprep.subr.bf16.mxu0 0
    %1832 = vmatpush1.bf16.msra.mxu0 0
    %1833 = vmatprep.subr.bf16.mxu0 0
    %1834 = vmatpush1.bf16.msra.mxu0 0
    %1835 = vmatprep.subr.bf16.mxu0 0
    %1836 = vmatpush1.bf16.msra.mxu0 0
    %1837 = vmatprep.subr.bf16.mxu0 0
    %1838 = vmatpush1.bf16.msra.mxu0 0
    %1839 = vmatprep.subr.bf16.mxu0 0
    %1840 = vmatpush1.bf16.msra.mxu0 0
    %1841 = vmatprep.subr.bf16.mxu0 0
    %1842 = vmatpush1.bf16.msra.mxu0 0
    %1843 = vmatprep.subr.bf16.mxu0 0
    %1844 = vmatpush1.bf16.msra.mxu0 0
    %1845 = vmatprep.mubr.bf16.mxu0 0
    %1846 = vmatmul.mubr.bf16.gmra.mrb[0].mxu0 %v1598
    %v1847 = vpop.f32.mrb[0].mxu0
    %v1848 = vadd.f32 %v1636, %v1847
    %v1849 = vpop.f32.mrb[0].mxu0
    %v1850 = vadd.f32 %v1640, %v1849
    %v1851 = vpop.f32.mrb[0].mxu0
    %v1852 = vadd.f32 %v1636, %v1851
    %v1853 = vpop.f32.mrb[0].mxu0
    %v1854 = vadd.f32 %v1640, %v1853
    %1855 = vdwg.mxu0
    %1856 = vmatprep.subr.bf16.mxu0 %v1752
    %1857 = vmatpush1.bf16.msra.mxu0 %v1751
    %1858 = vmatprep.subr.bf16.mxu0 %v1756
    %1859 = vmatpush1.bf16.msra.mxu0 %v1755
    %1860 = vmatprep.subr.bf16.mxu0 %v1760
    %1861 = vmatpush1.bf16.msra.mxu0 %v1759
    %1862 = vmatprep.subr.bf16.mxu0 %v1764
    %1863 = vmatpush1.bf16.msra.mxu0 %v1763
    %1864 = vmatprep.subr.bf16.mxu0 %v1768
    %1865 = vmatpush1.bf16.msra.mxu0 %v1767
    %1866 = vmatprep.subr.bf16.mxu0 %v1772
    %1867 = vmatpush1.bf16.msra.mxu0 %v1771
    %1868 = vmatprep.subr.bf16.mxu0 %v1776
    %1869 = vmatpush1.bf16.msra.mxu0 %v1775
    %1870 = vmatprep.subr.bf16.mxu0 %v1780
    %1871 = vmatpush1.bf16.msra.mxu0 %v1779
    %1872 = vmatprep.subr.bf16.mxu0 0
    %1873 = vmatpush1.bf16.msra.mxu0 0
    %1874 = vmatprep.subr.bf16.mxu0 0
    %1875 = vmatpush1.bf16.msra.mxu0 0
    %1876 = vmatprep.subr.bf16.mxu0 0
    %1877 = vmatpush1.bf16.msra.mxu0 0
    %1878 = vmatprep.subr.bf16.mxu0 0
    %1879 = vmatpush1.bf16.msra.mxu0 0
    %1880 = vmatprep.subr.bf16.mxu0 0
    %1881 = vmatpush1.bf16.msra.mxu0 0
    %1882 = vmatprep.subr.bf16.mxu0 0
    %1883 = vmatpush1.bf16.msra.mxu0 0
    %1884 = vmatprep.subr.bf16.mxu0 0
    %1885 = vmatpush1.bf16.msra.mxu0 0
    %1886 = vmatprep.subr.bf16.mxu0 0
    %1887 = vmatpush1.bf16.msra.mxu0 0
    %1888 = vmatprep.mubr.bf16.mxu0 0
    %1889 = vmatmul.mubr.bf16.gmra.mrb[0].mxu0 %v1598
    %v1890 = vpop.f32.mrb[0].mxu0
    %v1891 = vadd.f32 %v1644, %v1890
    %v1892 = vpop.f32.mrb[0].mxu0
    %v1893 = vadd.f32 %v1648, %v1892
    %v1894 = vpop.f32.mrb[0].mxu0
    %v1895 = vadd.f32 %v1644, %v1894
    %v1896 = vpop.f32.mrb[0].mxu0
    %v1897 = vadd.f32 %v1648, %v1896
    %1898 = vdwg.mxu0
    %v1899 = vpack.c.bf16 %v1852, %v1848
    %v1900 = vpack.c.bf16 %v1854, %v1850
    %1901 = vmatprep.subr.bf16.mxu0 0
    %1902 = vmatpush1.bf16.xpose.msra.mxu0 %v1900
    %1903 = vmatprep.subr.bf16.mxu0 0
    %1904 = vmatpush1.bf16.xpose.msra.mxu0 0
    %1905 = vmatprep.subr.bf16.mxu0 0
    %1906 = vmatpush1.bf16.xpose.msra.mxu0 0
    %1907 = vmatprep.subr.bf16.mxu0 0
    %1908 = vmatpush1.bf16.xpose.msra.mxu0 0
    %1909 = vmatprep.subr.bf16.mxu0 0
    %1910 = vmatpush1.bf16.xpose.msra.mxu0 0
    %1911 = vmatprep.subr.bf16.mxu0 0
    %1912 = vmatpush1.bf16.xpose.msra.mxu0 0
    %1913 = vmatprep.subr.bf16.mxu0 0
    %1914 = vmatpush1.bf16.xpose.msra.mxu0 0
    %1915 = vmatprep.subr.bf16.mxu0 0
    %1916 = vmatpush1.bf16.xpose.msra.mxu0 0
    %1917 = vmatprep.subr.bf16.mxu0 0
    %1918 = vmatpush1.bf16.xpose.msra.mxu0 0
    %1919 = vmatprep.subr.bf16.mxu0 0
    %1920 = vmatpush1.bf16.xpose.msra.mxu0 0
    %1921 = vmatprep.subr.bf16.mxu0 0
    %1922 = vmatpush1.bf16.xpose.msra.mxu0 0
    %1923 = vmatprep.subr.bf16.mxu0 0
    %1924 = vmatpush1.bf16.xpose.msra.mxu0 0
    %1925 = vmatprep.subr.bf16.mxu0 0
    %1926 = vmatpush1.bf16.xpose.msra.mxu0 0
    %1927 = vmatprep.subr.bf16.mxu0 0
    %1928 = vmatpush1.bf16.xpose.msra.mxu0 0
    %1929 = vmatprep.subr.bf16.mxu0 0
    %1930 = vmatpush1.bf16.xpose.msra.mxu0 0
    %1931 = vmatprep.subr.bf16.mxu0 0
    %1932 = vmatpush1.bf16.xpose.msra.mxu0 0
    %1933 = vmatprep.mubr.bf16.mxu0 0
    %1934 = vmatmul.mubr.bf16.gmra.mrb[0].mxu0 %v1899
    %v1935 = vpop.f32.mrb[0].mxu0
    %v1936 = vadd.f32 0.0, %v1935
    %v1937 = vpop.f32.mrb[0].mxu0
    %v1938 = vpop.f32.mrb[0].mxu0
    %v1939 = vadd.f32 0.0, %v1938
    %v1940 = vpop.f32.mrb[0].mxu0
    %1941 = vdwg.mxu0
    %v1942 = vmul.f32 %v1936, 0.088388346
    %v1943 = vmul.f32 %v1939, 0.088388346
    %v1944 = vadd.f32 %v1942, %v1596
    %v1945 = vadd.f32 %v1943, %v1597
    %vm1946 = vcmask 130048
    %v1947 = vsel %vm1946, %v1944, -inf
    %1948 = vmax.xlane.f32.xlu0 %v1947
    %v1949 = vpop.xlane.xlu0 %1948
    %v1950 = vsel %vm1946, %v1945, -inf
    %1951 = vmax.xlane.f32.xlu0 %v1950
    %v1952 = vpop.xlane.xlu0 %1951
    %v1953 = vsub.f32 %v1944, %v1949
    %v1954 = vsub.f32 %v1945, %v1952
    %v1955 = vmul.f32 %v1953, 1.442695
    %v1956 = vpow.pop %v1955
    %v1957 = vmul.f32 %v1954, 1.442695
    %v1958 = vpow.pop %v1957
    %v1959 = vmul.f32 %v1956, %v1592
    %v1960 = vmul.f32 %v1958, %v1593
    %v1961 = vsel %vm1946, %v1959, 0.0
    %1962 = vadd.xlane.f32.xlu0 %v1961
    %v1963 = vpop.xlane.xlu0 %1962
    %v1964 = vsel %vm1946, %v1960, 0.0
    %1965 = vadd.xlane.f32.xlu0 %v1964
    %v1966 = vpop.xlane.xlu0 %1965
    %v1967 = vmax.f32 %v1963, 1e-30
    %v1968 = vmax.f32 %v1966, 1e-30
    %v1969 = vrcp.pop %v1967
    %v1970 = vrcp.pop %v1968
    %v1971 = vmul.f32 %v1959, %v1969
    %v1972 = vmul.f32 %v1960, %v1970
    %v1973 = vpack.c.bf16 %v1972, %v1971
    %v1974 = vpack.c.bf16 %v1895, %v1891
    %v1976 = vsel %vm1946, %v1973, 0
    %1978 = vmatprep.subr.bf16.mxu0 0
    %1979 = vmatpush1.bf16.msra.mxu0 %v1974
    %1980 = vmatprep.subr.bf16.mxu0 0
    %1981 = vmatpush1.bf16.msra.mxu0 0
    %1982 = vmatprep.subr.bf16.mxu0 0
    %1983 = vmatpush1.bf16.msra.mxu0 0
    %1984 = vmatprep.subr.bf16.mxu0 0
    %1985 = vmatpush1.bf16.msra.mxu0 0
    %1986 = vmatprep.subr.bf16.mxu0 0
    %1987 = vmatpush1.bf16.msra.mxu0 0
    %1988 = vmatprep.subr.bf16.mxu0 0
    %1989 = vmatpush1.bf16.msra.mxu0 0
    %1990 = vmatprep.subr.bf16.mxu0 0
    %1991 = vmatpush1.bf16.msra.mxu0 0
    %1992 = vmatprep.subr.bf16.mxu0 0
    %1993 = vmatpush1.bf16.msra.mxu0 0
    %1994 = vmatprep.subr.bf16.mxu0 0
    %1995 = vmatpush1.bf16.msra.mxu0 0
    %1996 = vmatprep.subr.bf16.mxu0 0
    %1997 = vmatpush1.bf16.msra.mxu0 0
    %1998 = vmatprep.subr.bf16.mxu0 0
    %1999 = vmatpush1.bf16.msra.mxu0 0
    %2000 = vmatprep.subr.bf16.mxu0 0
    %2001 = vmatpush1.bf16.msra.mxu0 0
    %2002 = vmatprep.subr.bf16.mxu0 0
    %2003 = vmatpush1.bf16.msra.mxu0 0
    %2004 = vmatprep.subr.bf16.mxu0 0
    %2005 = vmatpush1.bf16.msra.mxu0 0
    %2006 = vmatprep.subr.bf16.mxu0 0
    %2007 = vmatpush1.bf16.msra.mxu0 0
    %2008 = vmatprep.subr.bf16.mxu0 0
    %2009 = vmatpush1.bf16.msra.mxu0 0
    %2010 = vmatprep.mubr.bf16.mxu0 0
    %2011 = vmatmul.mubr.bf16.gmra.mrb[0].mxu0 %v1976
    %v2012 = vpop.f32.mrb[0].mxu0
    %v2013 = vadd.f32 %v1893, %v2012
    %v2014 = vpop.f32.mrb[0].mxu0
    %v2015 = vpop.f32.mrb[0].mxu0
    %v2016 = vadd.f32 %v1897, %v2015
    %v2017 = vpop.f32.mrb[0].mxu0
    %2018 = vdwg.mxu0
    %2019 = vadd.xlane.f32.xlu0 %v2013
    %v2020 = vpop.xlane.xlu0 %2019
    %2021 = vadd.xlane.f32.xlu0 %v2016
    %v2022 = vpop.xlane.xlu0 %2021
    %v2023 = vrcp.pop 128.0
    %v2024 = vmul.f32 %v2020, %v2023
    %v2025 = vmul.f32 %v2022, %v2023
    %v2026 = vsub.f32 %v2013, %v2024
    %v2027 = vsub.f32 %v2016, %v2025
    %v2028 = vmul.f32 %v2026, %v2026
    %v2029 = vmul.f32 %v2027, %v2027
    %2030 = vadd.xlane.f32.xlu0 %v2028
    %v2031 = vpop.xlane.xlu0 %2030
    %2032 = vadd.xlane.f32.xlu0 %v2029
    %v2033 = vpop.xlane.xlu0 %2032
    %v2034 = vmul.f32 %v2031, %v2023
    %v2035 = vmul.f32 %v2033, %v2023
    %v2036 = vadd.f32 %v2034, 1e-05
    %v2037 = vadd.f32 %v2035, 1e-05
    %v2038 = vrsqrt.pop %v2036
    %v2039 = vrsqrt.pop %v2037
    %v2040 = vmul.f32 %v2026, %v2038
    %v2041 = vmul.f32 %v2027, %v2039
    %v2042 = vld [vmem:[#allocation13] sm:$0x1]
    %v2044 = vlaneseq
    %v2045 = vshrl.u32 %v2044, 7
    %v2046 = vsub.s32 0, %v2045
    %v2047 = vrot.slane %v2042, %v2046
    %v2049 = vmul.f32 %v2040, %v2047
    %v2050 = vmul.f32 %v2041, %v2047
    %v2051 = vld [vmem:[#allocation14] sm:$0x1]
    %v2053 = vlaneseq
    %v2054 = vshrl.u32 %v2053, 7
    %v2055 = vsub.s32 0, %v2054
    %v2056 = vrot.slane %v2051, %v2055
    %v2058 = vadd.f32 %v2049, %v2056
    %v2059 = vadd.f32 %v2050, %v2056
    %v2060 = vmax.f32 %v2058, 0.0
    %v2061 = vmax.f32 %v2059, 0.0
    %v2062 = vpack.c.bf16 %v2061, %v2060
    %v2063 = vld [vmem:[#allocation16] sm:$0xff]
    %v2064 = vld [vmem:[#allocation16 + $0x8] sm:$0xff]
    %v2065 = vld [vmem:[#allocation16 + $0x10] sm:$0xff]
    %v2066 = vld [vmem:[#allocation16 + $0x18] sm:$0xff]
    %v2067 = vld [vmem:[#allocation16 + $0x20] sm:$0xff]
    %v2068 = vld [vmem:[#allocation16 + $0x28] sm:$0xff]
    %v2069 = vld [vmem:[#allocation16 + $0x30] sm:$0xff]
    %v2070 = vld [vmem:[#allocation16 + $0x38] sm:$0xff]
    %v2071 = vld [vmem:[#allocation16 + $0x40] sm:$0xff]
    %v2072 = vld [vmem:[#allocation16 + $0x48] sm:$0xff]
    %v2073 = vld [vmem:[#allocation16 + $0x50] sm:$0xff]
    %v2074 = vld [vmem:[#allocation16 + $0x58] sm:$0xff]
    %v2075 = vld [vmem:[#allocation16 + $0x60] sm:$0xff]
    %v2076 = vld [vmem:[#allocation16 + $0x68] sm:$0xff]
    %v2077 = vld [vmem:[#allocation16 + $0x70] sm:$0xff]
    %v2078 = vld [vmem:[#allocation16 + $0x78] sm:$0xff]
    %v2079 = vld [vmem:[#allocation16 + $0x80] sm:$0xff]
    %v2080 = vld [vmem:[#allocation16 + $0x88] sm:$0xff]
    %v2081 = vld [vmem:[#allocation16 + $0x90] sm:$0xff]
    %v2082 = vld [vmem:[#allocation16 + $0x98] sm:$0xff]
    %v2083 = vld [vmem:[#allocation16 + $0xa0] sm:$0xff]
    %v2084 = vld [vmem:[#allocation16 + $0xa8] sm:$0xff]
    %v2085 = vld [vmem:[#allocation16 + $0xb0] sm:$0xff]
    %v2086 = vld [vmem:[#allocation16 + $0xb8] sm:$0xff]
    %v2087 = vld [vmem:[#allocation16 + $0xc0] sm:$0xff]
    %v2088 = vld [vmem:[#allocation16 + $0xc8] sm:$0xff]
    %v2089 = vld [vmem:[#allocation16 + $0xd0] sm:$0xff]
    %v2090 = vld [vmem:[#allocation16 + $0xd8] sm:$0xff]
    %v2091 = vld [vmem:[#allocation16 + $0xe0] sm:$0xff]
    %v2092 = vld [vmem:[#allocation16 + $0xe8] sm:$0xff]
    %v2093 = vld [vmem:[#allocation16 + $0xf0] sm:$0xff]
    %v2094 = vld [vmem:[#allocation16 + $0xf8] sm:$0xff]
    %v2095 = vld [vmem:[#allocation17] sm:$0xf]
    %v2097 = vlaneseq
    %v2098 = vshrl.u32 %v2097, 7
    %v2099 = vsub.s32 0, %v2098
    %v2100 = vrot.slane %v2095, %v2099
    %v2101 = vlaneseq
    %v2102 = vshrl.u32 %v2101, 7
    %v2103 = vsub.s32 1, %v2102
    %v2104 = vrot.slane %v2095, %v2103
    %v2105 = vlaneseq
    %v2106 = vshrl.u32 %v2105, 7
    %v2107 = vsub.s32 2, %v2106
    %v2108 = vrot.slane %v2095, %v2107
    %v2109 = vlaneseq
    %v2110 = vshrl.u32 %v2109, 7
    %v2111 = vsub.s32 3, %v2110
    %v2112 = vrot.slane %v2095, %v2111
    %v2149 = vunpack.c.l.b16 %v2063
    %v2150 = vunpack.c.h.b16 %v2063
    %v2151 = vunpack.c.l.b16 %v2064
    %v2152 = vunpack.c.h.b16 %v2064
    %v2153 = vunpack.c.l.b16 %v2065
    %v2154 = vunpack.c.h.b16 %v2065
    %v2155 = vunpack.c.l.b16 %v2066
    %v2156 = vunpack.c.h.b16 %v2066
    %v2157 = vunpack.c.l.b16 %v2067
    %v2158 = vunpack.c.h.b16 %v2067
    %v2159 = vunpack.c.l.b16 %v2068
    %v2160 = vunpack.c.h.b16 %v2068
    %v2161 = vunpack.c.l.b16 %v2069
    %v2162 = vunpack.c.h.b16 %v2069
    %v2163 = vunpack.c.l.b16 %v2070
    %v2164 = vunpack.c.h.b16 %v2070
    %v2165 = vunpack.c.l.b16 %v2071
    %v2166 = vunpack.c.h.b16 %v2071
    %v2167 = vunpack.c.l.b16 %v2072
    %v2168 = vunpack.c.h.b16 %v2072
    %v2169 = vunpack.c.l.b16 %v2073
    %v2170 = vunpack.c.h.b16 %v2073
    %v2171 = vunpack.c.l.b16 %v2074
    %v2172 = vunpack.c.h.b16 %v2074
    %v2173 = vunpack.c.l.b16 %v2075
    %v2174 = vunpack.c.h.b16 %v2075
    %v2175 = vunpack.c.l.b16 %v2076
    %v2176 = vunpack.c.h.b16 %v2076
    %v2177 = vunpack.c.l.b16 %v2077
    %v2178 = vunpack.c.h.b16 %v2077
    %v2179 = vunpack.c.l.b16 %v2078
    %v2180 = vunpack.c.h.b16 %v2078
    %v2181 = vunpack.c.l.b16 %v2079
    %v2182 = vunpack.c.h.b16 %v2079
    %v2183 = vunpack.c.l.b16 %v2080
    %v2184 = vunpack.c.h.b16 %v2080
    %v2185 = vunpack.c.l.b16 %v2081
    %v2186 = vunpack.c.h.b16 %v2081
    %v2187 = vunpack.c.l.b16 %v2082
    %v2188 = vunpack.c.h.b16 %v2082
    %v2189 = vunpack.c.l.b16 %v2083
    %v2190 = vunpack.c.h.b16 %v2083
    %v2191 = vunpack.c.l.b16 %v2084
    %v2192 = vunpack.c.h.b16 %v2084
    %v2193 = vunpack.c.l.b16 %v2085
    %v2194 = vunpack.c.h.b16 %v2085
    %v2195 = vunpack.c.l.b16 %v2086
    %v2196 = vunpack.c.h.b16 %v2086
    %v2197 = vunpack.c.l.b16 %v2087
    %v2198 = vunpack.c.h.b16 %v2087
    %v2199 = vunpack.c.l.b16 %v2088
    %v2200 = vunpack.c.h.b16 %v2088
    %v2201 = vunpack.c.l.b16 %v2089
    %v2202 = vunpack.c.h.b16 %v2089
    %v2203 = vunpack.c.l.b16 %v2090
    %v2204 = vunpack.c.h.b16 %v2090
    %v2205 = vunpack.c.l.b16 %v2091
    %v2206 = vunpack.c.h.b16 %v2091
    %v2207 = vunpack.c.l.b16 %v2092
    %v2208 = vunpack.c.h.b16 %v2092
    %v2209 = vunpack.c.l.b16 %v2093
    %v2210 = vunpack.c.h.b16 %v2093
    %v2211 = vunpack.c.l.b16 %v2094
    %v2212 = vunpack.c.h.b16 %v2094
    %v2213 = vpack.c.b16 %v2153, %v2149
    %v2214 = vpack.c.b16 %v2154, %v2150
    %v2215 = vpack.c.b16 %v2155, %v2151
    %v2216 = vpack.c.b16 %v2156, %v2152
    %v2217 = vpack.c.b16 %v2161, %v2157
    %v2218 = vpack.c.b16 %v2162, %v2158
    %v2219 = vpack.c.b16 %v2163, %v2159
    %v2220 = vpack.c.b16 %v2164, %v2160
    %v2221 = vpack.c.b16 %v2169, %v2165
    %v2222 = vpack.c.b16 %v2170, %v2166
    %v2223 = vpack.c.b16 %v2171, %v2167
    %v2224 = vpack.c.b16 %v2172, %v2168
    %v2225 = vpack.c.b16 %v2177, %v2173
    %v2226 = vpack.c.b16 %v2178, %v2174
    %v2227 = vpack.c.b16 %v2179, %v2175
    %v2228 = vpack.c.b16 %v2180, %v2176
    %v2229 = vpack.c.b16 %v2185, %v2181
    %v2230 = vpack.c.b16 %v2186, %v2182
    %v2231 = vpack.c.b16 %v2187, %v2183
    %v2232 = vpack.c.b16 %v2188, %v2184
    %v2233 = vpack.c.b16 %v2193, %v2189
    %v2234 = vpack.c.b16 %v2194, %v2190
    %v2235 = vpack.c.b16 %v2195, %v2191
    %v2236 = vpack.c.b16 %v2196, %v2192
    %v2237 = vpack.c.b16 %v2201, %v2197
    %v2238 = vpack.c.b16 %v2202, %v2198
    %v2239 = vpack.c.b16 %v2203, %v2199
    %v2240 = vpack.c.b16 %v2204, %v2200
    %v2241 = vpack.c.b16 %v2209, %v2205
    %v2242 = vpack.c.b16 %v2210, %v2206
    %v2243 = vpack.c.b16 %v2211, %v2207
    %v2244 = vpack.c.b16 %v2212, %v2208
    %2277 = vmatprep.subr.bf16.mxu0 %v2214
    %2278 = vmatpush1.bf16.msra.mxu0 %v2213
    %2279 = vmatprep.subr.bf16.mxu0 %v2218
    %2280 = vmatpush1.bf16.msra.mxu0 %v2217
    %2281 = vmatprep.subr.bf16.mxu0 %v2222
    %2282 = vmatpush1.bf16.msra.mxu0 %v2221
    %2283 = vmatprep.subr.bf16.mxu0 %v2226
    %2284 = vmatpush1.bf16.msra.mxu0 %v2225
    %2285 = vmatprep.subr.bf16.mxu0 %v2230
    %2286 = vmatpush1.bf16.msra.mxu0 %v2229
    %2287 = vmatprep.subr.bf16.mxu0 %v2234
    %2288 = vmatpush1.bf16.msra.mxu0 %v2233
    %2289 = vmatprep.subr.bf16.mxu0 %v2238
    %2290 = vmatpush1.bf16.msra.mxu0 %v2237
    %2291 = vmatprep.subr.bf16.mxu0 %v2242
    %2292 = vmatpush1.bf16.msra.mxu0 %v2241
    %2293 = vmatprep.subr.bf16.mxu0 0
    %2294 = vmatpush1.bf16.msra.mxu0 0
    %2295 = vmatprep.subr.bf16.mxu0 0
    %2296 = vmatpush1.bf16.msra.mxu0 0
    %2297 = vmatprep.subr.bf16.mxu0 0
    %2298 = vmatpush1.bf16.msra.mxu0 0
    %2299 = vmatprep.subr.bf16.mxu0 0
    %2300 = vmatpush1.bf16.msra.mxu0 0
    %2301 = vmatprep.subr.bf16.mxu0 0
    %2302 = vmatpush1.bf16.msra.mxu0 0
    %2303 = vmatprep.subr.bf16.mxu0 0
    %2304 = vmatpush1.bf16.msra.mxu0 0
    %2305 = vmatprep.subr.bf16.mxu0 0
    %2306 = vmatpush1.bf16.msra.mxu0 0
    %2307 = vmatprep.subr.bf16.mxu0 0
    %2308 = vmatpush1.bf16.msra.mxu0 0
    %2309 = vmatprep.mubr.bf16.mxu0 0
    %2310 = vmatmul.mubr.bf16.gmra.mrb[0].mxu0 %v2062
    %v2311 = vpop.f32.mrb[0].mxu0
    %v2312 = vadd.f32 %v2100, %v2311
    %v2313 = vpop.f32.mrb[0].mxu0
    %v2314 = vadd.f32 %v2104, %v2313
    %v2315 = vpop.f32.mrb[0].mxu0
    %v2316 = vadd.f32 %v2100, %v2315
    %v2317 = vpop.f32.mrb[0].mxu0
    %v2318 = vadd.f32 %v2104, %v2317
    %2319 = vdwg.mxu0
    %2320 = vmatprep.subr.bf16.mxu0 %v2216
    %2321 = vmatpush1.bf16.msra.mxu0 %v2215
    %2322 = vmatprep.subr.bf16.mxu0 %v2220
    %2323 = vmatpush1.bf16.msra.mxu0 %v2219
    %2324 = vmatprep.subr.bf16.mxu0 %v2224
    %2325 = vmatpush1.bf16.msra.mxu0 %v2223
    %2326 = vmatprep.subr.bf16.mxu0 %v2228
    %2327 = vmatpush1.bf16.msra.mxu0 %v2227
    %2328 = vmatprep.subr.bf16.mxu0 %v2232
    %2329 = vmatpush1.bf16.msra.mxu0 %v2231
    %2330 = vmatprep.subr.bf16.mxu0 %v2236
    %2331 = vmatpush1.bf16.msra.mxu0 %v2235
    %2332 = vmatprep.subr.bf16.mxu0 %v2240
    %2333 = vmatpush1.bf16.msra.mxu0 %v2239
    %2334 = vmatprep.subr.bf16.mxu0 %v2244
    %2335 = vmatpush1.bf16.msra.mxu0 %v2243
    %2336 = vmatprep.subr.bf16.mxu0 0
    %2337 = vmatpush1.bf16.msra.mxu0 0
    %2338 = vmatprep.subr.bf16.mxu0 0
    %2339 = vmatpush1.bf16.msra.mxu0 0
    %2340 = vmatprep.subr.bf16.mxu0 0
    %2341 = vmatpush1.bf16.msra.mxu0 0
    %2342 = vmatprep.subr.bf16.mxu0 0
    %2343 = vmatpush1.bf16.msra.mxu0 0
    %2344 = vmatprep.subr.bf16.mxu0 0
    %2345 = vmatpush1.bf16.msra.mxu0 0
    %2346 = vmatprep.subr.bf16.mxu0 0
    %2347 = vmatpush1.bf16.msra.mxu0 0
    %2348 = vmatprep.subr.bf16.mxu0 0
    %2349 = vmatpush1.bf16.msra.mxu0 0
    %2350 = vmatprep.subr.bf16.mxu0 0
    %2351 = vmatpush1.bf16.msra.mxu0 0
    %2352 = vmatprep.mubr.bf16.mxu0 0
    %2353 = vmatmul.mubr.bf16.gmra.mrb[0].mxu0 %v2062
    %v2354 = vpop.f32.mrb[0].mxu0
    %v2355 = vadd.f32 %v2108, %v2354
    %v2356 = vpop.f32.mrb[0].mxu0
    %v2357 = vadd.f32 %v2112, %v2356
    %v2358 = vpop.f32.mrb[0].mxu0
    %v2359 = vadd.f32 %v2108, %v2358
    %v2360 = vpop.f32.mrb[0].mxu0
    %v2361 = vadd.f32 %v2112, %v2360
    %2362 = vdwg.mxu0
    %v2363 = vpack.c.bf16 %v2316, %v2312
    %v2364 = vpack.c.bf16 %v2318, %v2314
    %2365 = vmatprep.subr.bf16.mxu0 0
    %2366 = vmatpush1.bf16.xpose.msra.mxu0 %v2364
    %2367 = vmatprep.subr.bf16.mxu0 0
    %2368 = vmatpush1.bf16.xpose.msra.mxu0 0
    %2369 = vmatprep.subr.bf16.mxu0 0
    %2370 = vmatpush1.bf16.xpose.msra.mxu0 0
    %2371 = vmatprep.subr.bf16.mxu0 0
    %2372 = vmatpush1.bf16.xpose.msra.mxu0 0
    %2373 = vmatprep.subr.bf16.mxu0 0
    %2374 = vmatpush1.bf16.xpose.msra.mxu0 0
    %2375 = vmatprep.subr.bf16.mxu0 0
    %2376 = vmatpush1.bf16.xpose.msra.mxu0 0
    %2377 = vmatprep.subr.bf16.mxu0 0
    %2378 = vmatpush1.bf16.xpose.msra.mxu0 0
    %2379 = vmatprep.subr.bf16.mxu0 0
    %2380 = vmatpush1.bf16.xpose.msra.mxu0 0
    %2381 = vmatprep.subr.bf16.mxu0 0
    %2382 = vmatpush1.bf16.xpose.msra.mxu0 0
    %2383 = vmatprep.subr.bf16.mxu0 0
    %2384 = vmatpush1.bf16.xpose.msra.mxu0 0
    %2385 = vmatprep.subr.bf16.mxu0 0
    %2386 = vmatpush1.bf16.xpose.msra.mxu0 0
    %2387 = vmatprep.subr.bf16.mxu0 0
    %2388 = vmatpush1.bf16.xpose.msra.mxu0 0
    %2389 = vmatprep.subr.bf16.mxu0 0
    %2390 = vmatpush1.bf16.xpose.msra.mxu0 0
    %2391 = vmatprep.subr.bf16.mxu0 0
    %2392 = vmatpush1.bf16.xpose.msra.mxu0 0
    %2393 = vmatprep.subr.bf16.mxu0 0
    %2394 = vmatpush1.bf16.xpose.msra.mxu0 0
    %2395 = vmatprep.subr.bf16.mxu0 0
    %2396 = vmatpush1.bf16.xpose.msra.mxu0 0
    %2397 = vmatprep.mubr.bf16.mxu0 0
    %2398 = vmatmul.mubr.bf16.gmra.mrb[0].mxu0 %v2363
    %v2399 = vpop.f32.mrb[0].mxu0
    %v2400 = vadd.f32 0.0, %v2399
    %v2401 = vpop.f32.mrb[0].mxu0
    %v2402 = vpop.f32.mrb[0].mxu0
    %v2403 = vadd.f32 0.0, %v2402
    %v2404 = vpop.f32.mrb[0].mxu0
    %2405 = vdwg.mxu0
    %v2406 = vmul.f32 %v2400, 0.088388346
    %v2407 = vmul.f32 %v2403, 0.088388346
    %v2408 = vadd.f32 %v2406, %v1596
    %v2409 = vadd.f32 %v2407, %v1597
    %v2410 = vsel %vm1946, %v2408, -inf
    %2411 = vmax.xlane.f32.xlu0 %v2410
    %v2412 = vpop.xlane.xlu0 %2411
    %v2413 = vsel %vm1946, %v2409, -inf
    %2414 = vmax.xlane.f32.xlu0 %v2413
    %v2415 = vpop.xlane.xlu0 %2414
    %v2416 = vsub.f32 %v2408, %v2412
    %v2417 = vsub.f32 %v2409, %v2415
    %v2418 = vmul.f32 %v2416, 1.442695
    %v2419 = vpow.pop %v2418
    %v2420 = vmul.f32 %v2417, 1.442695
    %v2421 = vpow.pop %v2420
    %v2422 = vmul.f32 %v2419, %v1592
    %v2423 = vmul.f32 %v2421, %v1593
    %v2424 = vsel %vm1946, %v2422, 0.0
    %2425 = vadd.xlane.f32.xlu0 %v2424
    %v2426 = vpop.xlane.xlu0 %2425
    %v2427 = vsel %vm1946, %v2423, 0.0
    %2428 = vadd.xlane.f32.xlu0 %v2427
    %v2429 = vpop.xlane.xlu0 %2428
    %v2430 = vmax.f32 %v2426, 1e-30
    %v2431 = vmax.f32 %v2429, 1e-30
    %v2432 = vrcp.pop %v2430
    %v2433 = vrcp.pop %v2431
    %v2434 = vmul.f32 %v2422, %v2432
    %v2435 = vmul.f32 %v2423, %v2433
    %v2436 = vpack.c.bf16 %v2435, %v2434
    %v2437 = vpack.c.bf16 %v2359, %v2355
    %v2439 = vsel %vm1946, %v2436, 0
    %2441 = vmatprep.subr.bf16.mxu0 0
    %2442 = vmatpush1.bf16.msra.mxu0 %v2437
    %2443 = vmatprep.subr.bf16.mxu0 0
    %2444 = vmatpush1.bf16.msra.mxu0 0
    %2445 = vmatprep.subr.bf16.mxu0 0
    %2446 = vmatpush1.bf16.msra.mxu0 0
    %2447 = vmatprep.subr.bf16.mxu0 0
    %2448 = vmatpush1.bf16.msra.mxu0 0
    %2449 = vmatprep.subr.bf16.mxu0 0
    %2450 = vmatpush1.bf16.msra.mxu0 0
    %2451 = vmatprep.subr.bf16.mxu0 0
    %2452 = vmatpush1.bf16.msra.mxu0 0
    %2453 = vmatprep.subr.bf16.mxu0 0
    %2454 = vmatpush1.bf16.msra.mxu0 0
    %2455 = vmatprep.subr.bf16.mxu0 0
    %2456 = vmatpush1.bf16.msra.mxu0 0
    %2457 = vmatprep.subr.bf16.mxu0 0
    %2458 = vmatpush1.bf16.msra.mxu0 0
    %2459 = vmatprep.subr.bf16.mxu0 0
    %2460 = vmatpush1.bf16.msra.mxu0 0
    %2461 = vmatprep.subr.bf16.mxu0 0
    %2462 = vmatpush1.bf16.msra.mxu0 0
    %2463 = vmatprep.subr.bf16.mxu0 0
    %2464 = vmatpush1.bf16.msra.mxu0 0
    %2465 = vmatprep.subr.bf16.mxu0 0
    %2466 = vmatpush1.bf16.msra.mxu0 0
    %2467 = vmatprep.subr.bf16.mxu0 0
    %2468 = vmatpush1.bf16.msra.mxu0 0
    %2469 = vmatprep.subr.bf16.mxu0 0
    %2470 = vmatpush1.bf16.msra.mxu0 0
    %2471 = vmatprep.subr.bf16.mxu0 0
    %2472 = vmatpush1.bf16.msra.mxu0 0
    %2473 = vmatprep.mubr.bf16.mxu0 0
    %2474 = vmatmul.mubr.bf16.gmra.mrb[0].mxu0 %v2439
    %v2475 = vpop.f32.mrb[0].mxu0
    %v2476 = vadd.f32 %v2357, %v2475
    %v2477 = vpop.f32.mrb[0].mxu0
    %v2478 = vpop.f32.mrb[0].mxu0
    %v2479 = vadd.f32 %v2361, %v2478
    %v2480 = vpop.f32.mrb[0].mxu0
    %2481 = vdwg.mxu0
    %v2482 = vadd.f32 %v2476, %v2060
    %v2483 = vadd.f32 %v2479, %v2061
    %2484 = vadd.xlane.f32.xlu0 %v2482
    %v2485 = vpop.xlane.xlu0 %2484
    %2486 = vadd.xlane.f32.xlu0 %v2483
    %v2487 = vpop.xlane.xlu0 %2486
    %v2488 = vmul.f32 %v2485, %v2023
    %v2489 = vmul.f32 %v2487, %v2023
    %v2490 = vsub.f32 %v2482, %v2488
    %v2491 = vsub.f32 %v2483, %v2489
    %v2492 = vmul.f32 %v2490, %v2490
    %v2493 = vmul.f32 %v2491, %v2491
    %2494 = vadd.xlane.f32.xlu0 %v2492
    %v2495 = vpop.xlane.xlu0 %2494
    %2496 = vadd.xlane.f32.xlu0 %v2493
    %v2497 = vpop.xlane.xlu0 %2496
    %v2498 = vmul.f32 %v2495, %v2023
    %v2499 = vmul.f32 %v2497, %v2023
    %v2500 = vadd.f32 %v2498, 1e-05
    %v2501 = vadd.f32 %v2499, 1e-05
    %v2502 = vrsqrt.pop %v2500
    %v2503 = vrsqrt.pop %v2501
    %v2504 = vmul.f32 %v2490, %v2502
    %v2505 = vmul.f32 %v2491, %v2503
    %v2506 = vld [vmem:[#allocation19] sm:$0x1]
    %v2508 = vlaneseq
    %v2509 = vshrl.u32 %v2508, 7
    %v2510 = vsub.s32 0, %v2509
    %v2511 = vrot.slane %v2506, %v2510
    %v2513 = vmul.f32 %v2504, %v2511
    %v2514 = vmul.f32 %v2505, %v2511
    %v2515 = vld [vmem:[#allocation20] sm:$0x1]
    %v2517 = vlaneseq
    %v2518 = vshrl.u32 %v2517, 7
    %v2519 = vsub.s32 0, %v2518
    %v2520 = vrot.slane %v2515, %v2519
    %v2522 = vadd.f32 %v2513, %v2520
    %v2523 = vadd.f32 %v2514, %v2520
    %v2524 = vmax.f32 %v2522, 0.0
    %v2525 = vmax.f32 %v2523, 0.0
    %v2526 = vpack.c.bf16 %v2525, %v2524
    %v2527 = vld [vmem:[#allocation22] sm:$0xff]
    %v2528 = vld [vmem:[#allocation22 + $0x8] sm:$0xff]
    %v2529 = vld [vmem:[#allocation22 + $0x10] sm:$0xff]
    %v2530 = vld [vmem:[#allocation22 + $0x18] sm:$0xff]
    %v2531 = vld [vmem:[#allocation22 + $0x20] sm:$0xff]
    %v2532 = vld [vmem:[#allocation22 + $0x28] sm:$0xff]
    %v2533 = vld [vmem:[#allocation22 + $0x30] sm:$0xff]
    %v2534 = vld [vmem:[#allocation22 + $0x38] sm:$0xff]
    %v2535 = vld [vmem:[#allocation22 + $0x40] sm:$0xff]
    %v2536 = vld [vmem:[#allocation22 + $0x48] sm:$0xff]
    %v2537 = vld [vmem:[#allocation22 + $0x50] sm:$0xff]
    %v2538 = vld [vmem:[#allocation22 + $0x58] sm:$0xff]
    %v2539 = vld [vmem:[#allocation22 + $0x60] sm:$0xff]
    %v2540 = vld [vmem:[#allocation22 + $0x68] sm:$0xff]
    %v2541 = vld [vmem:[#allocation22 + $0x70] sm:$0xff]
    %v2542 = vld [vmem:[#allocation22 + $0x78] sm:$0xff]
    %v2543 = vld [vmem:[#allocation22 + $0x80] sm:$0xff]
    %v2544 = vld [vmem:[#allocation22 + $0x88] sm:$0xff]
    %v2545 = vld [vmem:[#allocation22 + $0x90] sm:$0xff]
    %v2546 = vld [vmem:[#allocation22 + $0x98] sm:$0xff]
    %v2547 = vld [vmem:[#allocation22 + $0xa0] sm:$0xff]
    %v2548 = vld [vmem:[#allocation22 + $0xa8] sm:$0xff]
    %v2549 = vld [vmem:[#allocation22 + $0xb0] sm:$0xff]
    %v2550 = vld [vmem:[#allocation22 + $0xb8] sm:$0xff]
    %v2551 = vld [vmem:[#allocation22 + $0xc0] sm:$0xff]
    %v2552 = vld [vmem:[#allocation22 + $0xc8] sm:$0xff]
    %v2553 = vld [vmem:[#allocation22 + $0xd0] sm:$0xff]
    %v2554 = vld [vmem:[#allocation22 + $0xd8] sm:$0xff]
    %v2555 = vld [vmem:[#allocation22 + $0xe0] sm:$0xff]
    %v2556 = vld [vmem:[#allocation22 + $0xe8] sm:$0xff]
    %v2557 = vld [vmem:[#allocation22 + $0xf0] sm:$0xff]
    %v2558 = vld [vmem:[#allocation22 + $0xf8] sm:$0xff]
    %v2559 = vld [vmem:[%s39] sm:$0xf]
    %v2561 = vlaneseq
    %v2562 = vshrl.u32 %v2561, 7
    %v2563 = vsub.s32 0, %v2562
    %v2564 = vrot.slane %v2559, %v2563
    %v2565 = vlaneseq
    %v2566 = vshrl.u32 %v2565, 7
    %v2567 = vsub.s32 1, %v2566
    %v2568 = vrot.slane %v2559, %v2567
    %v2569 = vlaneseq
    %v2570 = vshrl.u32 %v2569, 7
    %v2571 = vsub.s32 2, %v2570
    %v2572 = vrot.slane %v2559, %v2571
    %v2573 = vlaneseq
    %v2574 = vshrl.u32 %v2573, 7
    %v2575 = vsub.s32 3, %v2574
    %v2576 = vrot.slane %v2559, %v2575
    %v2613 = vunpack.c.l.b16 %v2527
    %v2614 = vunpack.c.h.b16 %v2527
    %v2615 = vunpack.c.l.b16 %v2528
    %v2616 = vunpack.c.h.b16 %v2528
    %v2617 = vunpack.c.l.b16 %v2529
    %v2618 = vunpack.c.h.b16 %v2529
    %v2619 = vunpack.c.l.b16 %v2530
    %v2620 = vunpack.c.h.b16 %v2530
    %v2621 = vunpack.c.l.b16 %v2531
    %v2622 = vunpack.c.h.b16 %v2531
    %v2623 = vunpack.c.l.b16 %v2532
    %v2624 = vunpack.c.h.b16 %v2532
    %v2625 = vunpack.c.l.b16 %v2533
    %v2626 = vunpack.c.h.b16 %v2533
    %v2627 = vunpack.c.l.b16 %v2534
    %v2628 = vunpack.c.h.b16 %v2534
    %v2629 = vunpack.c.l.b16 %v2535
    %v2630 = vunpack.c.h.b16 %v2535
    %v2631 = vunpack.c.l.b16 %v2536
    %v2632 = vunpack.c.h.b16 %v2536
    %v2633 = vunpack.c.l.b16 %v2537
    %v2634 = vunpack.c.h.b16 %v2537
    %v2635 = vunpack.c.l.b16 %v2538
    %v2636 = vunpack.c.h.b16 %v2538
    %v2637 = vunpack.c.l.b16 %v2539
    %v2638 = vunpack.c.h.b16 %v2539
    %v2639 = vunpack.c.l.b16 %v2540
    %v2640 = vunpack.c.h.b16 %v2540
    %v2641 = vunpack.c.l.b16 %v2541
    %v2642 = vunpack.c.h.b16 %v2541
    %v2643 = vunpack.c.l.b16 %v2542
    %v2644 = vunpack.c.h.b16 %v2542
    %v2645 = vunpack.c.l.b16 %v2543
    %v2646 = vunpack.c.h.b16 %v2543
    %v2647 = vunpack.c.l.b16 %v2544
    %v2648 = vunpack.c.h.b16 %v2544
    %v2649 = vunpack.c.l.b16 %v2545
    %v2650 = vunpack.c.h.b16 %v2545
    %v2651 = vunpack.c.l.b16 %v2546
    %v2652 = vunpack.c.h.b16 %v2546
    %v2653 = vunpack.c.l.b16 %v2547
    %v2654 = vunpack.c.h.b16 %v2547
    %v2655 = vunpack.c.l.b16 %v2548
    %v2656 = vunpack.c.h.b16 %v2548
    %v2657 = vunpack.c.l.b16 %v2549
    %v2658 = vunpack.c.h.b16 %v2549
    %v2659 = vunpack.c.l.b16 %v2550
    %v2660 = vunpack.c.h.b16 %v2550
    %v2661 = vunpack.c.l.b16 %v2551
    %v2662 = vunpack.c.h.b16 %v2551
    %v2663 = vunpack.c.l.b16 %v2552
    %v2664 = vunpack.c.h.b16 %v2552
    %v2665 = vunpack.c.l.b16 %v2553
    %v2666 = vunpack.c.h.b16 %v2553
    %v2667 = vunpack.c.l.b16 %v2554
    %v2668 = vunpack.c.h.b16 %v2554
    %v2669 = vunpack.c.l.b16 %v2555
    %v2670 = vunpack.c.h.b16 %v2555
    %v2671 = vunpack.c.l.b16 %v2556
    %v2672 = vunpack.c.h.b16 %v2556
    %v2673 = vunpack.c.l.b16 %v2557
    %v2674 = vunpack.c.h.b16 %v2557
    %v2675 = vunpack.c.l.b16 %v2558
    %v2676 = vunpack.c.h.b16 %v2558
    %v2677 = vpack.c.b16 %v2617, %v2613
    %v2678 = vpack.c.b16 %v2618, %v2614
    %v2679 = vpack.c.b16 %v2619, %v2615
    %v2680 = vpack.c.b16 %v2620, %v2616
    %v2681 = vpack.c.b16 %v2625, %v2621
    %v2682 = vpack.c.b16 %v2626, %v2622
    %v2683 = vpack.c.b16 %v2627, %v2623
    %v2684 = vpack.c.b16 %v2628, %v2624
    %v2685 = vpack.c.b16 %v2633, %v2629
    %v2686 = vpack.c.b16 %v2634, %v2630
    %v2687 = vpack.c.b16 %v2635, %v2631
    %v2688 = vpack.c.b16 %v2636, %v2632
    %v2689 = vpack.c.b16 %v2641, %v2637
    %v2690 = vpack.c.b16 %v2642, %v2638
    %v2691 = vpack.c.b16 %v2643, %v2639
    %v2692 = vpack.c.b16 %v2644, %v2640
    %v2693 = vpack.c.b16 %v2649, %v2645
    %v2694 = vpack.c.b16 %v2650, %v2646
    %v2695 = vpack.c.b16 %v2651, %v2647
    %v2696 = vpack.c.b16 %v2652, %v2648
    %v2697 = vpack.c.b16 %v2657, %v2653
    %v2698 = vpack.c.b16 %v2658, %v2654
    %v2699 = vpack.c.b16 %v2659, %v2655
    %v2700 = vpack.c.b16 %v2660, %v2656
    %v2701 = vpack.c.b16 %v2665, %v2661
    %v2702 = vpack.c.b16 %v2666, %v2662
    %v2703 = vpack.c.b16 %v2667, %v2663
    %v2704 = vpack.c.b16 %v2668, %v2664
    %v2705 = vpack.c.b16 %v2673, %v2669
    %v2706 = vpack.c.b16 %v2674, %v2670
    %v2707 = vpack.c.b16 %v2675, %v2671
    %v2708 = vpack.c.b16 %v2676, %v2672
    %2741 = vmatprep.subr.bf16.mxu0 %v2678
    %2742 = vmatpush1.bf16.msra.mxu0 %v2677
    %2743 = vmatprep.subr.bf16.mxu0 %v2682
    %2744 = vmatpush1.bf16.msra.mxu0 %v2681
    %2745 = vmatprep.subr.bf16.mxu0 %v2686
    %2746 = vmatpush1.bf16.msra.mxu0 %v2685
    %2747 = vmatprep.subr.bf16.mxu0 %v2690
    %2748 = vmatpush1.bf16.msra.mxu0 %v2689
    %2749 = vmatprep.subr.bf16.mxu0 %v2694
    %2750 = vmatpush1.bf16.msra.mxu0 %v2693
    %2751 = vmatprep.subr.bf16.mxu0 %v2698
    %2752 = vmatpush1.bf16.msra.mxu0 %v2697
    %2753 = vmatprep.subr.bf16.mxu0 %v2702
    %2754 = vmatpush1.bf16.msra.mxu0 %v2701
    %2755 = vmatprep.subr.bf16.mxu0 %v2706
    %2756 = vmatpush1.bf16.msra.mxu0 %v2705
    %2757 = vmatprep.subr.bf16.mxu0 0
    %2758 = vmatpush1.bf16.msra.mxu0 0
    %2759 = vmatprep.subr.bf16.mxu0 0
    %2760 = vmatpush1.bf16.msra.mxu0 0
    %2761 = vmatprep.subr.bf16.mxu0 0
    %2762 = vmatpush1.bf16.msra.mxu0 0
    %2763 = vmatprep.subr.bf16.mxu0 0
    %2764 = vmatpush1.bf16.msra.mxu0 0
    %2765 = vmatprep.subr.bf16.mxu0 0
    %2766 = vmatpush1.bf16.msra.mxu0 0
    %2767 = vmatprep.subr.bf16.mxu0 0
    %2768 = vmatpush1.bf16.msra.mxu0 0
    %2769 = vmatprep.subr.bf16.mxu0 0
    %2770 = vmatpush1.bf16.msra.mxu0 0
    %2771 = vmatprep.subr.bf16.mxu0 0
    %2772 = vmatpush1.bf16.msra.mxu0 0
    %2773 = vmatprep.mubr.bf16.mxu0 0
    %2774 = vmatmul.mubr.bf16.gmra.mrb[0].mxu0 %v2526
    %v2775 = vpop.f32.mrb[0].mxu0
    %v2776 = vadd.f32 %v2564, %v2775
    %v2777 = vpop.f32.mrb[0].mxu0
    %v2778 = vadd.f32 %v2568, %v2777
    %v2779 = vpop.f32.mrb[0].mxu0
    %v2780 = vadd.f32 %v2564, %v2779
    %v2781 = vpop.f32.mrb[0].mxu0
    %v2782 = vadd.f32 %v2568, %v2781
    %2783 = vdwg.mxu0
    %2784 = vmatprep.subr.bf16.mxu0 %v2680
    %2785 = vmatpush1.bf16.msra.mxu0 %v2679
    %2786 = vmatprep.subr.bf16.mxu0 %v2684
    %2787 = vmatpush1.bf16.msra.mxu0 %v2683
    %2788 = vmatprep.subr.bf16.mxu0 %v2688
    %2789 = vmatpush1.bf16.msra.mxu0 %v2687
    %2790 = vmatprep.subr.bf16.mxu0 %v2692
    %2791 = vmatpush1.bf16.msra.mxu0 %v2691
    %2792 = vmatprep.subr.bf16.mxu0 %v2696
    %2793 = vmatpush1.bf16.msra.mxu0 %v2695
    %2794 = vmatprep.subr.bf16.mxu0 %v2700
    %2795 = vmatpush1.bf16.msra.mxu0 %v2699
    %2796 = vmatprep.subr.bf16.mxu0 %v2704
    %2797 = vmatpush1.bf16.msra.mxu0 %v2703
    %2798 = vmatprep.subr.bf16.mxu0 %v2708
    %2799 = vmatpush1.bf16.msra.mxu0 %v2707
    %2800 = vmatprep.subr.bf16.mxu0 0
    %2801 = vmatpush1.bf16.msra.mxu0 0
    %2802 = vmatprep.subr.bf16.mxu0 0
    %2803 = vmatpush1.bf16.msra.mxu0 0
    %2804 = vmatprep.subr.bf16.mxu0 0
    %2805 = vmatpush1.bf16.msra.mxu0 0
    %2806 = vmatprep.subr.bf16.mxu0 0
    %2807 = vmatpush1.bf16.msra.mxu0 0
    %2808 = vmatprep.subr.bf16.mxu0 0
    %2809 = vmatpush1.bf16.msra.mxu0 0
    %2810 = vmatprep.subr.bf16.mxu0 0
    %2811 = vmatpush1.bf16.msra.mxu0 0
    %2812 = vmatprep.subr.bf16.mxu0 0
    %2813 = vmatpush1.bf16.msra.mxu0 0
    %2814 = vmatprep.subr.bf16.mxu0 0
    %2815 = vmatpush1.bf16.msra.mxu0 0
    %2816 = vmatprep.mubr.bf16.mxu0 0
    %2817 = vmatmul.mubr.bf16.gmra.mrb[0].mxu0 %v2526
    %v2818 = vpop.f32.mrb[0].mxu0
    %v2819 = vadd.f32 %v2572, %v2818
    %v2820 = vpop.f32.mrb[0].mxu0
    %v2821 = vadd.f32 %v2576, %v2820
    %v2822 = vpop.f32.mrb[0].mxu0
    %v2823 = vadd.f32 %v2572, %v2822
    %v2824 = vpop.f32.mrb[0].mxu0
    %v2825 = vadd.f32 %v2576, %v2824
    %2826 = vdwg.mxu0
    %v2827 = vpack.c.bf16 %v2780, %v2776
    %v2828 = vpack.c.bf16 %v2782, %v2778
    %2829 = vmatprep.subr.bf16.mxu0 0
    %2830 = vmatpush1.bf16.xpose.msra.mxu0 %v2828
    %2831 = vmatprep.subr.bf16.mxu0 0
    %2832 = vmatpush1.bf16.xpose.msra.mxu0 0
    %2833 = vmatprep.subr.bf16.mxu0 0
    %2834 = vmatpush1.bf16.xpose.msra.mxu0 0
    %2835 = vmatprep.subr.bf16.mxu0 0
    %2836 = vmatpush1.bf16.xpose.msra.mxu0 0
    %2837 = vmatprep.subr.bf16.mxu0 0
    %2838 = vmatpush1.bf16.xpose.msra.mxu0 0
    %2839 = vmatprep.subr.bf16.mxu0 0
    %2840 = vmatpush1.bf16.xpose.msra.mxu0 0
    %2841 = vmatprep.subr.bf16.mxu0 0
    %2842 = vmatpush1.bf16.xpose.msra.mxu0 0
    %2843 = vmatprep.subr.bf16.mxu0 0
    %2844 = vmatpush1.bf16.xpose.msra.mxu0 0
    %2845 = vmatprep.subr.bf16.mxu0 0
    %2846 = vmatpush1.bf16.xpose.msra.mxu0 0
    %2847 = vmatprep.subr.bf16.mxu0 0
    %2848 = vmatpush1.bf16.xpose.msra.mxu0 0
    %2849 = vmatprep.subr.bf16.mxu0 0
    %2850 = vmatpush1.bf16.xpose.msra.mxu0 0
    %2851 = vmatprep.subr.bf16.mxu0 0
    %2852 = vmatpush1.bf16.xpose.msra.mxu0 0
    %2853 = vmatprep.subr.bf16.mxu0 0
    %2854 = vmatpush1.bf16.xpose.msra.mxu0 0
    %2855 = vmatprep.subr.bf16.mxu0 0
    %2856 = vmatpush1.bf16.xpose.msra.mxu0 0
    %2857 = vmatprep.subr.bf16.mxu0 0
    %2858 = vmatpush1.bf16.xpose.msra.mxu0 0
    %2859 = vmatprep.subr.bf16.mxu0 0
    %2860 = vmatpush1.bf16.xpose.msra.mxu0 0
    %2861 = vmatprep.mubr.bf16.mxu0 0
    %2862 = vmatmul.mubr.bf16.gmra.mrb[0].mxu0 %v2827
    %v2863 = vpop.f32.mrb[0].mxu0
    %v2864 = vadd.f32 0.0, %v2863
    %v2865 = vpop.f32.mrb[0].mxu0
    %v2866 = vpop.f32.mrb[0].mxu0
    %v2867 = vadd.f32 0.0, %v2866
    %v2868 = vpop.f32.mrb[0].mxu0
    %2869 = vdwg.mxu0
    %v2870 = vmul.f32 %v2864, 0.088388346
    %v2871 = vmul.f32 %v2867, 0.088388346
    %v2872 = vadd.f32 %v2870, %v1596
    %v2873 = vadd.f32 %v2871, %v1597
    %v2874 = vsel %vm1946, %v2872, -inf
    %2875 = vmax.xlane.f32.xlu0 %v2874
    %v2876 = vpop.xlane.xlu0 %2875
    %v2877 = vsel %vm1946, %v2873, -inf
    %2878 = vmax.xlane.f32.xlu0 %v2877
    %v2879 = vpop.xlane.xlu0 %2878
    %v2880 = vsub.f32 %v2872, %v2876
    %v2881 = vsub.f32 %v2873, %v2879
    %v2882 = vmul.f32 %v2880, 1.442695
    %v2883 = vpow.pop %v2882
    %v2884 = vmul.f32 %v2881, 1.442695
    %v2885 = vpow.pop %v2884
    %v2886 = vmul.f32 %v2883, %v1592
    %v2887 = vmul.f32 %v2885, %v1593
    %v2888 = vsel %vm1946, %v2886, 0.0
    %2889 = vadd.xlane.f32.xlu0 %v2888
    %v2890 = vpop.xlane.xlu0 %2889
    %v2891 = vsel %vm1946, %v2887, 0.0
    %2892 = vadd.xlane.f32.xlu0 %v2891
    %v2893 = vpop.xlane.xlu0 %2892
    %v2894 = vmax.f32 %v2890, 1e-30
    %v2895 = vmax.f32 %v2893, 1e-30
    %v2896 = vrcp.pop %v2894
    %v2897 = vrcp.pop %v2895
    %v2898 = vmul.f32 %v2886, %v2896
    %v2899 = vmul.f32 %v2887, %v2897
    %v2900 = vpack.c.bf16 %v2899, %v2898
    %v2901 = vpack.c.bf16 %v2823, %v2819
    %v2903 = vsel %vm1946, %v2900, 0
    %2905 = vmatprep.subr.bf16.mxu0 0
    %2906 = vmatpush1.bf16.msra.mxu0 %v2901
    %2907 = vmatprep.subr.bf16.mxu0 0
    %2908 = vmatpush1.bf16.msra.mxu0 0
    %2909 = vmatprep.subr.bf16.mxu0 0
    %2910 = vmatpush1.bf16.msra.mxu0 0
    %2911 = vmatprep.subr.bf16.mxu0 0
    %2912 = vmatpush1.bf16.msra.mxu0 0
    %2913 = vmatprep.subr.bf16.mxu0 0
    %2914 = vmatpush1.bf16.msra.mxu0 0
    %2915 = vmatprep.subr.bf16.mxu0 0
    %2916 = vmatpush1.bf16.msra.mxu0 0
    %2917 = vmatprep.subr.bf16.mxu0 0
    %2918 = vmatpush1.bf16.msra.mxu0 0
    %2919 = vmatprep.subr.bf16.mxu0 0
    %2920 = vmatpush1.bf16.msra.mxu0 0
    %2921 = vmatprep.subr.bf16.mxu0 0
    %2922 = vmatpush1.bf16.msra.mxu0 0
    %2923 = vmatprep.subr.bf16.mxu0 0
    %2924 = vmatpush1.bf16.msra.mxu0 0
    %2925 = vmatprep.subr.bf16.mxu0 0
    %2926 = vmatpush1.bf16.msra.mxu0 0
    %2927 = vmatprep.subr.bf16.mxu0 0
    %2928 = vmatpush1.bf16.msra.mxu0 0
    %2929 = vmatprep.subr.bf16.mxu0 0
    %2930 = vmatpush1.bf16.msra.mxu0 0
    %2931 = vmatprep.subr.bf16.mxu0 0
    %2932 = vmatpush1.bf16.msra.mxu0 0
    %2933 = vmatprep.subr.bf16.mxu0 0
    %2934 = vmatpush1.bf16.msra.mxu0 0
    %2935 = vmatprep.subr.bf16.mxu0 0
    %2936 = vmatpush1.bf16.msra.mxu0 0
    %2937 = vmatprep.mubr.bf16.mxu0 0
    %2938 = vmatmul.mubr.bf16.gmra.mrb[0].mxu0 %v2903
    %v2939 = vpop.f32.mrb[0].mxu0
    %v2940 = vadd.f32 %v2821, %v2939
    %v2941 = vpop.f32.mrb[0].mxu0
    %v2942 = vpop.f32.mrb[0].mxu0
    %v2943 = vadd.f32 %v2825, %v2942
    %v2944 = vpop.f32.mrb[0].mxu0
    %2945 = vdwg.mxu0
    %v2946 = vadd.f32 %v2940, %v2524
    %v2947 = vadd.f32 %v2943, %v2525
    %2948 = vadd.xlane.f32.xlu0 %v2946
    %v2949 = vpop.xlane.xlu0 %2948
    %2950 = vadd.xlane.f32.xlu0 %v2947
    %v2951 = vpop.xlane.xlu0 %2950
    %v2952 = vmul.f32 %v2949, %v2023
    %v2953 = vmul.f32 %v2951, %v2023
    %v2954 = vsub.f32 %v2946, %v2952
    %v2955 = vsub.f32 %v2947, %v2953
    %v2956 = vmul.f32 %v2954, %v2954
    %v2957 = vmul.f32 %v2955, %v2955
    %2958 = vadd.xlane.f32.xlu0 %v2956
    %v2959 = vpop.xlane.xlu0 %2958
    %2960 = vadd.xlane.f32.xlu0 %v2957
    %v2961 = vpop.xlane.xlu0 %2960
    %v2962 = vmul.f32 %v2959, %v2023
    %v2963 = vmul.f32 %v2961, %v2023
    %v2964 = vadd.f32 %v2962, 1e-05
    %v2965 = vadd.f32 %v2963, 1e-05
    %v2966 = vrsqrt.pop %v2964
    %v2967 = vrsqrt.pop %v2965
    %v2968 = vmul.f32 %v2954, %v2966
    %v2969 = vmul.f32 %v2955, %v2967
    %v2970 = vld [vmem:[%s41] sm:$0x1]
    %v2972 = vlaneseq
    %v2973 = vshrl.u32 %v2972, 7
    %v2974 = vsub.s32 0, %v2973
    %v2975 = vrot.slane %v2970, %v2974
    %v2977 = vmul.f32 %v2968, %v2975
    %v2978 = vmul.f32 %v2969, %v2975
    %v2979 = vld [vmem:[%s43] sm:$0x1]
    %v2981 = vlaneseq
    %v2982 = vshrl.u32 %v2981, 7
    %v2983 = vsub.s32 0, %v2982
    %v2984 = vrot.slane %v2979, %v2983
    %v2986 = vadd.f32 %v2977, %v2984
    %v2987 = vadd.f32 %v2978, %v2984
    %v2988 = vmax.f32 %v2986, 0.0
    %v2989 = vmax.f32 %v2987, 0.0
    %v2990 = vpack.c.bf16 %v2989, %v2988
    %v2991 = vld [vmem:[#allocation23] sm:$0xff]
    %v2992 = vld [vmem:[#allocation23 + $0x8] sm:$0xff]
    %v2993 = vld [vmem:[#allocation23 + $0x10] sm:$0xff]
    %v2994 = vld [vmem:[#allocation23 + $0x18] sm:$0xff]
    %v2995 = vld [vmem:[#allocation23 + $0x20] sm:$0xff]
    %v2996 = vld [vmem:[#allocation23 + $0x28] sm:$0xff]
    %v2997 = vld [vmem:[#allocation23 + $0x30] sm:$0xff]
    %v2998 = vld [vmem:[#allocation23 + $0x38] sm:$0xff]
    %v2999 = vld [vmem:[#allocation23 + $0x40] sm:$0xff]
    %v3000 = vld [vmem:[#allocation23 + $0x48] sm:$0xff]
    %v3001 = vld [vmem:[#allocation23 + $0x50] sm:$0xff]
    %v3002 = vld [vmem:[#allocation23 + $0x58] sm:$0xff]
    %v3003 = vld [vmem:[#allocation23 + $0x60] sm:$0xff]
    %v3004 = vld [vmem:[#allocation23 + $0x68] sm:$0xff]
    %v3005 = vld [vmem:[#allocation23 + $0x70] sm:$0xff]
    %v3006 = vld [vmem:[#allocation23 + $0x78] sm:$0xff]
    %v3007 = vld [vmem:[#allocation23 + $0x80] sm:$0xff]
    %v3008 = vld [vmem:[#allocation23 + $0x88] sm:$0xff]
    %v3009 = vld [vmem:[#allocation23 + $0x90] sm:$0xff]
    %v3010 = vld [vmem:[#allocation23 + $0x98] sm:$0xff]
    %v3011 = vld [vmem:[#allocation23 + $0xa0] sm:$0xff]
    %v3012 = vld [vmem:[#allocation23 + $0xa8] sm:$0xff]
    %v3013 = vld [vmem:[#allocation23 + $0xb0] sm:$0xff]
    %v3014 = vld [vmem:[#allocation23 + $0xb8] sm:$0xff]
    %v3015 = vld [vmem:[#allocation23 + $0xc0] sm:$0xff]
    %v3016 = vld [vmem:[#allocation23 + $0xc8] sm:$0xff]
    %v3017 = vld [vmem:[#allocation23 + $0xd0] sm:$0xff]
    %v3018 = vld [vmem:[#allocation23 + $0xd8] sm:$0xff]
    %v3019 = vld [vmem:[#allocation23 + $0xe0] sm:$0xff]
    %v3020 = vld [vmem:[#allocation23 + $0xe8] sm:$0xff]
    %v3021 = vld [vmem:[#allocation23 + $0xf0] sm:$0xff]
    %v3022 = vld [vmem:[#allocation23 + $0xf8] sm:$0xff]
    %v3023 = vld [vmem:[%s47] sm:$0xf]
    %v3025 = vlaneseq
    %v3026 = vshrl.u32 %v3025, 7
    %v3027 = vsub.s32 0, %v3026
    %v3028 = vrot.slane %v3023, %v3027
    %v3029 = vlaneseq
    %v3030 = vshrl.u32 %v3029, 7
    %v3031 = vsub.s32 1, %v3030
    %v3032 = vrot.slane %v3023, %v3031
    %v3033 = vlaneseq
    %v3034 = vshrl.u32 %v3033, 7
    %v3035 = vsub.s32 2, %v3034
    %v3036 = vrot.slane %v3023, %v3035
    %v3037 = vlaneseq
    %v3038 = vshrl.u32 %v3037, 7
    %v3039 = vsub.s32 3, %v3038
    %v3040 = vrot.slane %v3023, %v3039
    %v3077 = vunpack.c.l.b16 %v2991
    %v3078 = vunpack.c.h.b16 %v2991
    %v3079 = vunpack.c.l.b16 %v2992
    %v3080 = vunpack.c.h.b16 %v2992
    %v3081 = vunpack.c.l.b16 %v2993
    %v3082 = vunpack.c.h.b16 %v2993
    %v3083 = vunpack.c.l.b16 %v2994
    %v3084 = vunpack.c.h.b16 %v2994
    %v3085 = vunpack.c.l.b16 %v2995
    %v3086 = vunpack.c.h.b16 %v2995
    %v3087 = vunpack.c.l.b16 %v2996
    %v3088 = vunpack.c.h.b16 %v2996
    %v3089 = vunpack.c.l.b16 %v2997
    %v3090 = vunpack.c.h.b16 %v2997
    %v3091 = vunpack.c.l.b16 %v2998
    %v3092 = vunpack.c.h.b16 %v2998
    %v3093 = vunpack.c.l.b16 %v2999
    %v3094 = vunpack.c.h.b16 %v2999
    %v3095 = vunpack.c.l.b16 %v3000
    %v3096 = vunpack.c.h.b16 %v3000
    %v3097 = vunpack.c.l.b16 %v3001
    %v3098 = vunpack.c.h.b16 %v3001
    %v3099 = vunpack.c.l.b16 %v3002
    %v3100 = vunpack.c.h.b16 %v3002
    %v3101 = vunpack.c.l.b16 %v3003
    %v3102 = vunpack.c.h.b16 %v3003
    %v3103 = vunpack.c.l.b16 %v3004
    %v3104 = vunpack.c.h.b16 %v3004
    %v3105 = vunpack.c.l.b16 %v3005
    %v3106 = vunpack.c.h.b16 %v3005
    %v3107 = vunpack.c.l.b16 %v3006
    %v3108 = vunpack.c.h.b16 %v3006
    %v3109 = vunpack.c.l.b16 %v3007
    %v3110 = vunpack.c.h.b16 %v3007
    %v3111 = vunpack.c.l.b16 %v3008
    %v3112 = vunpack.c.h.b16 %v3008
    %v3113 = vunpack.c.l.b16 %v3009
    %v3114 = vunpack.c.h.b16 %v3009
    %v3115 = vunpack.c.l.b16 %v3010
    %v3116 = vunpack.c.h.b16 %v3010
    %v3117 = vunpack.c.l.b16 %v3011
    %v3118 = vunpack.c.h.b16 %v3011
    %v3119 = vunpack.c.l.b16 %v3012
    %v3120 = vunpack.c.h.b16 %v3012
    %v3121 = vunpack.c.l.b16 %v3013
    %v3122 = vunpack.c.h.b16 %v3013
    %v3123 = vunpack.c.l.b16 %v3014
    %v3124 = vunpack.c.h.b16 %v3014
    %v3125 = vunpack.c.l.b16 %v3015
    %v3126 = vunpack.c.h.b16 %v3015
    %v3127 = vunpack.c.l.b16 %v3016
    %v3128 = vunpack.c.h.b16 %v3016
    %v3129 = vunpack.c.l.b16 %v3017
    %v3130 = vunpack.c.h.b16 %v3017
    %v3131 = vunpack.c.l.b16 %v3018
    %v3132 = vunpack.c.h.b16 %v3018
    %v3133 = vunpack.c.l.b16 %v3019
    %v3134 = vunpack.c.h.b16 %v3019
    %v3135 = vunpack.c.l.b16 %v3020
    %v3136 = vunpack.c.h.b16 %v3020
    %v3137 = vunpack.c.l.b16 %v3021
    %v3138 = vunpack.c.h.b16 %v3021
    %v3139 = vunpack.c.l.b16 %v3022
    %v3140 = vunpack.c.h.b16 %v3022
    %v3141 = vpack.c.b16 %v3081, %v3077
    %v3142 = vpack.c.b16 %v3082, %v3078
    %v3143 = vpack.c.b16 %v3083, %v3079
    %v3144 = vpack.c.b16 %v3084, %v3080
    %v3145 = vpack.c.b16 %v3089, %v3085
    %v3146 = vpack.c.b16 %v3090, %v3086
    %v3147 = vpack.c.b16 %v3091, %v3087
    %v3148 = vpack.c.b16 %v3092, %v3088
    %v3149 = vpack.c.b16 %v3097, %v3093
    %v3150 = vpack.c.b16 %v3098, %v3094
    %v3151 = vpack.c.b16 %v3099, %v3095
    %v3152 = vpack.c.b16 %v3100, %v3096
    %v3153 = vpack.c.b16 %v3105, %v3101
    %v3154 = vpack.c.b16 %v3106, %v3102
    %v3155 = vpack.c.b16 %v3107, %v3103
    %v3156 = vpack.c.b16 %v3108, %v3104
    %v3157 = vpack.c.b16 %v3113, %v3109
    %v3158 = vpack.c.b16 %v3114, %v3110
    %v3159 = vpack.c.b16 %v3115, %v3111
    %v3160 = vpack.c.b16 %v3116, %v3112
    %v3161 = vpack.c.b16 %v3121, %v3117
    %v3162 = vpack.c.b16 %v3122, %v3118
    %v3163 = vpack.c.b16 %v3123, %v3119
    %v3164 = vpack.c.b16 %v3124, %v3120
    %v3165 = vpack.c.b16 %v3129, %v3125
    %v3166 = vpack.c.b16 %v3130, %v3126
    %v3167 = vpack.c.b16 %v3131, %v3127
    %v3168 = vpack.c.b16 %v3132, %v3128
    %v3169 = vpack.c.b16 %v3137, %v3133
    %v3170 = vpack.c.b16 %v3138, %v3134
    %v3171 = vpack.c.b16 %v3139, %v3135
    %v3172 = vpack.c.b16 %v3140, %v3136
    %3205 = vmatprep.subr.bf16.mxu0 %v3142
    %3206 = vmatpush1.bf16.msra.mxu0 %v3141
    %3207 = vmatprep.subr.bf16.mxu0 %v3146
    %3208 = vmatpush1.bf16.msra.mxu0 %v3145
    %3209 = vmatprep.subr.bf16.mxu0 %v3150
    %3210 = vmatpush1.bf16.msra.mxu0 %v3149
    %3211 = vmatprep.subr.bf16.mxu0 %v3154
    %3212 = vmatpush1.bf16.msra.mxu0 %v3153
    %3213 = vmatprep.subr.bf16.mxu0 %v3158
    %3214 = vmatpush1.bf16.msra.mxu0 %v3157
    %3215 = vmatprep.subr.bf16.mxu0 %v3162
    %3216 = vmatpush1.bf16.msra.mxu0 %v3161
    %3217 = vmatprep.subr.bf16.mxu0 %v3166
    %3218 = vmatpush1.bf16.msra.mxu0 %v3165
    %3219 = vmatprep.subr.bf16.mxu0 %v3170
    %3220 = vmatpush1.bf16.msra.mxu0 %v3169
    %3221 = vmatprep.subr.bf16.mxu0 0
    %3222 = vmatpush1.bf16.msra.mxu0 0
    %3223 = vmatprep.subr.bf16.mxu0 0
    %3224 = vmatpush1.bf16.msra.mxu0 0
    %3225 = vmatprep.subr.bf16.mxu0 0
    %3226 = vmatpush1.bf16.msra.mxu0 0
    %3227 = vmatprep.subr.bf16.mxu0 0
    %3228 = vmatpush1.bf16.msra.mxu0 0
    %3229 = vmatprep.subr.bf16.mxu0 0
    %3230 = vmatpush1.bf16.msra.mxu0 0
    %3231 = vmatprep.subr.bf16.mxu0 0
    %3232 = vmatpush1.bf16.msra.mxu0 0
    %3233 = vmatprep.subr.bf16.mxu0 0
    %3234 = vmatpush1.bf16.msra.mxu0 0
    %3235 = vmatprep.subr.bf16.mxu0 0
    %3236 = vmatpush1.bf16.msra.mxu0 0
    %3237 = vmatprep.mubr.bf16.mxu0 0
    %3238 = vmatmul.mubr.bf16.gmra.mrb[0].mxu0 %v2990
    %v3239 = vpop.f32.mrb[0].mxu0
    %v3240 = vadd.f32 %v3028, %v3239
    %v3241 = vpop.f32.mrb[0].mxu0
    %v3242 = vadd.f32 %v3032, %v3241
    %v3243 = vpop.f32.mrb[0].mxu0
    %v3244 = vadd.f32 %v3028, %v3243
    %v3245 = vpop.f32.mrb[0].mxu0
    %v3246 = vadd.f32 %v3032, %v3245
    %3247 = vdwg.mxu0
    %3248 = vmatprep.subr.bf16.mxu0 %v3144
    %3249 = vmatpush1.bf16.msra.mxu0 %v3143
    %3250 = vmatprep.subr.bf16.mxu0 %v3148
    %3251 = vmatpush1.bf16.msra.mxu0 %v3147
    %3252 = vmatprep.subr.bf16.mxu0 %v3152
    %3253 = vmatpush1.bf16.msra.mxu0 %v3151
    %3254 = vmatprep.subr.bf16.mxu0 %v3156
    %3255 = vmatpush1.bf16.msra.mxu0 %v3155
    %3256 = vmatprep.subr.bf16.mxu0 %v3160
    %3257 = vmatpush1.bf16.msra.mxu0 %v3159
    %3258 = vmatprep.subr.bf16.mxu0 %v3164
    %3259 = vmatpush1.bf16.msra.mxu0 %v3163
    %3260 = vmatprep.subr.bf16.mxu0 %v3168
    %3261 = vmatpush1.bf16.msra.mxu0 %v3167
    %3262 = vmatprep.subr.bf16.mxu0 %v3172
    %3263 = vmatpush1.bf16.msra.mxu0 %v3171
    %3264 = vmatprep.subr.bf16.mxu0 0
    %3265 = vmatpush1.bf16.msra.mxu0 0
    %3266 = vmatprep.subr.bf16.mxu0 0
    %3267 = vmatpush1.bf16.msra.mxu0 0
    %3268 = vmatprep.subr.bf16.mxu0 0
    %3269 = vmatpush1.bf16.msra.mxu0 0
    %3270 = vmatprep.subr.bf16.mxu0 0
    %3271 = vmatpush1.bf16.msra.mxu0 0
    %3272 = vmatprep.subr.bf16.mxu0 0
    %3273 = vmatpush1.bf16.msra.mxu0 0
    %3274 = vmatprep.subr.bf16.mxu0 0
    %3275 = vmatpush1.bf16.msra.mxu0 0
    %3276 = vmatprep.subr.bf16.mxu0 0
    %3277 = vmatpush1.bf16.msra.mxu0 0
    %3278 = vmatprep.subr.bf16.mxu0 0
    %3279 = vmatpush1.bf16.msra.mxu0 0
    %3280 = vmatprep.mubr.bf16.mxu0 0
    %3281 = vmatmul.mubr.bf16.gmra.mrb[0].mxu0 %v2990
    %v3282 = vpop.f32.mrb[0].mxu0
    %v3283 = vadd.f32 %v3036, %v3282
    %v3284 = vpop.f32.mrb[0].mxu0
    %v3285 = vadd.f32 %v3040, %v3284
    %v3286 = vpop.f32.mrb[0].mxu0
    %v3287 = vadd.f32 %v3036, %v3286
    %v3288 = vpop.f32.mrb[0].mxu0
    %v3289 = vadd.f32 %v3040, %v3288
    %3290 = vdwg.mxu0
    %v3291 = vpack.c.bf16 %v3244, %v3240
    %v3292 = vpack.c.bf16 %v3246, %v3242
    %3293 = vmatprep.subr.bf16.mxu0 0
    %3294 = vmatpush1.bf16.xpose.msra.mxu0 %v3292
    %3295 = vmatprep.subr.bf16.mxu0 0
    %3296 = vmatpush1.bf16.xpose.msra.mxu0 0
    %3297 = vmatprep.subr.bf16.mxu0 0
    %3298 = vmatpush1.bf16.xpose.msra.mxu0 0
    %3299 = vmatprep.subr.bf16.mxu0 0
    %3300 = vmatpush1.bf16.xpose.msra.mxu0 0
    %3301 = vmatprep.subr.bf16.mxu0 0
    %3302 = vmatpush1.bf16.xpose.msra.mxu0 0
    %3303 = vmatprep.subr.bf16.mxu0 0
    %3304 = vmatpush1.bf16.xpose.msra.mxu0 0
    %3305 = vmatprep.subr.bf16.mxu0 0
    %3306 = vmatpush1.bf16.xpose.msra.mxu0 0
    %3307 = vmatprep.subr.bf16.mxu0 0
    %3308 = vmatpush1.bf16.xpose.msra.mxu0 0
    %3309 = vmatprep.subr.bf16.mxu0 0
    %3310 = vmatpush1.bf16.xpose.msra.mxu0 0
    %3311 = vmatprep.subr.bf16.mxu0 0
    %3312 = vmatpush1.bf16.xpose.msra.mxu0 0
    %3313 = vmatprep.subr.bf16.mxu0 0
    %3314 = vmatpush1.bf16.xpose.msra.mxu0 0
    %3315 = vmatprep.subr.bf16.mxu0 0
    %3316 = vmatpush1.bf16.xpose.msra.mxu0 0
    %3317 = vmatprep.subr.bf16.mxu0 0
    %3318 = vmatpush1.bf16.xpose.msra.mxu0 0
    %3319 = vmatprep.subr.bf16.mxu0 0
    %3320 = vmatpush1.bf16.xpose.msra.mxu0 0
    %3321 = vmatprep.subr.bf16.mxu0 0
    %3322 = vmatpush1.bf16.xpose.msra.mxu0 0
    %3323 = vmatprep.subr.bf16.mxu0 0
    %3324 = vmatpush1.bf16.xpose.msra.mxu0 0
    %3325 = vmatprep.mubr.bf16.mxu0 0
    %3326 = vmatmul.mubr.bf16.gmra.mrb[0].mxu0 %v3291
    %v3327 = vpop.f32.mrb[0].mxu0
    %v3328 = vadd.f32 0.0, %v3327
    %v3329 = vpop.f32.mrb[0].mxu0
    %v3330 = vpop.f32.mrb[0].mxu0
    %v3331 = vadd.f32 0.0, %v3330
    %v3332 = vpop.f32.mrb[0].mxu0
    %3333 = vdwg.mxu0
    %v3334 = vmul.f32 %v3328, 0.088388346
    %v3335 = vmul.f32 %v3331, 0.088388346
    %v3336 = vadd.f32 %v3334, %v1596
    %v3337 = vadd.f32 %v3335, %v1597
    %v3338 = vsel %vm1946, %v3336, -inf
    %3339 = vmax.xlane.f32.xlu0 %v3338
    %v3340 = vpop.xlane.xlu0 %3339
    %v3341 = vsel %vm1946, %v3337, -inf
    %3342 = vmax.xlane.f32.xlu0 %v3341
    %v3343 = vpop.xlane.xlu0 %3342
    %v3344 = vsub.f32 %v3336, %v3340
    %v3345 = vsub.f32 %v3337, %v3343
    %v3346 = vmul.f32 %v3344, 1.442695
    %v3347 = vpow.pop %v3346
    %v3348 = vmul.f32 %v3345, 1.442695
    %v3349 = vpow.pop %v3348
    %v3350 = vmul.f32 %v3347, %v1592
    %v3351 = vmul.f32 %v3349, %v1593
    %v3352 = vsel %vm1946, %v3350, 0.0
    %3353 = vadd.xlane.f32.xlu0 %v3352
    %v3354 = vpop.xlane.xlu0 %3353
    %v3355 = vsel %vm1946, %v3351, 0.0
    %3356 = vadd.xlane.f32.xlu0 %v3355
    %v3357 = vpop.xlane.xlu0 %3356
    %v3358 = vmax.f32 %v3354, 1e-30
    %v3359 = vmax.f32 %v3357, 1e-30
    %v3360 = vrcp.pop %v3358
    %v3361 = vrcp.pop %v3359
    %v3362 = vmul.f32 %v3350, %v3360
    %v3363 = vmul.f32 %v3351, %v3361
    %v3364 = vpack.c.bf16 %v3363, %v3362
    %v3365 = vpack.c.bf16 %v3287, %v3283
    %v3367 = vsel %vm1946, %v3364, 0
    %3369 = vmatprep.subr.bf16.mxu0 0
    %3370 = vmatpush1.bf16.msra.mxu0 %v3365
    %3371 = vmatprep.subr.bf16.mxu0 0
    %3372 = vmatpush1.bf16.msra.mxu0 0
    %3373 = vmatprep.subr.bf16.mxu0 0
    %3374 = vmatpush1.bf16.msra.mxu0 0
    %3375 = vmatprep.subr.bf16.mxu0 0
    %3376 = vmatpush1.bf16.msra.mxu0 0
    %3377 = vmatprep.subr.bf16.mxu0 0
    %3378 = vmatpush1.bf16.msra.mxu0 0
    %3379 = vmatprep.subr.bf16.mxu0 0
    %3380 = vmatpush1.bf16.msra.mxu0 0
    %3381 = vmatprep.subr.bf16.mxu0 0
    %3382 = vmatpush1.bf16.msra.mxu0 0
    %3383 = vmatprep.subr.bf16.mxu0 0
    %3384 = vmatpush1.bf16.msra.mxu0 0
    %3385 = vmatprep.subr.bf16.mxu0 0
    %3386 = vmatpush1.bf16.msra.mxu0 0
    %3387 = vmatprep.subr.bf16.mxu0 0
    %3388 = vmatpush1.bf16.msra.mxu0 0
    %3389 = vmatprep.subr.bf16.mxu0 0
    %3390 = vmatpush1.bf16.msra.mxu0 0
    %3391 = vmatprep.subr.bf16.mxu0 0
    %3392 = vmatpush1.bf16.msra.mxu0 0
    %3393 = vmatprep.subr.bf16.mxu0 0
    %3394 = vmatpush1.bf16.msra.mxu0 0
    %3395 = vmatprep.subr.bf16.mxu0 0
    %3396 = vmatpush1.bf16.msra.mxu0 0
    %3397 = vmatprep.subr.bf16.mxu0 0
    %3398 = vmatpush1.bf16.msra.mxu0 0
    %3399 = vmatprep.subr.bf16.mxu0 0
    %3400 = vmatpush1.bf16.msra.mxu0 0
    %3401 = vmatprep.mubr.bf16.mxu0 0
    %3402 = vmatmul.mubr.bf16.gmra.mrb[0].mxu0 %v3367
    %v3403 = vpop.f32.mrb[0].mxu0
    %v3404 = vadd.f32 %v3285, %v3403
    %v3405 = vpop.f32.mrb[0].mxu0
    %v3406 = vpop.f32.mrb[0].mxu0
    %v3407 = vadd.f32 %v3289, %v3406
    %v3408 = vpop.f32.mrb[0].mxu0
    %3409 = vdwg.mxu0
    %v3410 = vadd.f32 %v3404, %v2988
    %v3411 = vadd.f32 %v3407, %v2989
    %3412 = vadd.xlane.f32.xlu0 %v3410
    %v3413 = vpop.xlane.xlu0 %3412
    %3414 = vadd.xlane.f32.xlu0 %v3411
    %v3415 = vpop.xlane.xlu0 %3414
    %v3416 = vmul.f32 %v3413, %v2023
    %v3417 = vmul.f32 %v3415, %v2023
    %v3418 = vsub.f32 %v3410, %v3416
    %v3419 = vsub.f32 %v3411, %v3417
    %v3420 = vmul.f32 %v3418, %v3418
    %v3421 = vmul.f32 %v3419, %v3419
    %3422 = vadd.xlane.f32.xlu0 %v3420
    %v3423 = vpop.xlane.xlu0 %3422
    %3424 = vadd.xlane.f32.xlu0 %v3421
    %v3425 = vpop.xlane.xlu0 %3424
    %v3426 = vmul.f32 %v3423, %v2023
    %v3427 = vmul.f32 %v3425, %v2023
    %v3428 = vadd.f32 %v3426, 1e-05
    %v3429 = vadd.f32 %v3427, 1e-05
    %v3430 = vrsqrt.pop %v3428
    %v3431 = vrsqrt.pop %v3429
    %v3432 = vmul.f32 %v3418, %v3430
    %v3433 = vmul.f32 %v3419, %v3431
    %v3434 = vld [vmem:[%s49] sm:$0x1]
    %v3436 = vlaneseq
    %v3437 = vshrl.u32 %v3436, 7
    %v3438 = vsub.s32 0, %v3437
    %v3439 = vrot.slane %v3434, %v3438
    %v3441 = vmul.f32 %v3432, %v3439
    %v3442 = vmul.f32 %v3433, %v3439
    %v3443 = vld [vmem:[%s51] sm:$0x1]
    %v3445 = vlaneseq
    %v3446 = vshrl.u32 %v3445, 7
    %v3447 = vsub.s32 0, %v3446
    %v3448 = vrot.slane %v3443, %v3447
    %v3450 = vadd.f32 %v3441, %v3448
    %v3451 = vadd.f32 %v3442, %v3448
    %v3452 = vmax.f32 %v3450, 0.0
    %v3453 = vmax.f32 %v3451, 0.0
    %v3454 = vpack.c.bf16 %v3453, %v3452
    %v3455 = vld [vmem:[#allocation25] sm:$0xff]
    %v3456 = vld [vmem:[#allocation25 + $0x8] sm:$0xff]
    %v3457 = vld [vmem:[#allocation25 + $0x10] sm:$0xff]
    %v3458 = vld [vmem:[#allocation25 + $0x18] sm:$0xff]
    %v3459 = vld [vmem:[#allocation25 + $0x20] sm:$0xff]
    %v3460 = vld [vmem:[#allocation25 + $0x28] sm:$0xff]
    %v3461 = vld [vmem:[#allocation25 + $0x30] sm:$0xff]
    %v3462 = vld [vmem:[#allocation25 + $0x38] sm:$0xff]
    %v3463 = vld [vmem:[#allocation25 + $0x40] sm:$0xff]
    %v3464 = vld [vmem:[#allocation25 + $0x48] sm:$0xff]
    %v3465 = vld [vmem:[#allocation25 + $0x50] sm:$0xff]
    %v3466 = vld [vmem:[#allocation25 + $0x58] sm:$0xff]
    %v3467 = vld [vmem:[#allocation25 + $0x60] sm:$0xff]
    %v3468 = vld [vmem:[#allocation25 + $0x68] sm:$0xff]
    %v3469 = vld [vmem:[#allocation25 + $0x70] sm:$0xff]
    %v3470 = vld [vmem:[#allocation25 + $0x78] sm:$0xff]
    %v3471 = vld [vmem:[%s55] sm:$0x3]
    %v3473 = vlaneseq
    %v3474 = vshrl.u32 %v3473, 7
    %v3475 = vsub.s32 0, %v3474
    %v3476 = vrot.slane %v3471, %v3475
    %v3477 = vlaneseq
    %v3478 = vshrl.u32 %v3477, 7
    %v3479 = vsub.s32 1, %v3478
    %v3480 = vrot.slane %v3471, %v3479
    %v3499 = vunpack.c.l.b16 %v3455
    %v3500 = vunpack.c.h.b16 %v3455
    %v3501 = vunpack.c.l.b16 %v3456
    %v3502 = vunpack.c.h.b16 %v3456
    %v3503 = vunpack.c.l.b16 %v3457
    %v3504 = vunpack.c.h.b16 %v3457
    %v3505 = vunpack.c.l.b16 %v3458
    %v3506 = vunpack.c.h.b16 %v3458
    %v3507 = vunpack.c.l.b16 %v3459
    %v3508 = vunpack.c.h.b16 %v3459
    %v3509 = vunpack.c.l.b16 %v3460
    %v3510 = vunpack.c.h.b16 %v3460
    %v3511 = vunpack.c.l.b16 %v3461
    %v3512 = vunpack.c.h.b16 %v3461
    %v3513 = vunpack.c.l.b16 %v3462
    %v3514 = vunpack.c.h.b16 %v3462
    %v3515 = vunpack.c.l.b16 %v3463
    %v3516 = vunpack.c.h.b16 %v3463
    %v3517 = vunpack.c.l.b16 %v3464
    %v3518 = vunpack.c.h.b16 %v3464
    %v3519 = vunpack.c.l.b16 %v3465
    %v3520 = vunpack.c.h.b16 %v3465
    %v3521 = vunpack.c.l.b16 %v3466
    %v3522 = vunpack.c.h.b16 %v3466
    %v3523 = vunpack.c.l.b16 %v3467
    %v3524 = vunpack.c.h.b16 %v3467
    %v3525 = vunpack.c.l.b16 %v3468
    %v3526 = vunpack.c.h.b16 %v3468
    %v3527 = vunpack.c.l.b16 %v3469
    %v3528 = vunpack.c.h.b16 %v3469
    %v3529 = vunpack.c.l.b16 %v3470
    %v3530 = vunpack.c.h.b16 %v3470
    %v3531 = vpack.c.b16 %v3501, %v3499
    %v3532 = vpack.c.b16 %v3502, %v3500
    %v3533 = vpack.c.b16 %v3505, %v3503
    %v3534 = vpack.c.b16 %v3506, %v3504
    %v3535 = vpack.c.b16 %v3509, %v3507
    %v3536 = vpack.c.b16 %v3510, %v3508
    %v3537 = vpack.c.b16 %v3513, %v3511
    %v3538 = vpack.c.b16 %v3514, %v3512
    %v3539 = vpack.c.b16 %v3517, %v3515
    %v3540 = vpack.c.b16 %v3518, %v3516
    %v3541 = vpack.c.b16 %v3521, %v3519
    %v3542 = vpack.c.b16 %v3522, %v3520
    %v3543 = vpack.c.b16 %v3525, %v3523
    %v3544 = vpack.c.b16 %v3526, %v3524
    %v3545 = vpack.c.b16 %v3529, %v3527
    %v3546 = vpack.c.b16 %v3530, %v3528
    %3563 = vmatprep.subr.bf16.mxu0 %v3532
    %3564 = vmatpush1.bf16.msra.mxu0 %v3531
    %3565 = vmatprep.subr.bf16.mxu0 %v3534
    %3566 = vmatpush1.bf16.msra.mxu0 %v3533
    %3567 = vmatprep.subr.bf16.mxu0 %v3536
    %3568 = vmatpush1.bf16.msra.mxu0 %v3535
    %3569 = vmatprep.subr.bf16.mxu0 %v3538
    %3570 = vmatpush1.bf16.msra.mxu0 %v3537
    %3571 = vmatprep.subr.bf16.mxu0 %v3540
    %3572 = vmatpush1.bf16.msra.mxu0 %v3539
    %3573 = vmatprep.subr.bf16.mxu0 %v3542
    %3574 = vmatpush1.bf16.msra.mxu0 %v3541
    %3575 = vmatprep.subr.bf16.mxu0 %v3544
    %3576 = vmatpush1.bf16.msra.mxu0 %v3543
    %3577 = vmatprep.subr.bf16.mxu0 %v3546
    %3578 = vmatpush1.bf16.msra.mxu0 %v3545
    %3579 = vmatprep.subr.bf16.mxu0 0
    %3580 = vmatpush1.bf16.msra.mxu0 0
    %3581 = vmatprep.subr.bf16.mxu0 0
    %3582 = vmatpush1.bf16.msra.mxu0 0
    %3583 = vmatprep.subr.bf16.mxu0 0
    %3584 = vmatpush1.bf16.msra.mxu0 0
    %3585 = vmatprep.subr.bf16.mxu0 0
    %3586 = vmatpush1.bf16.msra.mxu0 0
    %3587 = vmatprep.subr.bf16.mxu0 0
    %3588 = vmatpush1.bf16.msra.mxu0 0
    %3589 = vmatprep.subr.bf16.mxu0 0
    %3590 = vmatpush1.bf16.msra.mxu0 0
    %3591 = vmatprep.subr.bf16.mxu0 0
    %3592 = vmatpush1.bf16.msra.mxu0 0
    %3593 = vmatprep.subr.bf16.mxu0 0
    %3594 = vmatpush1.bf16.msra.mxu0 0
    %3595 = vmatprep.mubr.bf16.mxu0 0
    %3596 = vmatmul.mubr.bf16.gmra.mrb[0].mxu0 %v3454
    %v3597 = vpop.f32.mrb[0].mxu0
    %v3598 = vadd.f32 %v3476, %v3597
    %v3599 = vpop.f32.mrb[0].mxu0
    %v3600 = vadd.f32 %v3480, %v3599
    %v3601 = vpop.f32.mrb[0].mxu0
    %v3602 = vadd.f32 %v3476, %v3601
    %v3603 = vpop.f32.mrb[0].mxu0
    %v3604 = vadd.f32 %v3480, %v3603
    %3605 = vdwg.mxu0
    %v3606 = vmax.f32 %v3598, 0.0
    %v3607 = vmax.f32 %v3600, 0.0
    %v3608 = vmax.f32 %v3602, 0.0
    %v3609 = vmax.f32 %v3604, 0.0
    %v3610 = vpack.c.bf16 %v3608, %v3606
    %v3611 = vpack.c.bf16 %v3609, %v3607
    %v3612 = vld [vmem:[#allocation26] sm:$0xf]
    %v3613 = vld [vmem:[#allocation26 + $0x4] sm:$0xf]
    %v3614 = vld [vmem:[#allocation26 + $0x8] sm:$0xf]
    %v3615 = vld [vmem:[#allocation26 + $0xc] sm:$0xf]
    %v3616 = vld [vmem:[#allocation26 + $0x10] sm:$0xf]
    %v3617 = vld [vmem:[#allocation26 + $0x14] sm:$0xf]
    %v3618 = vld [vmem:[#allocation26 + $0x18] sm:$0xf]
    %v3619 = vld [vmem:[#allocation26 + $0x1c] sm:$0xf]
    %v3620 = vld [vmem:[#allocation26 + $0x20] sm:$0xf]
    %v3621 = vld [vmem:[#allocation26 + $0x24] sm:$0xf]
    %v3622 = vld [vmem:[#allocation26 + $0x28] sm:$0xf]
    %v3623 = vld [vmem:[#allocation26 + $0x2c] sm:$0xf]
    %v3624 = vld [vmem:[#allocation26 + $0x30] sm:$0xf]
    %v3625 = vld [vmem:[#allocation26 + $0x34] sm:$0xf]
    %v3626 = vld [vmem:[#allocation26 + $0x38] sm:$0xf]
    %v3627 = vld [vmem:[#allocation26 + $0x3c] sm:$0xf]
    %v3628 = vld [vmem:[#allocation26 + $0x40] sm:$0xf]
    %v3629 = vld [vmem:[#allocation26 + $0x44] sm:$0xf]
    %v3630 = vld [vmem:[#allocation26 + $0x48] sm:$0xf]
    %v3631 = vld [vmem:[#allocation26 + $0x4c] sm:$0xf]
    %v3632 = vld [vmem:[#allocation26 + $0x50] sm:$0xf]
    %v3633 = vld [vmem:[#allocation26 + $0x54] sm:$0xf]
    %v3634 = vld [vmem:[#allocation26 + $0x58] sm:$0xf]
    %v3635 = vld [vmem:[#allocation26 + $0x5c] sm:$0xf]
    %v3636 = vld [vmem:[#allocation26 + $0x60] sm:$0xf]
    %v3637 = vld [vmem:[#allocation26 + $0x64] sm:$0xf]
    %v3638 = vld [vmem:[#allocation26 + $0x68] sm:$0xf]
    %v3639 = vld [vmem:[#allocation26 + $0x6c] sm:$0xf]
    %v3640 = vld [vmem:[#allocation26 + $0x70] sm:$0xf]
    %v3641 = vld [vmem:[#allocation26 + $0x74] sm:$0xf]
    %v3642 = vld [vmem:[#allocation26 + $0x78] sm:$0xf]
    %v3643 = vld [vmem:[#allocation26 + $0x7c] sm:$0xf]
    %v3644 = vld [vmem:[#allocation28] sm:$0x1]
    %v3646 = vlaneseq
    %v3647 = vshrl.u32 %v3646, 7
    %v3648 = vsub.s32 0, %v3647
    %v3649 = vrot.slane %v3644, %v3648
    %v3683 = vunpack.c.l.b16 %v3612
    %v3684 = vunpack.c.l.b16 %v3613
    %v3685 = vunpack.c.l.b16 %v3614
    %v3686 = vunpack.c.l.b16 %v3615
    %v3687 = vunpack.c.l.b16 %v3616
    %v3688 = vunpack.c.l.b16 %v3617
    %v3689 = vunpack.c.l.b16 %v3618
    %v3690 = vunpack.c.l.b16 %v3619
    %v3691 = vunpack.c.l.b16 %v3620
    %v3692 = vunpack.c.l.b16 %v3621
    %v3693 = vunpack.c.l.b16 %v3622
    %v3694 = vunpack.c.l.b16 %v3623
    %v3695 = vunpack.c.l.b16 %v3624
    %v3696 = vunpack.c.l.b16 %v3625
    %v3697 = vunpack.c.l.b16 %v3626
    %v3698 = vunpack.c.l.b16 %v3627
    %v3699 = vunpack.c.l.b16 %v3628
    %v3700 = vunpack.c.l.b16 %v3629
    %v3701 = vunpack.c.l.b16 %v3630
    %v3702 = vunpack.c.l.b16 %v3631
    %v3703 = vunpack.c.l.b16 %v3632
    %v3704 = vunpack.c.l.b16 %v3633
    %v3705 = vunpack.c.l.b16 %v3634
    %v3706 = vunpack.c.l.b16 %v3635
    %v3707 = vunpack.c.l.b16 %v3636
    %v3708 = vunpack.c.l.b16 %v3637
    %v3709 = vunpack.c.l.b16 %v3638
    %v3710 = vunpack.c.l.b16 %v3639
    %v3711 = vunpack.c.l.b16 %v3640
    %v3712 = vunpack.c.l.b16 %v3641
    %v3713 = vunpack.c.l.b16 %v3642
    %v3714 = vunpack.c.l.b16 %v3643
    %v3715 = vpack.c.b16 %v3684, %v3683
    %v3716 = vpack.c.b16 %v3686, %v3685
    %v3717 = vpack.c.b16 %v3688, %v3687
    %v3718 = vpack.c.b16 %v3690, %v3689
    %v3719 = vpack.c.b16 %v3692, %v3691
    %v3720 = vpack.c.b16 %v3694, %v3693
    %v3721 = vpack.c.b16 %v3696, %v3695
    %v3722 = vpack.c.b16 %v3698, %v3697
    %v3723 = vpack.c.b16 %v3700, %v3699
    %v3724 = vpack.c.b16 %v3702, %v3701
    %v3725 = vpack.c.b16 %v3704, %v3703
    %v3726 = vpack.c.b16 %v3706, %v3705
    %v3727 = vpack.c.b16 %v3708, %v3707
    %v3728 = vpack.c.b16 %v3710, %v3709
    %v3729 = vpack.c.b16 %v3712, %v3711
    %v3730 = vpack.c.b16 %v3714, %v3713
    %3747 = vmatprep.subr.bf16.mxu0 0
    %3748 = vmatpush1.bf16.msra.mxu0 %v3715
    %3749 = vmatprep.subr.bf16.mxu0 0
    %3750 = vmatpush1.bf16.msra.mxu0 %v3716
    %3751 = vmatprep.subr.bf16.mxu0 0
    %3752 = vmatpush1.bf16.msra.mxu0 %v3717
    %3753 = vmatprep.subr.bf16.mxu0 0
    %3754 = vmatpush1.bf16.msra.mxu0 %v3718
    %3755 = vmatprep.subr.bf16.mxu0 0
    %3756 = vmatpush1.bf16.msra.mxu0 %v3719
    %3757 = vmatprep.subr.bf16.mxu0 0
    %3758 = vmatpush1.bf16.msra.mxu0 %v3720
    %3759 = vmatprep.subr.bf16.mxu0 0
    %3760 = vmatpush1.bf16.msra.mxu0 %v3721
    %3761 = vmatprep.subr.bf16.mxu0 0
    %3762 = vmatpush1.bf16.msra.mxu0 %v3722
    %3763 = vmatprep.subr.bf16.mxu0 0
    %3764 = vmatpush1.bf16.msra.mxu0 %v3723
    %3765 = vmatprep.subr.bf16.mxu0 0
    %3766 = vmatpush1.bf16.msra.mxu0 %v3724
    %3767 = vmatprep.subr.bf16.mxu0 0
    %3768 = vmatpush1.bf16.msra.mxu0 %v3725
    %3769 = vmatprep.subr.bf16.mxu0 0
    %3770 = vmatpush1.bf16.msra.mxu0 %v3726
    %3771 = vmatprep.subr.bf16.mxu0 0
    %3772 = vmatpush1.bf16.msra.mxu0 %v3727
    %3773 = vmatprep.subr.bf16.mxu0 0
    %3774 = vmatpush1.bf16.msra.mxu0 %v3728
    %3775 = vmatprep.subr.bf16.mxu0 0
    %3776 = vmatpush1.bf16.msra.mxu0 %v3729
    %3777 = vmatprep.subr.bf16.mxu0 0
    %3778 = vmatpush1.bf16.msra.mxu0 %v3730
    %3779 = vmatprep.mubr.bf16.mxu0 %v3611
    %3780 = vmatmul.mubr.bf16.gmra.mrb[0].mxu0 %v3610
    %v3781 = vpop.f32.mrb[0].mxu0
    %v3782 = vadd.f32 %v3649, %v3781
    %v3783 = vpop.f32.mrb[0].mxu0
    %v3784 = vpop.f32.mrb[0].mxu0
    %v3785 = vadd.f32 %v3649, %v3784
    %v3786 = vpop.f32.mrb[0].mxu0
    %3787 = vdwg.mxu0
    %3788 = vst [vmem:[%s61] sm:$0xff] %v3782
    %3789 = vst [vmem:[%s61 + $0x8] sm:$0xff] %v3785
    // Predicated region
    $region190: #{forecaster_forward.1} parent=1 // pred_check
      _
    $region191: #{forecaster_forward.1} parent=1 // pred_check_branch
      %3791 = sbr.rel (0) target = $region193
    $region192: #{forecaster_forward.1} parent=1 // pred_region
      _
    $region193: #{forecaster_forward.1} parent=1 // pred_fallthru
      _
    // Predicated region
    $region194: #{forecaster_forward.1} parent=1 // pred_check
      _
    $region195: #{forecaster_forward.1} parent=1 // pred_check_branch
      %3793 = sbr.rel (0) target = $region197
    $region196: #{forecaster_forward.1} parent=1 // pred_region
      _
    $region197: #{forecaster_forward.1} parent=1 // pred_fallthru
      _
    %3794 = vsyncpa [#allocation4], 1
    %3795 = vsyncpa [#allocation6], 1
    %3796 = vsyncpa [#allocation9], 1
    %3797 = vsyncpa [#allocation12], 1
    %3798 = vsyncpa [#allocation15], 1
    %3799 = vsyncpa [#allocation18], 1
    %3800 = vsyncpa [#allocation21], 1
    %3801 = vsyncpa [#allocation24], 1
    %3802 = vsyncpa [#allocation27], 1

</llo_original>
